<compile_context>
chip_gen: v5e
topology: v5e:2x2
jax: 0.10.0
libtpu: 0.0.40
codegen_flags: <defaults>
</compile_context>

<pallas_src>
import functools

import jax
import jax.numpy as jnp
import numpy as np
from jax import lax
from jax.experimental import pallas as pl
from jax.experimental.pallas import tpu as pltpu


# ---------------------------------------------------------------------------
# Pallas kernel: one MXU matmul + f32 bias (+ optional tanh), cast at store.
#   a_ref : (K,  TM) bf16   lane-dense (spatial M on the 128-lane axis)
#   w_ref : (Cb, K)  bf16   resident across the M-tile axis
#   b_ref : (Cb, 1)  f32
#   o_ref : (Cb, TM) bf16 (intermediate layers) or f32 (final tanh layer)
# ---------------------------------------------------------------------------
def _matmul_bias_kernel(a_ref, w_ref, b_ref, o_ref, *, post_tanh):
    acc = jnp.dot(w_ref[...], a_ref[...], preferred_element_type=jnp.float32)
    y = acc + b_ref[...]                       # (Cb,1) f32 broadcast
    if post_tanh:
        y = jnp.tanh(y)
    o_ref[...] = y.astype(o_ref.dtype)


def fused_conv_matmul(a, w, bias, *, post_tanh=False,
                      out_dtype=jnp.bfloat16, tm=1024):
    """a: (N, K, M) bf16;  w: (Cb, K) bf16;  bias: (Cb, 1) f32.
    Returns (N, Cb, M) out_dtype = w @ a + bias (optionally tanh)."""
    N, K, M = a.shape
    Cb = w.shape[0]
    tm = min(tm, M)
    assert M % tm == 0 and tm % 128 == 0, (M, tm)
    kernel = functools.partial(_matmul_bias_kernel, post_tanh=post_tanh)
    return pl.pallas_call(
        kernel,
        out_shape=jax.ShapeDtypeStruct((N, Cb, M), out_dtype),
        grid=(N, M // tm),
        in_specs=[
            pl.BlockSpec((None, K, tm), lambda n, t: (n, 0, t)),   # A tile
            pl.BlockSpec((Cb, K), lambda n, t: (0, 0)),            # weight
            pl.BlockSpec((Cb, 1), lambda n, t: (0, 0)),            # bias
        ],
        out_specs=pl.BlockSpec((None, Cb, tm), lambda n, t: (n, 0, t)),
        compiler_params=pltpu.CompilerParams(
            dimension_semantics=("parallel", "parallel"),
            vmem_limit_bytes=32 * 1024 * 1024),
    )(a, w, bias)


# ---------------------------------------------------------------------------
# JAX-side preps and weight re-layouts (K-folded; a few hundred KB each here)
# ---------------------------------------------------------------------------
def _leaky(x):
    return jnp.where(x >= 0.0, x, 0.2 * x)


def _prep_down(x):
    """x: (N,C,H,W) f32 (pre-activated).  K-folded operand for Conv2d(4,2,1):
    A[(r,c,ph,pw,ci), i*Wo+j] = xpad[ci, 2i+2r+ph, 2j+2c+pw].
    Returns (N, 16C, Ho*Wo) bf16 and (Ho, Wo)."""
    N, C, H, W = x.shape
    Ho, Wo = H // 2, W // 2
    xp = jnp.pad(x, ((0, 0), (0, 0), (1, 1), (1, 1)))
    p = xp.reshape(N, C, Ho + 1, 2, Wo + 1, 2)            # (N,C,i',ph,j',pw)
    p = jnp.transpose(p, (0, 3, 5, 1, 2, 4))              # (N,ph,pw,C,i',j')
    wins = [p[..., r:r + Ho, c:c + Wo] for r in (0, 1) for c in (0, 1)]
    a = jnp.stack(wins, axis=1)                           # (N,rc,ph,pw,C,Ho,Wo)
    a = a.reshape(N, 16 * C, Ho * Wo)
    return a.astype(jnp.bfloat16), (Ho, Wo)


def _wmat_down(w, scale):
    """Conv2d weight (Co,Ci,4,4) with folded BN scale -> (Co, 16Ci) bf16,
    K order = (r, c, ph, pw, ci) matching _prep_down."""
    Co, Ci = w.shape[0], w.shape[1]
    ws = w * scale[:, None, None, None]
    t = ws.reshape(Co, Ci, 2, 2, 2, 2)                    # (Co,Ci,r,ph,c,pw)
    t = jnp.transpose(t, (0, 2, 4, 3, 5, 1))              # (Co,r,c,ph,pw,Ci)
    return t.reshape(Co, 16 * Ci).astype(jnp.bfloat16)


def _prep_up(x):
    """x: (N,C,H,W) f32 (ReLU'd, skip already channel-concatenated).
    Shared 3x3-window slab for ConvTranspose2d(4,2,1):
    S[(er,ec,ci), i*W+j] = xpad[ci, i+er, j+ec].  Returns (N, 9C, H*W) bf16."""
    N, C, H, W = x.shape
    xp = jnp.pad(x, ((0, 0), (0, 0), (1, 1), (1, 1)))     # (N,C,H+2,W+2)
    wins = [xp[:, :, er:er + H, ec:ec + W] for er in range(3) for ec in range(3)]
    a = jnp.stack(wins, axis=1)                           # (N,9,C,H,W)
    return a.reshape(N, 9 * C, H * W).astype(jnp.bfloat16)


def _wmat_up(w, scale):
    """ConvTranspose2d weight (C,Co,4,4) with folded BN scale -> (4Co, 9C) bf16.
    Rows are (a, b, co) output phases (oy=2i+a, ox=2j+b); columns (er, ec, ci).
    out[(a,b,co), i*W+j] = sum_{er,ec,ci} W'[...] * xpad[ci, i+er, j+ec] with
    kh = 3 + a - 2*er, kw = 3 + b - 2*ec, valid iff er-a, ec-b in {0,1}."""
    C, Co = w.shape[0], w.shape[1]
    ws = (w * scale[None, :, None, None]).astype(jnp.float32)
    rows = []
    for a in (0, 1):
        for b in (0, 1):
            cols = []
            for er in range(3):
                for ec in range(3):
                    if (er - a) in (0, 1) and (ec - b) in (0, 1):
                        kh = 3 + a - 2 * er
                        kw = 3 + b - 2 * ec
                        blk = jnp.transpose(ws[:, :, kh, kw])   # (Co, C)
                    else:
                        blk = jnp.zeros((Co, C), jnp.float32)
                    cols.append(blk)
            rows.append(jnp.concatenate(cols, axis=1))          # (Co, 9C)
    return jnp.concatenate(rows, axis=0).astype(jnp.bfloat16)   # (4Co, 9C)


# ---------------------------------------------------------------------------
# Layer apply: Pallas path (large layers) and XLA path (tiny bottleneck)
# ---------------------------------------------------------------------------
def pallas_down(x, layer, pre_leaky):
    x = x.astype(jnp.float32)
    xa = _leaky(x) if pre_leaky else x
    a, (Ho, Wo) = _prep_down(xa)
    y = fused_conv_matmul(a, layer["wmat"], layer["bvec"],
                          out_dtype=jnp.bfloat16)
    N, Co = y.shape[0], y.shape[1]
    return y.reshape(N, Co, Ho, Wo)


def pallas_up(inputs, layer, post_tanh, out_dtype):
    # Merge decoder feature + skip along channels (matches torch.cat order).
    x = jnp.concatenate(
        [jnp.maximum(t.astype(jnp.float32), 0.0) for t in inputs], axis=1)
    N, C, H, W = x.shape
    a = _prep_up(x)
    y = fused_conv_matmul(a, layer["wmat"], layer["bvec"],
                          post_tanh=post_tanh, out_dtype=out_dtype)
    Co = y.shape[1] // 4
    y = y.reshape(N, 2, 2, Co, H, W)                       # (N,a,b,Co,i,j)
    y = jnp.transpose(y, (0, 3, 4, 1, 5, 2)).reshape(N, Co, 2 * H, 2 * W)
    return y


_DN = ("NCHW", "OIHW", "NCHW")


def xla_down(x, w, scale, bias, pre_leaky):
    x = x.astype(jnp.float32)
    xa = _leaky(x) if pre_leaky else x
    y = lax.conv_general_dilated(xa, w, (2, 2), ((1, 1), (1, 1)),
                                 dimension_numbers=_DN)
    return y * scale[None, :, None, None] + bias[None, :, None, None]


def xla_up(inputs, w_t, scale, bias, post_tanh=False):
    x = jnp.concatenate(inputs, axis=1) if len(inputs) > 1 else inputs[0]
    x = jnp.maximum(x.astype(jnp.float32), 0.0)
    k = jnp.transpose(w_t[:, :, ::-1, ::-1], (1, 0, 2, 3))
    y = lax.conv_general_dilated(x, k, (1, 1), ((2, 2), (2, 2)),
                                 lhs_dilation=(2, 2), dimension_numbers=_DN)
    y = y * scale[None, :, None, None] + bias[None, :, None, None]
    return jnp.tanh(y) if post_tanh else y


# ---------------------------------------------------------------------------
# Deterministic parameters (shapes match UNet.__init__; BN folded, eval mode)
# ---------------------------------------------------------------------------
def build_params(input_nc, output_nc, nf, key):
    eps = 1e-5
    keys = iter(jax.random.split(key, 128))

    def bn_fold(c):
        g = 1.0 + 0.1 * jax.random.normal(next(keys), (c,), jnp.float32)
        b = 0.1 * jax.random.normal(next(keys), (c,), jnp.float32)
        rm = 0.1 * jax.random.normal(next(keys), (c,), jnp.float32)
        rv = 0.5 + jax.random.uniform(next(keys), (c,), jnp.float32)
        s = g / jnp.sqrt(rv + eps)
        return s, b - rm * s

    def ident(c):
        return jnp.ones((c,), jnp.float32), jnp.zeros((c,), jnp.float32)

    down_ch = [(input_nc, nf), (nf, 2 * nf), (2 * nf, 4 * nf), (4 * nf, 8 * nf),
               (8 * nf, 8 * nf), (8 * nf, 8 * nf), (8 * nf, 8 * nf)]
    down = []
    for li, (ci, co) in enumerate(down_ch, start=1):
        w = 0.05 * jax.random.normal(next(keys), (co, ci, 4, 4), jnp.float32)
        s, b = ident(co) if li == 1 else bn_fold(co)
        layer = {"w": w, "scale": s, "bias": b}
        if li <= 3:                    # executed with the Pallas kernel
            layer["wmat"] = _wmat_down(w, s)              # (Co, 16Ci) bf16
            layer["bvec"] = b.reshape(co, 1)
        down.append(layer)

    # dlayer7 .. dlayer1
    up_ch = [(8 * nf, 8 * nf), (16 * nf, 8 * nf), (16 * nf, 8 * nf),
             (16 * nf, 4 * nf), (8 * nf, 2 * nf), (4 * nf, nf),
             (2 * nf, output_nc)]
    up = []
    for li, (ci, co) in zip([7, 6, 5, 4, 3, 2, 1], up_ch):
        w = 0.05 * jax.random.normal(next(keys), (ci, co, 4, 4), jnp.float32)
        s, b = ident(co) if li == 1 else bn_fold(co)
        layer = {"w": w, "scale": s, "bias": b}
        if li <= 3:                    # executed with the Pallas kernel
            layer["wmat"] = _wmat_up(w, s)                # (4Co, 9Ci) bf16
            layer["bvec"] = jnp.tile(b, 4).reshape(4 * co, 1)
        up.append(layer)

    return {"down": down, "up": up}


# ---------------------------------------------------------------------------
# Forward passes
# ---------------------------------------------------------------------------
def forward_pallas(x, P):
    x = x.astype(jnp.float32)
    outs = []
    h = x
    for li in range(7):
        L = P["down"][li]
        if li < 3:                                    # large layers -> Pallas
            h = pallas_down(h, L, pre_leaky=(li > 0))         # bf16 out
        else:                                         # tiny bottleneck -> XLA
            h = xla_down(h, L["w"], L["scale"], L["bias"], pre_leaky=True)
        outs.append(h)
    out1, out2, out3, out4, out5, out6, out7 = outs

    U = P["up"]
    d = xla_up([out7], U[0]["w"], U[0]["scale"], U[0]["bias"])       # dlayer7
    d = xla_up([d, out6], U[1]["w"], U[1]["scale"], U[1]["bias"])    # dlayer6
    d = xla_up([d, out5], U[2]["w"], U[2]["scale"], U[2]["bias"])    # dlayer5
    d = xla_up([d, out4], U[3]["w"], U[3]["scale"], U[3]["bias"])    # dlayer4
    d = pallas_up([d, out3], U[4], post_tanh=False,
                  out_dtype=jnp.bfloat16)                            # dlayer3
    d = pallas_up([d, out2], U[5], post_tanh=False,
                  out_dtype=jnp.bfloat16)                            # dlayer2
    d = pallas_up([d, out1], U[6], post_tanh=True,
                  out_dtype=jnp.float32)                             # dlayer1
    return d


def forward_reference(x, P, bf16_match):
    """Pure lax reference.  With bf16_match=True it quantizes exactly where the
    Pallas path does (bf16 matmul operands AND bf16 intermediate stores) so the
    kernel / K-folded decomposition math can be verified tightly."""
    def q(v):
        return v.astype(jnp.bfloat16).astype(jnp.float32) if bf16_match else v

    x = x.astype(jnp.float32)
    outs = []
    h = x
    for li in range(7):
        L = P["down"][li]
        if li < 3:
            xa = _leaky(h) if li > 0 else h
            wq = q(L["w"] * L["scale"][:, None, None, None])
            y = lax.conv_general_dilated(q(xa), wq, (2, 2), ((1, 1), (1, 1)),
                                         dimension_numbers=_DN)
            h = q(y + L["bias"][None, :, None, None])     # bf16 intermediate
        else:
            h = xla_down(h, L["w"], L["scale"], L["bias"], pre_leaky=True)
        outs.append(h)
    out1, out2, out3, out4, out5, out6, out7 = outs

    def up_ref(inputs, L, post_tanh, store_low):
        xr = jnp.maximum(jnp.concatenate(inputs, axis=1), 0.0)
        wq = q(L["w"] * L["scale"][None, :, None, None])
        k = jnp.transpose(wq[:, :, ::-1, ::-1], (1, 0, 2, 3))
        y = lax.conv_general_dilated(q(xr), k, (1, 1), ((2, 2), (2, 2)),
                                     lhs_dilation=(2, 2), dimension_numbers=_DN)
        y = y + L["bias"][None, :, None, None]
        y = jnp.tanh(y) if post_tanh else y
        return q(y) if store_low else y

    U = P["up"]
    d = xla_up([out7], U[0]["w"], U[0]["scale"], U[0]["bias"])
    d = xla_up([d, out6], U[1]["w"], U[1]["scale"], U[1]["bias"])
    d = xla_up([d, out5], U[2]["w"], U[2]["scale"], U[2]["bias"])
    d = xla_up([d, out4], U[3]["w"], U[3]["scale"], U[3]["bias"])
    d = up_ref([d, out3], U[4], post_tanh=False, store_low=True)
    d = up_ref([d, out2], U[5], post_tanh=False, store_low=True)
    d = up_ref([d, out1], U[6], post_tanh=True, store_low=False)
    return d


# ---------------------------------------------------------------------------
if __name__ == "__main__":
    key = jax.random.PRNGKey(0)
    kp, kx = jax.random.split(key)

    # 7 stride-2 downsamples => spatial must be a multiple of 2**7 = 128.
    input_nc, output_nc, nf = 3, 3, 4
    N, H, W = 1, 128, 128
    P = build_params(input_nc, output_nc, nf, kp)
    x = jax.random.normal(kx, (N, input_nc, H, W), jnp.float32)

    pallas_fwd = jax.jit(lambda xx: forward_pallas(xx, P))
    y = jax.block_until_ready(pallas_fwd(x))
    assert y.shape == (N, output_nc, H, W), y.shape

    # Tight check: reference with matched bf16 quantization points -> verifies
    # the K-folded conv / sub-pixel transposed-conv decomposition exactly.
    ref_q = jax.block_until_ready(
        jax.jit(lambda xx: forward_reference(xx, P, True))(x))
    np.testing.assert_allclose(np.asarray(y), np.asarray(ref_q),
                               rtol=2e-3, atol=2e-3)

    # Loose sanity check vs the pure-f32 reference (original module
    # semantics); slack covers the deliberate bf16 operand casts and bf16
    # intermediate activations on the six Pallas-executed layers.
    ref_f = jax.block_until_ready(
        jax.jit(lambda xx: forward_reference(xx, P, False))(x))
    np.testing.assert_allclose(np.asarray(y), np.asarray(ref_f),
                               rtol=1e-1, atol=1e-1)

    print("KERNEL_OK")
</pallas_src>

<mosaic_0001>
module attributes {stable_mosaic.version = 11 : i64} {
  func.func @_matmul_bias_kernel(%arg0: i32, %arg1: i32, %arg2: memref<1x48x1024xbf16, #tpu.memory_space<vmem>>, %arg3: memref<4x48xbf16, #tpu.memory_space<vmem>>, %arg4: memref<4x1xf32, #tpu.memory_space<vmem>>, %arg5: memref<1x4x1024xbf16, #tpu.memory_space<vmem>>) attributes {dimension_semantics = [#tpu.dimension_semantics<parallel>, #tpu.dimension_semantics<parallel>], iteration_bounds = array<i64: 1, 4>, scalar_prefetch = 0 : i64, scratch_operands = 0 : i64, tpu.core_type = #tpu.core_type<tc>, window_params = [{transform_indices = @transform_0, window_bounds = array<i64: 1, 48, 1024>}, {pipeline_mode = #tpu.pipeline_mode<synchronous>, transform_indices = @transform_1, window_bounds = array<i64: 4, 48>}, {pipeline_mode = #tpu.pipeline_mode<synchronous>, transform_indices = @transform_2, window_bounds = array<i64: 4, 1>}, {transform_indices = @transform_3, window_bounds = array<i64: 1, 4, 1024>}]} {
    %c0 = arith.constant 0 : index
    %c0_0 = arith.constant 0 : index
    %0 = vector.load %arg3[%c0, %c0_0] : memref<4x48xbf16, #tpu.memory_space<vmem>>, vector<4x48xbf16>
    %c0_1 = arith.constant 0 : index
    %c0_2 = arith.constant 0 : index
    %c0_3 = arith.constant 0 : index
    %1 = vector.load %arg2[%c0_1, %c0_2, %c0_3] : memref<1x48x1024xbf16, #tpu.memory_space<vmem>>, vector<1x48x1024xbf16>
    %2 = vector.shape_cast %1 : vector<1x48x1024xbf16> to vector<48x1024xbf16>
    %cst = arith.constant dense<0.000000e+00> : vector<4x1024xf32>
    %3 = tpu.matmul %0, %2, %cst {dimension_numbers = #tpu.dot_dimension_numbers<[1], [0], [0], [1], [0, 0, 1, 1], [], []>} : vector<4x48xbf16>, vector<48x1024xbf16>, vector<4x1024xf32> -> vector<4x1024xf32>
    %c0_4 = arith.constant 0 : index
    %c0_5 = arith.constant 0 : index
    %4 = vector.load %arg4[%c0_4, %c0_5] : memref<4x1xf32, #tpu.memory_space<vmem>>, vector<4x1xf32>
    %5 = vector.broadcast %4 : vector<4x1xf32> to vector<4x1024xf32>
    %6 = arith.addf %3, %5 : vector<4x1024xf32>
    %7 = arith.truncf %6 : vector<4x1024xf32> to vector<4x1024xbf16>
    %c0_6 = arith.constant 0 : index
    %c0_7 = arith.constant 0 : index
    %c0_8 = arith.constant 0 : index
    %8 = vector.load %arg5[%c0_6, %c0_7, %c0_8] : memref<1x4x1024xbf16, #tpu.memory_space<vmem>>, vector<1x4x1024xbf16>
    %9 = vector.shape_cast %8 : vector<1x4x1024xbf16> to vector<4x1024xbf16>
    %10 = vector.shape_cast %7 : vector<4x1024xbf16> to vector<1x4x1024xbf16>
    tpu.vector_store %arg5[%c0_6, %c0_7, %c0_8], %10 {strides = array<i32>} : memref<1x4x1024xbf16, #tpu.memory_space<vmem>>, vector<1x4x1024xbf16>,
    return
  }
  func.func @transform_0(%arg0: i32, %arg1: i32) -> (i32, i32, i32) {
    %c0_i32 = arith.constant 0 : i32
    %c0_i32_0 = arith.constant 0 : i32
    return %arg0, %c0_i32, %arg1 : i32, i32, i32
  }
  func.func @transform_1(%arg0: i32, %arg1: i32) -> (i32, i32) {
    %c0_i32 = arith.constant 0 : i32
    %c0_i32_0 = arith.constant 0 : i32
    %c0_i32_1 = arith.constant 0 : i32
    return %c0_i32, %c0_i32_0 : i32, i32
  }
  func.func @transform_2(%arg0: i32, %arg1: i32) -> (i32, i32) {
    %c0_i32 = arith.constant 0 : i32
    %c0_i32_0 = arith.constant 0 : i32
    %c0_i32_1 = arith.constant 0 : i32
    return %c0_i32, %c0_i32_0 : i32, i32
  }
  func.func @transform_3(%arg0: i32, %arg1: i32) -> (i32, i32, i32) {
    %c0_i32 = arith.constant 0 : i32
    %c0_i32_0 = arith.constant 0 : i32
    return %arg0, %c0_i32, %arg1 : i32, i32, i32
  }
}

module attributes {stable_mosaic.version = 11 : i64} {
  func.func @_matmul_bias_kernel(%arg0: i32, %arg1: i32, %arg2: memref<1x64x1024xbf16, #tpu.memory_space<vmem>>, %arg3: memref<8x64xbf16, #tpu.memory_space<vmem>>, %arg4: memref<8x1xf32, #tpu.memory_space<vmem>>, %arg5: memref<1x8x1024xbf16, #tpu.memory_space<vmem>>) attributes {dimension_semantics = [#tpu.dimension_semantics<parallel>, #tpu.dimension_semantics<parallel>], iteration_bounds = array<i64: 1, 1>, scalar_prefetch = 0 : i64, scratch_operands = 0 : i64, tpu.core_type = #tpu.core_type<tc>, window_params = [{transform_indices = @transform_0, window_bounds = array<i64: 1, 64, 1024>}, {pipeline_mode = #tpu.pipeline_mode<synchronous>, transform_indices = @transform_1, window_bounds = array<i64: 8, 64>}, {pipeline_mode = #tpu.pipeline_mode<synchronous>, transform_indices = @transform_2, window_bounds = array<i64: 8, 1>}, {transform_indices = @transform_3, window_bounds = array<i64: 1, 8, 1024>}]} {
    %c0 = arith.constant 0 : index
    %c0_0 = arith.constant 0 : index
    %0 = vector.load %arg3[%c0, %c0_0] : memref<8x64xbf16, #tpu.memory_space<vmem>>, vector<8x64xbf16>
    %c0_1 = arith.constant 0 : index
    %c0_2 = arith.constant 0 : index
    %c0_3 = arith.constant 0 : index
    %1 = vector.load %arg2[%c0_1, %c0_2, %c0_3] : memref<1x64x1024xbf16, #tpu.memory_space<vmem>>, vector<1x64x1024xbf16>
    %2 = vector.shape_cast %1 : vector<1x64x1024xbf16> to vector<64x1024xbf16>
    %cst = arith.constant dense<0.000000e+00> : vector<8x1024xf32>
    %3 = tpu.matmul %0, %2, %cst {dimension_numbers = #tpu.dot_dimension_numbers<[1], [0], [0], [1], [0, 0, 1, 1], [], []>} : vector<8x64xbf16>, vector<64x1024xbf16>, vector<8x1024xf32> -> vector<8x1024xf32>
    %c0_4 = arith.constant 0 : index
    %c0_5 = arith.constant 0 : index
    %4 = vector.load %arg4[%c0_4, %c0_5] : memref<8x1xf32, #tpu.memory_space<vmem>>, vector<8x1xf32>
    %5 = vector.broadcast %4 : vector<8x1xf32> to vector<8x1024xf32>
    %6 = arith.addf %3, %5 : vector<8x1024xf32>
    %7 = arith.truncf %6 : vector<8x1024xf32> to vector<8x1024xbf16>
    %c0_6 = arith.constant 0 : index
    %c0_7 = arith.constant 0 : index
    %c0_8 = arith.constant 0 : index
    %8 = vector.load %arg5[%c0_6, %c0_7, %c0_8] : memref<1x8x1024xbf16, #tpu.memory_space<vmem>>, vector<1x8x1024xbf16>
    %9 = vector.shape_cast %8 : vector<1x8x1024xbf16> to vector<8x1024xbf16>
    %10 = vector.shape_cast %7 : vector<8x1024xbf16> to vector<1x8x1024xbf16>
    tpu.vector_store %arg5[%c0_6, %c0_7, %c0_8], %10 {strides = array<i32>} : memref<1x8x1024xbf16, #tpu.memory_space<vmem>>, vector<1x8x1024xbf16>,
    return
  }
  func.func @transform_0(%arg0: i32, %arg1: i32) -> (i32, i32, i32) {
    %c0_i32 = arith.constant 0 : i32
    %c0_i32_0 = arith.constant 0 : i32
    return %arg0, %c0_i32, %arg1 : i32, i32, i32
  }
  func.func @transform_1(%arg0: i32, %arg1: i32) -> (i32, i32) {
    %c0_i32 = arith.constant 0 : i32
    %c0_i32_0 = arith.constant 0 : i32
    %c0_i32_1 = arith.constant 0 : i32
    return %c0_i32, %c0_i32_0 : i32, i32
  }
  func.func @transform_2(%arg0: i32, %arg1: i32) -> (i32, i32) {
    %c0_i32 = arith.constant 0 : i32
    %c0_i32_0 = arith.constant 0 : i32
    %c0_i32_1 = arith.constant 0 : i32
    return %c0_i32, %c0_i32_0 : i32, i32
  }
  func.func @transform_3(%arg0: i32, %arg1: i32) -> (i32, i32, i32) {
    %c0_i32 = arith.constant 0 : i32
    %c0_i32_0 = arith.constant 0 : i32
    return %arg0, %c0_i32, %arg1 : i32, i32, i32
  }
}

module attributes {stable_mosaic.version = 11 : i64} {
  func.func @_matmul_bias_kernel(%arg0: i32, %arg1: i32, %arg2: memref<1x128x256xbf16, #tpu.memory_space<vmem>>, %arg3: memref<16x128xbf16, #tpu.memory_space<vmem>>, %arg4: memref<16x1xf32, #tpu.memory_space<vmem>>, %arg5: memref<1x16x256xbf16, #tpu.memory_space<vmem>>) attributes {dimension_semantics = [#tpu.dimension_semantics<parallel>, #tpu.dimension_semantics<parallel>], iteration_bounds = array<i64: 1, 1>, scalar_prefetch = 0 : i64, scratch_operands = 0 : i64, tpu.core_type = #tpu.core_type<tc>, window_params = [{transform_indices = @transform_0, window_bounds = array<i64: 1, 128, 256>}, {pipeline_mode = #tpu.pipeline_mode<synchronous>, transform_indices = @transform_1, window_bounds = array<i64: 16, 128>}, {pipeline_mode = #tpu.pipeline_mode<synchronous>, transform_indices = @transform_2, window_bounds = array<i64: 16, 1>}, {transform_indices = @transform_3, window_bounds = array<i64: 1, 16, 256>}]} {
    %c0 = arith.constant 0 : index
    %c0_0 = arith.constant 0 : index
    %0 = vector.load %arg3[%c0, %c0_0] : memref<16x128xbf16, #tpu.memory_space<vmem>>, vector<16x128xbf16>
    %c0_1 = arith.constant 0 : index
    %c0_2 = arith.constant 0 : index
    %c0_3 = arith.constant 0 : index
    %1 = vector.load %arg2[%c0_1, %c0_2, %c0_3] : memref<1x128x256xbf16, #tpu.memory_space<vmem>>, vector<1x128x256xbf16>
    %2 = vector.shape_cast %1 : vector<1x128x256xbf16> to vector<128x256xbf16>
    %cst = arith.constant dense<0.000000e+00> : vector<16x256xf32>
    %3 = tpu.matmul %0, %2, %cst {dimension_numbers = #tpu.dot_dimension_numbers<[1], [0], [0], [1], [0, 0, 1, 1], [], []>} : vector<16x128xbf16>, vector<128x256xbf16>, vector<16x256xf32> -> vector<16x256xf32>
    %c0_4 = arith.constant 0 : index
    %c0_5 = arith.constant 0 : index
    %4 = vector.load %arg4[%c0_4, %c0_5] : memref<16x1xf32, #tpu.memory_space<vmem>>, vector<16x1xf32>
    %5 = vector.broadcast %4 : vector<16x1xf32> to vector<16x256xf32>
    %6 = arith.addf %3, %5 : vector<16x256xf32>
    %7 = arith.truncf %6 : vector<16x256xf32> to vector<16x256xbf16>
    %c0_6 = arith.constant 0 : index
    %c0_7 = arith.constant 0 : index
    %c0_8 = arith.constant 0 : index
    %8 = vector.load %arg5[%c0_6, %c0_7, %c0_8] : memref<1x16x256xbf16, #tpu.memory_space<vmem>>, vector<1x16x256xbf16>
    %9 = vector.shape_cast %8 : vector<1x16x256xbf16> to vector<16x256xbf16>
    %10 = vector.shape_cast %7 : vector<16x256xbf16> to vector<1x16x256xbf16>
    tpu.vector_store %arg5[%c0_6, %c0_7, %c0_8], %10 {strides = array<i32>} : memref<1x16x256xbf16, #tpu.memory_space<vmem>>, vector<1x16x256xbf16>,
    return
  }
  func.func @transform_0(%arg0: i32, %arg1: i32) -> (i32, i32, i32) {
    %c0_i32 = arith.constant 0 : i32
    %c0_i32_0 = arith.constant 0 : i32
    return %arg0, %c0_i32, %arg1 : i32, i32, i32
  }
  func.func @transform_1(%arg0: i32, %arg1: i32) -> (i32, i32) {
    %c0_i32 = arith.constant 0 : i32
    %c0_i32_0 = arith.constant 0 : i32
    %c0_i32_1 = arith.constant 0 : i32
    return %c0_i32, %c0_i32_0 : i32, i32
  }
  func.func @transform_2(%arg0: i32, %arg1: i32) -> (i32, i32) {
    %c0_i32 = arith.constant 0 : i32
    %c0_i32_0 = arith.constant 0 : i32
    %c0_i32_1 = arith.constant 0 : i32
    return %c0_i32, %c0_i32_0 : i32, i32
  }
  func.func @transform_3(%arg0: i32, %arg1: i32) -> (i32, i32, i32) {
    %c0_i32 = arith.constant 0 : i32
    %c0_i32_0 = arith.constant 0 : i32
    return %arg0, %c0_i32, %arg1 : i32, i32, i32
  }
}

module attributes {stable_mosaic.version = 11 : i64} {
  func.func @_matmul_bias_kernel(%arg0: i32, %arg1: i32, %arg2: memref<1x288x256xbf16, #tpu.memory_space<vmem>>, %arg3: memref<32x288xbf16, #tpu.memory_space<vmem>>, %arg4: memref<32x1xf32, #tpu.memory_space<vmem>>, %arg5: memref<1x32x256xbf16, #tpu.memory_space<vmem>>) attributes {dimension_semantics = [#tpu.dimension_semantics<parallel>, #tpu.dimension_semantics<parallel>], iteration_bounds = array<i64: 1, 1>, scalar_prefetch = 0 : i64, scratch_operands = 0 : i64, tpu.core_type = #tpu.core_type<tc>, window_params = [{transform_indices = @transform_0, window_bounds = array<i64: 1, 288, 256>}, {pipeline_mode = #tpu.pipeline_mode<synchronous>, transform_indices = @transform_1, window_bounds = array<i64: 32, 288>}, {pipeline_mode = #tpu.pipeline_mode<synchronous>, transform_indices = @transform_2, window_bounds = array<i64: 32, 1>}, {transform_indices = @transform_3, window_bounds = array<i64: 1, 32, 256>}]} {
    %c0 = arith.constant 0 : index
    %c0_0 = arith.constant 0 : index
    %0 = vector.load %arg3[%c0, %c0_0] : memref<32x288xbf16, #tpu.memory_space<vmem>>, vector<32x288xbf16>
    %c0_1 = arith.constant 0 : index
    %c0_2 = arith.constant 0 : index
    %c0_3 = arith.constant 0 : index
    %1 = vector.load %arg2[%c0_1, %c0_2, %c0_3] : memref<1x288x256xbf16, #tpu.memory_space<vmem>>, vector<1x288x256xbf16>
    %2 = vector.shape_cast %1 : vector<1x288x256xbf16> to vector<288x256xbf16>
    %cst = arith.constant dense<0.000000e+00> : vector<32x256xf32>
    %3 = tpu.matmul %0, %2, %cst {dimension_numbers = #tpu.dot_dimension_numbers<[1], [0], [0], [1], [0, 0, 1, 1], [], []>} : vector<32x288xbf16>, vector<288x256xbf16>, vector<32x256xf32> -> vector<32x256xf32>
    %c0_4 = arith.constant 0 : index
    %c0_5 = arith.constant 0 : index
    %4 = vector.load %arg4[%c0_4, %c0_5] : memref<32x1xf32, #tpu.memory_space<vmem>>, vector<32x1xf32>
    %5 = vector.broadcast %4 : vector<32x1xf32> to vector<32x256xf32>
    %6 = arith.addf %3, %5 : vector<32x256xf32>
    %7 = arith.truncf %6 : vector<32x256xf32> to vector<32x256xbf16>
    %c0_6 = arith.constant 0 : index
    %c0_7 = arith.constant 0 : index
    %c0_8 = arith.constant 0 : index
    %8 = vector.load %arg5[%c0_6, %c0_7, %c0_8] : memref<1x32x256xbf16, #tpu.memory_space<vmem>>, vector<1x32x256xbf16>
    %9 = vector.shape_cast %8 : vector<1x32x256xbf16> to vector<32x256xbf16>
    %10 = vector.shape_cast %7 : vector<32x256xbf16> to vector<1x32x256xbf16>
    tpu.vector_store %arg5[%c0_6, %c0_7, %c0_8], %10 {strides = array<i32>} : memref<1x32x256xbf16, #tpu.memory_space<vmem>>, vector<1x32x256xbf16>,
    return
  }
  func.func @transform_0(%arg0: i32, %arg1: i32) -> (i32, i32, i32) {
    %c0_i32 = arith.constant 0 : i32
    %c0_i32_0 = arith.constant 0 : i32
    return %arg0, %c0_i32, %arg1 : i32, i32, i32
  }
  func.func @transform_1(%arg0: i32, %arg1: i32) -> (i32, i32) {
    %c0_i32 = arith.constant 0 : i32
    %c0_i32_0 = arith.constant 0 : i32
    %c0_i32_1 = arith.constant 0 : i32
    return %c0_i32, %c0_i32_0 : i32, i32
  }
  func.func @transform_2(%arg0: i32, %arg1: i32) -> (i32, i32) {
    %c0_i32 = arith.constant 0 : i32
    %c0_i32_0 = arith.constant 0 : i32
    %c0_i32_1 = arith.constant 0 : i32
    return %c0_i32, %c0_i32_0 : i32, i32
  }
  func.func @transform_3(%arg0: i32, %arg1: i32) -> (i32, i32, i32) {
    %c0_i32 = arith.constant 0 : i32
    %c0_i32_0 = arith.constant 0 : i32
    return %arg0, %c0_i32, %arg1 : i32, i32, i32
  }
}

module attributes {stable_mosaic.version = 11 : i64} {
  func.func @_matmul_bias_kernel(%arg0: i32, %arg1: i32, %arg2: memref<1x144x1024xbf16, #tpu.memory_space<vmem>>, %arg3: memref<16x144xbf16, #tpu.memory_space<vmem>>, %arg4: memref<16x1xf32, #tpu.memory_space<vmem>>, %arg5: memref<1x16x1024xbf16, #tpu.memory_space<vmem>>) attributes {dimension_semantics = [#tpu.dimension_semantics<parallel>, #tpu.dimension_semantics<parallel>], iteration_bounds = array<i64: 1, 1>, scalar_prefetch = 0 : i64, scratch_operands = 0 : i64, tpu.core_type = #tpu.core_type<tc>, window_params = [{transform_indices = @transform_0, window_bounds = array<i64: 1, 144, 1024>}, {pipeline_mode = #tpu.pipeline_mode<synchronous>, transform_indices = @transform_1, window_bounds = array<i64: 16, 144>}, {pipeline_mode = #tpu.pipeline_mode<synchronous>, transform_indices = @transform_2, window_bounds = array<i64: 16, 1>}, {transform_indices = @transform_3, window_bounds = array<i64: 1, 16, 1024>}]} {
    %c0 = arith.constant 0 : index
    %c0_0 = arith.constant 0 : index
    %0 = vector.load %arg3[%c0, %c0_0] : memref<16x144xbf16, #tpu.memory_space<vmem>>, vector<16x144xbf16>
    %c0_1 = arith.constant 0 : index
    %c0_2 = arith.constant 0 : index
    %c0_3 = arith.constant 0 : index
    %1 = vector.load %arg2[%c0_1, %c0_2, %c0_3] : memref<1x144x1024xbf16, #tpu.memory_space<vmem>>, vector<1x144x1024xbf16>
    %2 = vector.shape_cast %1 : vector<1x144x1024xbf16> to vector<144x1024xbf16>
    %cst = arith.constant dense<0.000000e+00> : vector<16x1024xf32>
    %3 = tpu.matmul %0, %2, %cst {dimension_numbers = #tpu.dot_dimension_numbers<[1], [0], [0], [1], [0, 0, 1, 1], [], []>} : vector<16x144xbf16>, vector<144x1024xbf16>, vector<16x1024xf32> -> vector<16x1024xf32>
    %c0_4 = arith.constant 0 : index
    %c0_5 = arith.constant 0 : index
    %4 = vector.load %arg4[%c0_4, %c0_5] : memref<16x1xf32, #tpu.memory_space<vmem>>, vector<16x1xf32>
    %5 = vector.broadcast %4 : vector<16x1xf32> to vector<16x1024xf32>
    %6 = arith.addf %3, %5 : vector<16x1024xf32>
    %7 = arith.truncf %6 : vector<16x1024xf32> to vector<16x1024xbf16>
    %c0_6 = arith.constant 0 : index
    %c0_7 = arith.constant 0 : index
    %c0_8 = arith.constant 0 : index
    %8 = vector.load %arg5[%c0_6, %c0_7, %c0_8] : memref<1x16x1024xbf16, #tpu.memory_space<vmem>>, vector<1x16x1024xbf16>
    %9 = vector.shape_cast %8 : vector<1x16x1024xbf16> to vector<16x1024xbf16>
    %10 = vector.shape_cast %7 : vector<16x1024xbf16> to vector<1x16x1024xbf16>
    tpu.vector_store %arg5[%c0_6, %c0_7, %c0_8], %10 {strides = array<i32>} : memref<1x16x1024xbf16, #tpu.memory_space<vmem>>, vector<1x16x1024xbf16>,
    return
  }
  func.func @transform_0(%arg0: i32, %arg1: i32) -> (i32, i32, i32) {
    %c0_i32 = arith.constant 0 : i32
    %c0_i32_0 = arith.constant 0 : i32
    return %arg0, %c0_i32, %arg1 : i32, i32, i32
  }
  func.func @transform_1(%arg0: i32, %arg1: i32) -> (i32, i32) {
    %c0_i32 = arith.constant 0 : i32
    %c0_i32_0 = arith.constant 0 : i32
    %c0_i32_1 = arith.constant 0 : i32
    return %c0_i32, %c0_i32_0 : i32, i32
  }
  func.func @transform_2(%arg0: i32, %arg1: i32) -> (i32, i32) {
    %c0_i32 = arith.constant 0 : i32
    %c0_i32_0 = arith.constant 0 : i32
    %c0_i32_1 = arith.constant 0 : i32
    return %c0_i32, %c0_i32_0 : i32, i32
  }
  func.func @transform_3(%arg0: i32, %arg1: i32) -> (i32, i32, i32) {
    %c0_i32 = arith.constant 0 : i32
    %c0_i32_0 = arith.constant 0 : i32
    return %arg0, %c0_i32, %arg1 : i32, i32, i32
  }
}

module attributes {stable_mosaic.version = 11 : i64} {
  func.func @_matmul_bias_kernel(%arg0: i32, %arg1: i32, %arg2: memref<1x72x1024xbf16, #tpu.memory_space<vmem>>, %arg3: memref<12x72xbf16, #tpu.memory_space<vmem>>, %arg4: memref<12x1xf32, #tpu.memory_space<vmem>>, %arg5: memref<1x12x1024xf32, #tpu.memory_space<vmem>>) attributes {dimension_semantics = [#tpu.dimension_semantics<parallel>, #tpu.dimension_semantics<parallel>], iteration_bounds = array<i64: 1, 4>, scalar_prefetch = 0 : i64, scratch_operands = 0 : i64, tpu.core_type = #tpu.core_type<tc>, window_params = [{transform_indices = @transform_0, window_bounds = array<i64: 1, 72, 1024>}, {pipeline_mode = #tpu.pipeline_mode<synchronous>, transform_indices = @transform_1, window_bounds = array<i64: 12, 72>}, {pipeline_mode = #tpu.pipeline_mode<synchronous>, transform_indices = @transform_2, window_bounds = array<i64: 12, 1>}, {transform_indices = @transform_3, window_bounds = array<i64: 1, 12, 1024>}]} {
    %c0 = arith.constant 0 : index
    %c0_0 = arith.constant 0 : index
    %0 = vector.load %arg3[%c0, %c0_0] : memref<12x72xbf16, #tpu.memory_space<vmem>>, vector<12x72xbf16>
    %c0_1 = arith.constant 0 : index
    %c0_2 = arith.constant 0 : index
    %c0_3 = arith.constant 0 : index
    %1 = vector.load %arg2[%c0_1, %c0_2, %c0_3] : memref<1x72x1024xbf16, #tpu.memory_space<vmem>>, vector<1x72x1024xbf16>
    %2 = vector.shape_cast %1 : vector<1x72x1024xbf16> to vector<72x1024xbf16>
    %cst = arith.constant dense<0.000000e+00> : vector<12x1024xf32>
    %3 = tpu.matmul %0, %2, %cst {dimension_numbers = #tpu.dot_dimension_numbers<[1], [0], [0], [1], [0, 0, 1, 1], [], []>} : vector<12x72xbf16>, vector<72x1024xbf16>, vector<12x1024xf32> -> vector<12x1024xf32>
    %c0_4 = arith.constant 0 : index
    %c0_5 = arith.constant 0 : index
    %4 = vector.load %arg4[%c0_4, %c0_5] : memref<12x1xf32, #tpu.memory_space<vmem>>, vector<12x1xf32>
    %5 = vector.broadcast %4 : vector<12x1xf32> to vector<12x1024xf32>
    %6 = arith.addf %3, %5 : vector<12x1024xf32>
    %7 = math.tanh %6 : vector<12x1024xf32>
    %c0_6 = arith.constant 0 : index
    %c0_7 = arith.constant 0 : index
    %c0_8 = arith.constant 0 : index
    %8 = vector.load %arg5[%c0_6, %c0_7, %c0_8] : memref<1x12x1024xf32, #tpu.memory_space<vmem>>, vector<1x12x1024xf32>
    %9 = vector.shape_cast %8 : vector<1x12x1024xf32> to vector<12x1024xf32>
    %10 = vector.shape_cast %7 : vector<12x1024xf32> to vector<1x12x1024xf32>
    tpu.vector_store %arg5[%c0_6, %c0_7, %c0_8], %10 {strides = array<i32>} : memref<1x12x1024xf32, #tpu.memory_space<vmem>>, vector<1x12x1024xf32>,
    return
  }
  func.func @transform_0(%arg0: i32, %arg1: i32) -> (i32, i32, i32) {
    %c0_i32 = arith.constant 0 : i32
    %c0_i32_0 = arith.constant 0 : i32
    return %arg0, %c0_i32, %arg1 : i32, i32, i32
  }
  func.func @transform_1(%arg0: i32, %arg1: i32) -> (i32, i32) {
    %c0_i32 = arith.constant 0 : i32
    %c0_i32_0 = arith.constant 0 : i32
    %c0_i32_1 = arith.constant 0 : i32
    return %c0_i32, %c0_i32_0 : i32, i32
  }
  func.func @transform_2(%arg0: i32, %arg1: i32) -> (i32, i32) {
    %c0_i32 = arith.constant 0 : i32
    %c0_i32_0 = arith.constant 0 : i32
    %c0_i32_1 = arith.constant 0 : i32
    return %c0_i32, %c0_i32_0 : i32, i32
  }
  func.func @transform_3(%arg0: i32, %arg1: i32) -> (i32, i32, i32) {
    %c0_i32 = arith.constant 0 : i32
    %c0_i32_0 = arith.constant 0 : i32
    return %arg0, %c0_i32, %arg1 : i32, i32, i32
  }
}

</mosaic_0001>

<llo_original>
// kernel: _lambda_.6
$region0: #{_lambda_.6}
  #allocation0 [shape = 'u32[]', space=smem, size = 0x4, offset = 0x4, fixed_abs, tag = 'smem constant byte address 0x4 - core index']
  #allocation1 [shape = 'u32[72,128]{1,0:T(1,128)}', space=vmem, size = 0x9000, scoped, tag = 'internal scratch']
  %s0 = inlined_call_operand.vmem [shape: bf16[1,48,4096], index: 0, kind: input, shape index: {}]
  %s1 = inlined_call_operand.vmem [shape: bf16[4,48], index: 1, kind: input, shape index: {}]
  %s2 = inlined_call_operand.vmem [shape: f32[4,1], index: 2, kind: input, shape index: {}]
  %s3 = inlined_call_operand.vmem [shape: bf16[1,4,4096], index: 3, kind: output, shape index: {}]
  %s4 = sld [smem:[#allocation0]]
  $region68: #{_lambda_.6} parent=0
    _
  %s6 = ssub.s32 1, %s4
  %s7 = scalar_select 0, %s6, %s4
  $region1: #{_lambda_.6} parent=0
    #allocation2 [shape = 'u8[196608]{0}', space=vmem, size = 0x30000, scoped, tag = 'input window, operand 0']
    loop: start=0, step=1, limit=6
    $region2: #{_lambda_.6} parent=1 // loop_pre_header
      _
    $region3: #{_lambda_.6} parent=1 // loop_header
      %s9 = sphi 0, %s13
      %p10 = scmp.ge.s32.totalorder %s9, 6
      %s16 = sphi 0, %s28
      %s17 = sphi 0, %s24
      %s18 = sphi 0, %s16
      %s19 = sphi 0, %s17
      %s20 = sphi 0, %s18
      %s21 = sphi 0, %s19
      %s33 = sphi 0, %s35
      %s36 = sphi 0, %s33
      %s37 = sphi 0, %s36
      %s53 = sphi 0, %s37
      %s57 = sphi 0, %s57
      %s59 = sphi 0, %s57
      %s60 = sphi 0, %s59
      %s74 = sphi 0, %s60
      %s78 = sphi 0, %s78
      %s80 = sphi 0, %s78
      %s81 = sphi 0, %s80
      %s95 = sphi 0, %s81
      %s103 = sphi 0, %s105
      %s106 = sphi 0, %s103
      %s107 = sphi 0, %s106
      %s123 = sphi 0, %s107
    $region4: #{_lambda_.6} parent=1 // loop_header_branch
      %12 = sbr.rel (%p10) target = $region8
    $region5: #{_lambda_.6} parent=1 // loop_body
      %s14 = ssub.s32 %s9, 1
      %s15 = ssub.s32 %s9, 2
      %s22 = sadd.s32 1, %s17
      %p23 = scmp.ge.s32.totalorder %s22, 4
      %s24 = scalar_select %p23, 0, %s22
      %s25 = sadd.s32 1, %s16
      %s26 = scalar_select %p23, %s25, %s16
      %p27 = scmp.ge.s32.totalorder %s26, 1
      %s28 = scalar_select %p27, 0, %s26
      %s29 = ssub.s32 %s16, %s28
      %s30 = ssub.s32 %s17, %s24
      %s31 = sor.u32 %s29, %s30
      %p32 = scmp.eq.s32.totalorder %s31, 0
      %s34 = sadd.s32 %s33, 1
      %s35 = scalar_select %p32, %s33, %s34
      %p38 = pneg %p32
      %p39 = scmp.eq.s32.totalorder %s9, 3
      %p40 = por %p38, %p39
      %p41 = scmp.ne.s32.totalorder %s33, %s36
      %p42 = scmp.eq.s32.totalorder %s9, 0
      %p43 = por %p41, %p42
      %p44 = scmp.ne.s32.totalorder %s33, %s36
      %p45 = scmp.eq.s32.totalorder %s14, 3
      %p46 = por %p44, %p45
      %p47 = scmp.ne.s32.totalorder %s36, %s37
      %p48 = scmp.eq.s32.totalorder %s14, 0
      %p49 = por %p47, %p48
      %p50 = scmp.ne.s32.totalorder %s36, %s37
      %p51 = scmp.eq.s32.totalorder %s15, 3
      %p52 = por %p50, %p51
      %p54 = scmp.ne.s32.totalorder %s37, %s53
      %p55 = scmp.eq.s32.totalorder %s15, 0
      %p56 = por %p54, %p55
      %s58 = sadd.s32 %s57, 1
      %p61 = scmp.eq.s32.totalorder %s9, 3
      %p62 = scmp.ne.s32.totalorder %s57, %s59
      %p63 = scmp.eq.s32.totalorder %s9, 0
      %p64 = por %p62, %p63
      %p65 = scmp.ne.s32.totalorder %s57, %s59
      %p66 = scmp.eq.s32.totalorder %s14, 3
      %p67 = por %p65, %p66
      %p68 = scmp.ne.s32.totalorder %s59, %s60
      %p69 = scmp.eq.s32.totalorder %s14, 0
      %p70 = por %p68, %p69
      %p71 = scmp.ne.s32.totalorder %s59, %s60
      %p72 = scmp.eq.s32.totalorder %s15, 3
      %p73 = por %p71, %p72
      %p75 = scmp.ne.s32.totalorder %s60, %s74
      %p76 = scmp.eq.s32.totalorder %s15, 0
      %p77 = por %p75, %p76
      %s79 = sadd.s32 %s78, 1
      %p82 = scmp.eq.s32.totalorder %s9, 3
      %p83 = scmp.ne.s32.totalorder %s78, %s80
      %p84 = scmp.eq.s32.totalorder %s9, 0
      %p85 = por %p83, %p84
      %p86 = scmp.ne.s32.totalorder %s78, %s80
      %p87 = scmp.eq.s32.totalorder %s14, 3
      %p88 = por %p86, %p87
      %p89 = scmp.ne.s32.totalorder %s80, %s81
      %p90 = scmp.eq.s32.totalorder %s14, 0
      %p91 = por %p89, %p90
      %p92 = scmp.ne.s32.totalorder %s80, %s81
      %p93 = scmp.eq.s32.totalorder %s15, 3
      %p94 = por %p92, %p93
      %p96 = scmp.ne.s32.totalorder %s81, %s95
      %p97 = scmp.eq.s32.totalorder %s15, 0
      %p98 = por %p96, %p97
      %s99 = ssub.s32 %s16, %s28
      %s100 = ssub.s32 %s17, %s24
      %s101 = sor.u32 %s99, %s100
      %p102 = scmp.eq.s32.totalorder %s101, 0
      %s104 = sadd.s32 %s103, 1
      %s105 = scalar_select %p102, %s103, %s104
      %p108 = pneg %p102
      %p109 = scmp.eq.s32.totalorder %s9, 3
      %p110 = por %p108, %p109
      %p111 = scmp.ne.s32.totalorder %s103, %s106
      %p112 = scmp.eq.s32.totalorder %s9, 0
      %p113 = por %p111, %p112
      %p114 = scmp.ne.s32.totalorder %s103, %s106
      %p115 = scmp.eq.s32.totalorder %s14, 3
      %p116 = por %p114, %p115
      %p117 = scmp.ne.s32.totalorder %s106, %s107
      %p118 = scmp.eq.s32.totalorder %s14, 0
      %p119 = por %p117, %p118
      %p120 = scmp.ne.s32.totalorder %s106, %s107
      %p121 = scmp.eq.s32.totalorder %s15, 3
      %p122 = por %p120, %p121
      %p124 = scmp.ne.s32.totalorder %s107, %s123
      %p125 = scmp.eq.s32.totalorder %s15, 0
      %p126 = por %p124, %p125
      %p127 = scmp.le.s32.totalorder 1, %s9
      %p128 = scmp.lt.s32.totalorder %s9, 5
      %p129 = pnand %p127, %p128
      %p130 = pneg %p129
      // Predicated region
      $region9: #{_lambda_.6} parent=5 // pred_check
        _
      $region10: #{_lambda_.6} parent=5 // pred_check_branch
        %132 = sbr.rel (%p129) target = $region12
      $region11: #{_lambda_.6} parent=5 // pred_region
        %s133 = ssub.s32 %s9, 1
        // Predicated region
        $region13: #{_lambda_.6} parent=11 // pred_check
          %p134 = pneg %p70
        $region14: #{_lambda_.6} parent=11 // pred_check_branch
          %136 = sbr.rel (%p134) target = $region16
        $region15: #{_lambda_.6} parent=11 // pred_region
          _
        $region16: #{_lambda_.6} parent=11 // pred_fallthru
          _
        // Predicated region
        $region17: #{_lambda_.6} parent=11 // pred_check
          %p137 = pneg %p91
        $region18: #{_lambda_.6} parent=11 // pred_check_branch
          %139 = sbr.rel (%p137) target = $region20
        $region19: #{_lambda_.6} parent=11 // pred_region
          _
        $region20: #{_lambda_.6} parent=11 // pred_fallthru
          _
      $region12: #{_lambda_.6} parent=5 // pred_fallthru
        _
      %p140 = scmp.lt.s32.totalorder %s9, 4
      // Predicated region
      $region21: #{_lambda_.6} parent=5 // pred_check
        %p141 = pneg %p140
      $region22: #{_lambda_.6} parent=5 // pred_check_branch
        %143 = sbr.rel (%p141) target = $region24
      $region23: #{_lambda_.6} parent=5 // pred_region
        // Predicated region
        $region25: #{_lambda_.6} parent=23 // pred_check
          %p144 = pneg %p43
        $region26: #{_lambda_.6} parent=23 // pred_check_branch
          %146 = sbr.rel (%p144) target = $region28
        $region27: #{_lambda_.6} parent=23 // pred_region
          %s147 = sand.u32 %s33, 1
          %s148 = sand.u32 %s33, 1
          %s149 = smul.addr %s148, 192
          %s150 = scalar_lea.vmem [#allocation2], %s149
          %s151 = smul.u32 8, %s17
          %s152 = smul.addr %s16, 192
          %s153 = sadd.s32 %s151, %s152
          %s154 = smul.addr %s153, 4
          %s155 = scalar_lea.vmem %s0, %s154
          // Predicated region
          $region29: #{_lambda_.6} parent=27 // pred_check
            _
          $region30: #{_lambda_.6} parent=27 // pred_check_branch
            %157 = sbr.rel (0) target = $region32
          $region31: #{_lambda_.6} parent=27 // pred_region
            // Predicated region
            $region33: #{_lambda_.6} parent=31 // pred_check
              _
            $region34: #{_lambda_.6} parent=31 // pred_check_branch
              %159 = sbr.rel (0) target = $region36
            $region35: #{_lambda_.6} parent=31 // pred_region
              loop: start=0, step=1, limit=1
              $region37: #{_lambda_.6} parent=35 // loop_pre_header
                _
              $region38: #{_lambda_.6} parent=35 // loop_header
                %s161 = sphi 0, %s165
                %p162 = scmp.ge.s32.totalorder %s161, 1
                %s166 = sphi %s155, %s155
                %s167 = sphi %s150, %s150
              $region39: #{_lambda_.6} parent=35 // loop_header_branch
                %164 = sbr.rel (%p162) target = $region43
              $region40: #{_lambda_.6} parent=35 // loop_body
                %v168 = vld [vmem:[%s166] sm:$0xff]
                %169 = vst [vmem:[%s167] sm:$0xff] %v168
                %v170 = vld [vmem:[%s166 + $0x8] sm:$0xff]
                %171 = vst [vmem:[%s167 + $0x8] sm:$0xff] %v170
                %v172 = vld [vmem:[%s166 + $0x10] sm:$0xff]
                %173 = vst [vmem:[%s167 + $0x10] sm:$0xff] %v172
                %v174 = vld [vmem:[%s166 + $0x18] sm:$0xff]
                %175 = vst [vmem:[%s167 + $0x18] sm:$0xff] %v174
                %v176 = vld [vmem:[%s166 + $0x80] sm:$0xff]
                %177 = vst [vmem:[%s167 + $0x20] sm:$0xff] %v176
                %v178 = vld [vmem:[%s166 + $0x88] sm:$0xff]
                %179 = vst [vmem:[%s167 + $0x28] sm:$0xff] %v178
                %v180 = vld [vmem:[%s166 + $0x90] sm:$0xff]
                %181 = vst [vmem:[%s167 + $0x30] sm:$0xff] %v180
                %v182 = vld [vmem:[%s166 + $0x98] sm:$0xff]
                %183 = vst [vmem:[%s167 + $0x38] sm:$0xff] %v182
                %v184 = vld [vmem:[%s166 + $0x100] sm:$0xff]
                %185 = vst [vmem:[%s167 + $0x40] sm:$0xff] %v184
                %v186 = vld [vmem:[%s166 + $0x108] sm:$0xff]
                %187 = vst [vmem:[%s167 + $0x48] sm:$0xff] %v186
                %v188 = vld [vmem:[%s166 + $0x110] sm:$0xff]
                %189 = vst [vmem:[%s167 + $0x50] sm:$0xff] %v188
                %v190 = vld [vmem:[%s166 + $0x118] sm:$0xff]
                %191 = vst [vmem:[%s167 + $0x58] sm:$0xff] %v190
                %v192 = vld [vmem:[%s166 + $0x180] sm:$0xff]
                %193 = vst [vmem:[%s167 + $0x60] sm:$0xff] %v192
                %v194 = vld [vmem:[%s166 + $0x188] sm:$0xff]
                %195 = vst [vmem:[%s167 + $0x68] sm:$0xff] %v194
                %v196 = vld [vmem:[%s166 + $0x190] sm:$0xff]
                %197 = vst [vmem:[%s167 + $0x70] sm:$0xff] %v196
                %v198 = vld [vmem:[%s166 + $0x198] sm:$0xff]
                %199 = vst [vmem:[%s167 + $0x78] sm:$0xff] %v198
                %v200 = vld [vmem:[%s166 + $0x200] sm:$0xff]
                %201 = vst [vmem:[%s167 + $0x80] sm:$0xff] %v200
                %v202 = vld [vmem:[%s166 + $0x208] sm:$0xff]
                %203 = vst [vmem:[%s167 + $0x88] sm:$0xff] %v202
                %v204 = vld [vmem:[%s166 + $0x210] sm:$0xff]
                %205 = vst [vmem:[%s167 + $0x90] sm:$0xff] %v204
                %v206 = vld [vmem:[%s166 + $0x218] sm:$0xff]
                %207 = vst [vmem:[%s167 + $0x98] sm:$0xff] %v206
                %v208 = vld [vmem:[%s166 + $0x280] sm:$0xff]
                %209 = vst [vmem:[%s167 + $0xa0] sm:$0xff] %v208
                %v210 = vld [vmem:[%s166 + $0x288] sm:$0xff]
                %211 = vst [vmem:[%s167 + $0xa8] sm:$0xff] %v210
                %v212 = vld [vmem:[%s166 + $0x290] sm:$0xff]
                %213 = vst [vmem:[%s167 + $0xb0] sm:$0xff] %v212
                %v214 = vld [vmem:[%s166 + $0x298] sm:$0xff]
                %215 = vst [vmem:[%s167 + $0xb8] sm:$0xff] %v214
              $region41: #{_lambda_.6} parent=35 // loop_footer
                %s165 = sadd.s32 1, %s161
              $region42: #{_lambda_.6} parent=35 // loop_footer_branch
                %160 = sbr.rel target = $region38
              $region43: #{_lambda_.6} parent=35 // loop_exit
                _
            $region36: #{_lambda_.6} parent=31 // pred_fallthru
              _
            // Predicated region
            $region44: #{_lambda_.6} parent=31 // pred_check
              _
            $region45: #{_lambda_.6} parent=31 // pred_check_branch
              %217 = sbr.rel target = $region47
            $region46: #{_lambda_.6} parent=31 // pred_region
              _
            $region47: #{_lambda_.6} parent=31 // pred_fallthru
              _
          $region32: #{_lambda_.6} parent=27 // pred_fallthru
            _
          %218 = vnop
        $region28: #{_lambda_.6} parent=23 // pred_fallthru
          _
      $region24: #{_lambda_.6} parent=5 // pred_fallthru
        _
      %p219 = scmp.le.s32.totalorder 1, %s9
      %p220 = scmp.lt.s32.totalorder %s9, 5
      %p221 = pnand %p219, %p220
      %p222 = pneg %p221
      // Predicated region
      $region48: #{_lambda_.6} parent=5 // pred_check
        _
      $region49: #{_lambda_.6} parent=5 // pred_check_branch
        %224 = sbr.rel (%p221) target = $region51
      $region50: #{_lambda_.6} parent=5 // pred_region
        %s225 = ssub.s32 %s9, 1
        %s226 = sand.u32 %s36, 1
        %s227 = sand.u32 %s36, 1
        %s228 = smul.addr %s227, 192
        %s229 = scalar_lea.vmem [#allocation2], %s228
        // Predicated region
        $region52: #{_lambda_.6} parent=50 // pred_check
          %p230 = pneg %p49
        $region53: #{_lambda_.6} parent=50 // pred_check_branch
          %232 = sbr.rel (%p230) target = $region55
        $region54: #{_lambda_.6} parent=50 // pred_region
          _
        $region55: #{_lambda_.6} parent=50 // pred_fallthru
          _
        %s233 = sand.u32 %s36, 1
        %s234 = sand.u32 %s36, 1
        %s235 = smul.addr %s234, 192
        %s236 = scalar_lea.vmem [#allocation2], %s235
        %p237 = pneg %p49
        %p238 = pneg %p46
        %p239 = pneg %p70
        %p240 = pneg %p67
        %p241 = pneg %p91
        %p242 = pneg %p88
        %p243 = pneg %p119
        %p244 = pneg %p116
        %s245 = smul.u32 8, %s19
        %p246 = scmp.lt.s32.totalorder %s18, 0
        %s247 = scalar_select %p246, %s18, 0
        %p248 = scmp.lt.s32.totalorder %s245, 31
        %s249 = scalar_select %p248, %s245, 31
        %s250 = smul.addr %s247, 32
        %s251 = sadd.s32 %s249, %s250
        %s252 = smul.addr %s251, 2
        %s253 = scalar_lea.vmem %s3, %s252
        %s254 = smul.u32 8, %s19
        %s255 = smul.u32 8, %s19
        %p256 = scmp.lt.s32.totalorder %s18, 0
        %s257 = scalar_select %p256, %s18, 0
        %p258 = scmp.lt.s32.totalorder %s255, 31
        %s259 = scalar_select %p258, %s255, 31
        %s260 = smul.addr %s257, 32
        %s261 = sadd.s32 %s259, %s260
        %s262 = smul.addr %s261, 2
        %s263 = scalar_lea.vmem %s3, %s262
        %s264 = smul.u32 8, %s19
        %v266 = vld [vmem:[%s1] sm:$0x3]
        %v267 = vld [vmem:[%s229] sm:$0xff]
        %v268 = vld [vmem:[%s229 + $0x8] sm:$0xff]
        %v269 = vld [vmem:[%s229 + $0x10] sm:$0xff]
        %v270 = vld [vmem:[%s229 + $0x18] sm:$0xff]
        %v271 = vld [vmem:[%s229 + $0x20] sm:$0xff]
        %v272 = vld [vmem:[%s229 + $0x28] sm:$0xff]
        %v273 = vld [vmem:[%s229 + $0x30] sm:$0xff]
        %v274 = vld [vmem:[%s229 + $0x38] sm:$0xff]
        %v275 = vld [vmem:[%s229 + $0x40] sm:$0xff]
        %v276 = vld [vmem:[%s229 + $0x48] sm:$0xff]
        %v277 = vld [vmem:[%s229 + $0x50] sm:$0xff]
        %v278 = vld [vmem:[%s229 + $0x58] sm:$0xff]
        %v279 = vld [vmem:[%s229 + $0x60] sm:$0xff]
        %v280 = vld [vmem:[%s229 + $0x68] sm:$0xff]
        %v281 = vld [vmem:[%s229 + $0x70] sm:$0xff]
        %v282 = vld [vmem:[%s229 + $0x78] sm:$0xff]
        %v283 = vld [vmem:[%s229 + $0x80] sm:$0xff]
        %v284 = vld [vmem:[%s229 + $0x88] sm:$0xff]
        %v285 = vld [vmem:[%s229 + $0x90] sm:$0xff]
        %v286 = vld [vmem:[%s229 + $0x98] sm:$0xff]
        %v287 = vld [vmem:[%s229 + $0xa0] sm:$0xff]
        %v288 = vld [vmem:[%s229 + $0xa8] sm:$0xff]
        %v289 = vld [vmem:[%s229 + $0xb0] sm:$0xff]
        %v290 = vld [vmem:[%s229 + $0xb8] sm:$0xff]
        %v291 = vld [vmem:[%s2] sm:$0xf]
        %293 = vset.pattern.permute.xlu0 0
        %294 = vperm.xlu0 %293, %v291
        %v295 = vpop.permute.xlu0 %294
        %v321 = vunpack.c.l.b16 %v267
        %v322 = vunpack.c.h.b16 %v267
        %v323 = vunpack.c.l.b16 %v268
        %v324 = vunpack.c.h.b16 %v268
        %v325 = vunpack.c.l.b16 %v269
        %v326 = vunpack.c.h.b16 %v269
        %v327 = vunpack.c.l.b16 %v270
        %v328 = vunpack.c.h.b16 %v270
        %v329 = vunpack.c.l.b16 %v271
        %v330 = vunpack.c.h.b16 %v271
        %v331 = vunpack.c.l.b16 %v272
        %v332 = vunpack.c.h.b16 %v272
        %v333 = vunpack.c.l.b16 %v273
        %v334 = vunpack.c.h.b16 %v273
        %v335 = vunpack.c.l.b16 %v274
        %v336 = vunpack.c.h.b16 %v274
        %v337 = vunpack.c.l.b16 %v275
        %v338 = vunpack.c.h.b16 %v275
        %v339 = vunpack.c.l.b16 %v276
        %v340 = vunpack.c.h.b16 %v276
        %v341 = vunpack.c.l.b16 %v277
        %v342 = vunpack.c.h.b16 %v277
        %v343 = vunpack.c.l.b16 %v278
        %v344 = vunpack.c.h.b16 %v278
        %v345 = vunpack.c.l.b16 %v279
        %v346 = vunpack.c.h.b16 %v279
        %v347 = vunpack.c.l.b16 %v280
        %v348 = vunpack.c.h.b16 %v280
        %v349 = vunpack.c.l.b16 %v281
        %v350 = vunpack.c.h.b16 %v281
        %v351 = vunpack.c.l.b16 %v282
        %v352 = vunpack.c.h.b16 %v282
        %v353 = vunpack.c.l.b16 %v283
        %v354 = vunpack.c.h.b16 %v283
        %v355 = vunpack.c.l.b16 %v284
        %v356 = vunpack.c.h.b16 %v284
        %v357 = vunpack.c.l.b16 %v285
        %v358 = vunpack.c.h.b16 %v285
        %v359 = vunpack.c.l.b16 %v286
        %v360 = vunpack.c.h.b16 %v286
        %v361 = vunpack.c.l.b16 %v287
        %v362 = vunpack.c.h.b16 %v287
        %v363 = vunpack.c.l.b16 %v288
        %v364 = vunpack.c.h.b16 %v288
        %v365 = vunpack.c.l.b16 %v289
        %v366 = vunpack.c.h.b16 %v289
        %v367 = vunpack.c.l.b16 %v290
        %v368 = vunpack.c.h.b16 %v290
        %v369 = vpack.c.b16 %v329, %v321
        %v370 = vpack.c.b16 %v330, %v322
        %v371 = vpack.c.b16 %v331, %v323
        %v372 = vpack.c.b16 %v332, %v324
        %v373 = vpack.c.b16 %v333, %v325
        %v374 = vpack.c.b16 %v334, %v326
        %v375 = vpack.c.b16 %v335, %v327
        %v376 = vpack.c.b16 %v336, %v328
        %v377 = vpack.c.b16 %v345, %v337
        %v378 = vpack.c.b16 %v346, %v338
        %v379 = vpack.c.b16 %v347, %v339
        %v380 = vpack.c.b16 %v348, %v340
        %v381 = vpack.c.b16 %v349, %v341
        %v382 = vpack.c.b16 %v350, %v342
        %v383 = vpack.c.b16 %v351, %v343
        %v384 = vpack.c.b16 %v352, %v344
        %v385 = vpack.c.b16 %v361, %v353
        %v386 = vpack.c.b16 %v362, %v354
        %v387 = vpack.c.b16 %v363, %v355
        %v388 = vpack.c.b16 %v364, %v356
        %v389 = vpack.c.b16 %v365, %v357
        %v390 = vpack.c.b16 %v366, %v358
        %v391 = vpack.c.b16 %v367, %v359
        %v392 = vpack.c.b16 %v368, %v360
        %vm417 = vcmask 392192
        %v419 = vsel %vm417, %v266, 0
        %421 = vmatpush.bf16.msra.mxu0 0
        %422 = vmatpush.bf16.msra.mxu0 0
        %423 = vmatpush.bf16.msra.mxu0 0
        %424 = vmatpush.bf16.msra.mxu0 0
        %425 = vmatpush.bf16.msra.mxu0 0
        %426 = vmatpush.bf16.msra.mxu0 %v385
        %427 = vmatpush.bf16.msra.mxu0 %v377
        %428 = vmatpush.bf16.msra.mxu0 %v369
        %429 = vmatmul.bf16.gmra.mxu0 %v419
        %v430 = vpop.f32.mrf.mxu0
        %v431 = vadd.f32 %v295, %v430
        %v432 = vpop.f32.mrf.mxu0
        %433 = vdwg.mxu0
        %434 = vmatpush.bf16.msra.mxu0 0
        %435 = vmatpush.bf16.msra.mxu0 0
        %436 = vmatpush.bf16.msra.mxu0 0
        %437 = vmatpush.bf16.msra.mxu0 0
        %438 = vmatpush.bf16.msra.mxu0 0
        %439 = vmatpush.bf16.msra.mxu0 %v386
        %440 = vmatpush.bf16.msra.mxu0 %v378
        %441 = vmatpush.bf16.msra.mxu0 %v370
        %442 = vmatmul.bf16.gmra.mxu0 %v419
        %v443 = vpop.f32.mrf.mxu0
        %v444 = vadd.f32 %v295, %v443
        %v445 = vpop.f32.mrf.mxu0
        %446 = vdwg.mxu0
        %447 = vmatpush.bf16.msra.mxu0 0
        %448 = vmatpush.bf16.msra.mxu0 0
        %449 = vmatpush.bf16.msra.mxu0 0
        %450 = vmatpush.bf16.msra.mxu0 0
        %451 = vmatpush.bf16.msra.mxu0 0
        %452 = vmatpush.bf16.msra.mxu0 %v387
        %453 = vmatpush.bf16.msra.mxu0 %v379
        %454 = vmatpush.bf16.msra.mxu0 %v371
        %455 = vmatmul.bf16.gmra.mxu0 %v419
        %v456 = vpop.f32.mrf.mxu0
        %v457 = vadd.f32 %v295, %v456
        %v458 = vpop.f32.mrf.mxu0
        %459 = vdwg.mxu0
        %460 = vmatpush.bf16.msra.mxu0 0
        %461 = vmatpush.bf16.msra.mxu0 0
        %462 = vmatpush.bf16.msra.mxu0 0
        %463 = vmatpush.bf16.msra.mxu0 0
        %464 = vmatpush.bf16.msra.mxu0 0
        %465 = vmatpush.bf16.msra.mxu0 %v388
        %466 = vmatpush.bf16.msra.mxu0 %v380
        %467 = vmatpush.bf16.msra.mxu0 %v372
        %468 = vmatmul.bf16.gmra.mxu0 %v419
        %v469 = vpop.f32.mrf.mxu0
        %v470 = vadd.f32 %v295, %v469
        %v471 = vpop.f32.mrf.mxu0
        %472 = vdwg.mxu0
        %473 = vmatpush.bf16.msra.mxu0 0
        %474 = vmatpush.bf16.msra.mxu0 0
        %475 = vmatpush.bf16.msra.mxu0 0
        %476 = vmatpush.bf16.msra.mxu0 0
        %477 = vmatpush.bf16.msra.mxu0 0
        %478 = vmatpush.bf16.msra.mxu0 %v389
        %479 = vmatpush.bf16.msra.mxu0 %v381
        %480 = vmatpush.bf16.msra.mxu0 %v373
        %481 = vmatmul.bf16.gmra.mxu0 %v419
        %v482 = vpop.f32.mrf.mxu0
        %v483 = vadd.f32 %v295, %v482
        %v484 = vpop.f32.mrf.mxu0
        %485 = vdwg.mxu0
        %486 = vmatpush.bf16.msra.mxu0 0
        %487 = vmatpush.bf16.msra.mxu0 0
        %488 = vmatpush.bf16.msra.mxu0 0
        %489 = vmatpush.bf16.msra.mxu0 0
        %490 = vmatpush.bf16.msra.mxu0 0
        %491 = vmatpush.bf16.msra.mxu0 %v390
        %492 = vmatpush.bf16.msra.mxu0 %v382
        %493 = vmatpush.bf16.msra.mxu0 %v374
        %494 = vmatmul.bf16.gmra.mxu0 %v419
        %v495 = vpop.f32.mrf.mxu0
        %v496 = vadd.f32 %v295, %v495
        %v497 = vpop.f32.mrf.mxu0
        %498 = vdwg.mxu0
        %499 = vmatpush.bf16.msra.mxu0 0
        %500 = vmatpush.bf16.msra.mxu0 0
        %501 = vmatpush.bf16.msra.mxu0 0
        %502 = vmatpush.bf16.msra.mxu0 0
        %503 = vmatpush.bf16.msra.mxu0 0
        %504 = vmatpush.bf16.msra.mxu0 %v391
        %505 = vmatpush.bf16.msra.mxu0 %v383
        %506 = vmatpush.bf16.msra.mxu0 %v375
        %507 = vmatmul.bf16.gmra.mxu0 %v419
        %v508 = vpop.f32.mrf.mxu0
        %v509 = vadd.f32 %v295, %v508
        %v510 = vpop.f32.mrf.mxu0
        %511 = vdwg.mxu0
        %512 = vmatpush.bf16.msra.mxu0 0
        %513 = vmatpush.bf16.msra.mxu0 0
        %514 = vmatpush.bf16.msra.mxu0 0
        %515 = vmatpush.bf16.msra.mxu0 0
        %516 = vmatpush.bf16.msra.mxu0 0
        %517 = vmatpush.bf16.msra.mxu0 %v392
        %518 = vmatpush.bf16.msra.mxu0 %v384
        %519 = vmatpush.bf16.msra.mxu0 %v376
        %520 = vmatmul.bf16.gmra.mxu0 %v419
        %v521 = vpop.f32.mrf.mxu0
        %v522 = vadd.f32 %v295, %v521
        %v523 = vpop.f32.mrf.mxu0
        %524 = vdwg.mxu0
        %v525 = vpack.c.bf16 %v444, %v431
        %v526 = vpack.c.bf16 %v470, %v457
        %v527 = vpack.c.bf16 %v496, %v483
        %v528 = vpack.c.bf16 %v522, %v509
        %v533 = vrot.slane %v525, 2
        %v534 = vrot.slane %v526, 4
        %v535 = vrot.slane %v526, 6
        %v536 = vrot.slane %v527, 2
        %v537 = vrot.slane %v528, 4
        %v538 = vrot.slane %v528, 6
        %vm539 = vcmask 1041408
        %v542 = vsel %vm539, %v525, %v533
        %vm543 = vcmask 1045508
        %v546 = vsel %vm543, %v534, %v535
        %vm547 = vcmask 1043456
        %v548 = vsel %vm547, %v542, %v546
        %v551 = vsel %vm539, %v527, %v536
        %v554 = vsel %vm543, %v537, %v538
        %v555 = vsel %vm547, %v551, %v554
        %558 = vst [vmem:[%s263] sm:$0xff] %v548
        %559 = vst [vmem:[%s263 + $0x8] sm:$0xff] %v555
        %s560 = smul.u32 8, %s19
        %p561 = scmp.lt.s32.totalorder %s18, 0
        %s562 = scalar_select %p561, %s18, 0
        %p563 = scmp.lt.s32.totalorder %s560, 31
        %s564 = scalar_select %p563, %s560, 31
        %s565 = smul.addr %s562, 32
        %s566 = sadd.s32 %s564, %s565
        %s567 = smul.addr %s566, 2
        %s568 = scalar_lea.vmem %s3, %s567
        // Predicated region
        $region56: #{_lambda_.6} parent=50 // pred_check
          %p569 = pneg %p116
        $region57: #{_lambda_.6} parent=50 // pred_check_branch
          %571 = sbr.rel (%p569) target = $region59
        $region58: #{_lambda_.6} parent=50 // pred_region
          %s572 = smul.u32 8, %s19
        $region59: #{_lambda_.6} parent=50 // pred_fallthru
          _
      $region51: #{_lambda_.6} parent=5 // pred_fallthru
        _
      %p573 = scmp.le.s32.totalorder 2, %s9
      // Predicated region
      $region60: #{_lambda_.6} parent=5 // pred_check
        %p574 = pneg %p573
      $region61: #{_lambda_.6} parent=5 // pred_check_branch
        %576 = sbr.rel (%p574) target = $region63
      $region62: #{_lambda_.6} parent=5 // pred_region
        %s577 = ssub.s32 %s9, 2
        // Predicated region
        $region64: #{_lambda_.6} parent=62 // pred_check
          %p578 = pneg %p122
        $region65: #{_lambda_.6} parent=62 // pred_check_branch
          %580 = sbr.rel (%p578) target = $region67
        $region66: #{_lambda_.6} parent=62 // pred_region
          %s581 = smul.u32 8, %s21
          %p582 = scmp.lt.s32.totalorder %s20, 0
          %s583 = scalar_select %p582, %s20, 0
          %p584 = scmp.lt.s32.totalorder %s581, 31
          %s585 = scalar_select %p584, %s581, 31
          %s586 = smul.addr %s583, 32
          %s587 = sadd.s32 %s585, %s586
          %s588 = smul.addr %s587, 2
          %s589 = scalar_lea.vmem %s3, %s588
        $region67: #{_lambda_.6} parent=62 // pred_fallthru
          _
      $region63: #{_lambda_.6} parent=5 // pred_fallthru
        _
    $region6: #{_lambda_.6} parent=1 // loop_footer
      %s13 = sadd.s32 1, %s9
    $region7: #{_lambda_.6} parent=1 // loop_footer_branch
      %8 = sbr.rel target = $region3
    $region8: #{_lambda_.6} parent=1 // loop_exit
      _

// kernel: _lambda_.7
$region0: #{_lambda_.7}
  #allocation0 [shape = 'u32[]', space=smem, size = 0x4, offset = 0x4, fixed_abs, tag = 'smem constant byte address 0x4 - core index']
  #allocation1 [shape = 'u32[72,128]{1,0:T(1,128)}', space=vmem, size = 0x9000, scoped, tag = 'internal scratch']
  %s0 = inlined_call_operand.vmem [shape: bf16[1,64,1024], index: 0, kind: input, shape index: {}]
  %s1 = inlined_call_operand.vmem [shape: bf16[8,64], index: 1, kind: input, shape index: {}]
  %s2 = inlined_call_operand.vmem [shape: f32[8,1], index: 2, kind: input, shape index: {}]
  %s3 = inlined_call_operand.vmem [shape: bf16[1,8,1024], index: 3, kind: output, shape index: {}]
  %s4 = sld [smem:[#allocation0]]
  $region22: #{_lambda_.7} parent=0
    _
  %s6 = ssub.s32 1, %s4
  %s7 = scalar_select 0, %s6, %s4
  // Predicated region
  $region2: #{_lambda_.7} parent=0 // pred_check
    _
  $region3: #{_lambda_.7} parent=0 // pred_check_branch
    %9 = sbr.rel (0) target = $region5
  $region4: #{_lambda_.7} parent=0 // pred_region
    _
  $region5: #{_lambda_.7} parent=0 // pred_fallthru
    _
  // Predicated region
  $region6: #{_lambda_.7} parent=0 // pred_check
    _
  $region7: #{_lambda_.7} parent=0 // pred_check_branch
    %11 = sbr.rel (0) target = $region9
  $region8: #{_lambda_.7} parent=0 // pred_region
    _
  $region9: #{_lambda_.7} parent=0 // pred_fallthru
    _
  // Predicated region
  $region10: #{_lambda_.7} parent=0 // pred_check
    _
  $region11: #{_lambda_.7} parent=0 // pred_check_branch
    %13 = sbr.rel (0) target = $region13
  $region12: #{_lambda_.7} parent=0 // pred_region
    _
  $region13: #{_lambda_.7} parent=0 // pred_fallthru
    _
  %v15 = vld [vmem:[%s1] sm:$0xf]
  %v16 = vld [vmem:[%s0] sm:$0xff]
  %v17 = vld [vmem:[%s0 + $0x8] sm:$0xff]
  %v18 = vld [vmem:[%s0 + $0x10] sm:$0xff]
  %v19 = vld [vmem:[%s0 + $0x18] sm:$0xff]
  %v20 = vld [vmem:[%s0 + $0x20] sm:$0xff]
  %v21 = vld [vmem:[%s0 + $0x28] sm:$0xff]
  %v22 = vld [vmem:[%s0 + $0x30] sm:$0xff]
  %v23 = vld [vmem:[%s0 + $0x38] sm:$0xff]
  %v24 = vld [vmem:[%s0 + $0x40] sm:$0xff]
  %v25 = vld [vmem:[%s0 + $0x48] sm:$0xff]
  %v26 = vld [vmem:[%s0 + $0x50] sm:$0xff]
  %v27 = vld [vmem:[%s0 + $0x58] sm:$0xff]
  %v28 = vld [vmem:[%s0 + $0x60] sm:$0xff]
  %v29 = vld [vmem:[%s0 + $0x68] sm:$0xff]
  %v30 = vld [vmem:[%s0 + $0x70] sm:$0xff]
  %v31 = vld [vmem:[%s0 + $0x78] sm:$0xff]
  %v32 = vld [vmem:[%s0 + $0x80] sm:$0xff]
  %v33 = vld [vmem:[%s0 + $0x88] sm:$0xff]
  %v34 = vld [vmem:[%s0 + $0x90] sm:$0xff]
  %v35 = vld [vmem:[%s0 + $0x98] sm:$0xff]
  %v36 = vld [vmem:[%s0 + $0xa0] sm:$0xff]
  %v37 = vld [vmem:[%s0 + $0xa8] sm:$0xff]
  %v38 = vld [vmem:[%s0 + $0xb0] sm:$0xff]
  %v39 = vld [vmem:[%s0 + $0xb8] sm:$0xff]
  %v40 = vld [vmem:[%s0 + $0xc0] sm:$0xff]
  %v41 = vld [vmem:[%s0 + $0xc8] sm:$0xff]
  %v42 = vld [vmem:[%s0 + $0xd0] sm:$0xff]
  %v43 = vld [vmem:[%s0 + $0xd8] sm:$0xff]
  %v44 = vld [vmem:[%s0 + $0xe0] sm:$0xff]
  %v45 = vld [vmem:[%s0 + $0xe8] sm:$0xff]
  %v46 = vld [vmem:[%s0 + $0xf0] sm:$0xff]
  %v47 = vld [vmem:[%s0 + $0xf8] sm:$0xff]
  %v48 = vld [vmem:[%s2] sm:$0xff]
  %50 = vset.pattern.permute.xlu0 0
  %51 = vperm.xlu0 %50, %v48
  %v52 = vpop.permute.xlu0 %51
  %v86 = vunpack.c.l.b16 %v16
  %v87 = vunpack.c.h.b16 %v16
  %v88 = vunpack.c.l.b16 %v17
  %v89 = vunpack.c.h.b16 %v17
  %v90 = vunpack.c.l.b16 %v18
  %v91 = vunpack.c.h.b16 %v18
  %v92 = vunpack.c.l.b16 %v19
  %v93 = vunpack.c.h.b16 %v19
  %v94 = vunpack.c.l.b16 %v20
  %v95 = vunpack.c.h.b16 %v20
  %v96 = vunpack.c.l.b16 %v21
  %v97 = vunpack.c.h.b16 %v21
  %v98 = vunpack.c.l.b16 %v22
  %v99 = vunpack.c.h.b16 %v22
  %v100 = vunpack.c.l.b16 %v23
  %v101 = vunpack.c.h.b16 %v23
  %v102 = vunpack.c.l.b16 %v24
  %v103 = vunpack.c.h.b16 %v24
  %v104 = vunpack.c.l.b16 %v25
  %v105 = vunpack.c.h.b16 %v25
  %v106 = vunpack.c.l.b16 %v26
  %v107 = vunpack.c.h.b16 %v26
  %v108 = vunpack.c.l.b16 %v27
  %v109 = vunpack.c.h.b16 %v27
  %v110 = vunpack.c.l.b16 %v28
  %v111 = vunpack.c.h.b16 %v28
  %v112 = vunpack.c.l.b16 %v29
  %v113 = vunpack.c.h.b16 %v29
  %v114 = vunpack.c.l.b16 %v30
  %v115 = vunpack.c.h.b16 %v30
  %v116 = vunpack.c.l.b16 %v31
  %v117 = vunpack.c.h.b16 %v31
  %v118 = vunpack.c.l.b16 %v32
  %v119 = vunpack.c.h.b16 %v32
  %v120 = vunpack.c.l.b16 %v33
  %v121 = vunpack.c.h.b16 %v33
  %v122 = vunpack.c.l.b16 %v34
  %v123 = vunpack.c.h.b16 %v34
  %v124 = vunpack.c.l.b16 %v35
  %v125 = vunpack.c.h.b16 %v35
  %v126 = vunpack.c.l.b16 %v36
  %v127 = vunpack.c.h.b16 %v36
  %v128 = vunpack.c.l.b16 %v37
  %v129 = vunpack.c.h.b16 %v37
  %v130 = vunpack.c.l.b16 %v38
  %v131 = vunpack.c.h.b16 %v38
  %v132 = vunpack.c.l.b16 %v39
  %v133 = vunpack.c.h.b16 %v39
  %v134 = vunpack.c.l.b16 %v40
  %v135 = vunpack.c.h.b16 %v40
  %v136 = vunpack.c.l.b16 %v41
  %v137 = vunpack.c.h.b16 %v41
  %v138 = vunpack.c.l.b16 %v42
  %v139 = vunpack.c.h.b16 %v42
  %v140 = vunpack.c.l.b16 %v43
  %v141 = vunpack.c.h.b16 %v43
  %v142 = vunpack.c.l.b16 %v44
  %v143 = vunpack.c.h.b16 %v44
  %v144 = vunpack.c.l.b16 %v45
  %v145 = vunpack.c.h.b16 %v45
  %v146 = vunpack.c.l.b16 %v46
  %v147 = vunpack.c.h.b16 %v46
  %v148 = vunpack.c.l.b16 %v47
  %v149 = vunpack.c.h.b16 %v47
  %v150 = vpack.c.b16 %v94, %v86
  %v151 = vpack.c.b16 %v95, %v87
  %v152 = vpack.c.b16 %v96, %v88
  %v153 = vpack.c.b16 %v97, %v89
  %v154 = vpack.c.b16 %v98, %v90
  %v155 = vpack.c.b16 %v99, %v91
  %v156 = vpack.c.b16 %v100, %v92
  %v157 = vpack.c.b16 %v101, %v93
  %v158 = vpack.c.b16 %v110, %v102
  %v159 = vpack.c.b16 %v111, %v103
  %v160 = vpack.c.b16 %v112, %v104
  %v161 = vpack.c.b16 %v113, %v105
  %v162 = vpack.c.b16 %v114, %v106
  %v163 = vpack.c.b16 %v115, %v107
  %v164 = vpack.c.b16 %v116, %v108
  %v165 = vpack.c.b16 %v117, %v109
  %v166 = vpack.c.b16 %v126, %v118
  %v167 = vpack.c.b16 %v127, %v119
  %v168 = vpack.c.b16 %v128, %v120
  %v169 = vpack.c.b16 %v129, %v121
  %v170 = vpack.c.b16 %v130, %v122
  %v171 = vpack.c.b16 %v131, %v123
  %v172 = vpack.c.b16 %v132, %v124
  %v173 = vpack.c.b16 %v133, %v125
  %v174 = vpack.c.b16 %v142, %v134
  %v175 = vpack.c.b16 %v143, %v135
  %v176 = vpack.c.b16 %v144, %v136
  %v177 = vpack.c.b16 %v145, %v137
  %v178 = vpack.c.b16 %v146, %v138
  %v179 = vpack.c.b16 %v147, %v139
  %v180 = vpack.c.b16 %v148, %v140
  %v181 = vpack.c.b16 %v149, %v141
  %vm214 = vcmask 523264
  %v216 = vsel %vm214, %v15, 0
  %218 = vmatpush.bf16.msra.mxu0 0
  %219 = vmatpush.bf16.msra.mxu0 0
  %220 = vmatpush.bf16.msra.mxu0 0
  %221 = vmatpush.bf16.msra.mxu0 0
  %222 = vmatpush.bf16.msra.mxu0 %v174
  %223 = vmatpush.bf16.msra.mxu0 %v166
  %224 = vmatpush.bf16.msra.mxu0 %v158
  %225 = vmatpush.bf16.msra.mxu0 %v150
  %226 = vmatmul.bf16.gmra.mxu0 %v216
  %v227 = vpop.f32.mrf.mxu0
  %v228 = vadd.f32 %v52, %v227
  %v229 = vpop.f32.mrf.mxu0
  %230 = vdwg.mxu0
  %231 = vmatpush.bf16.msra.mxu0 0
  %232 = vmatpush.bf16.msra.mxu0 0
  %233 = vmatpush.bf16.msra.mxu0 0
  %234 = vmatpush.bf16.msra.mxu0 0
  %235 = vmatpush.bf16.msra.mxu0 %v175
  %236 = vmatpush.bf16.msra.mxu0 %v167
  %237 = vmatpush.bf16.msra.mxu0 %v159
  %238 = vmatpush.bf16.msra.mxu0 %v151
  %239 = vmatmul.bf16.gmra.mxu0 %v216
  %v240 = vpop.f32.mrf.mxu0
  %v241 = vadd.f32 %v52, %v240
  %v242 = vpop.f32.mrf.mxu0
  %243 = vdwg.mxu0
  %244 = vmatpush.bf16.msra.mxu0 0
  %245 = vmatpush.bf16.msra.mxu0 0
  %246 = vmatpush.bf16.msra.mxu0 0
  %247 = vmatpush.bf16.msra.mxu0 0
  %248 = vmatpush.bf16.msra.mxu0 %v176
  %249 = vmatpush.bf16.msra.mxu0 %v168
  %250 = vmatpush.bf16.msra.mxu0 %v160
  %251 = vmatpush.bf16.msra.mxu0 %v152
  %252 = vmatmul.bf16.gmra.mxu0 %v216
  %v253 = vpop.f32.mrf.mxu0
  %v254 = vadd.f32 %v52, %v253
  %v255 = vpop.f32.mrf.mxu0
  %256 = vdwg.mxu0
  %257 = vmatpush.bf16.msra.mxu0 0
  %258 = vmatpush.bf16.msra.mxu0 0
  %259 = vmatpush.bf16.msra.mxu0 0
  %260 = vmatpush.bf16.msra.mxu0 0
  %261 = vmatpush.bf16.msra.mxu0 %v177
  %262 = vmatpush.bf16.msra.mxu0 %v169
  %263 = vmatpush.bf16.msra.mxu0 %v161
  %264 = vmatpush.bf16.msra.mxu0 %v153
  %265 = vmatmul.bf16.gmra.mxu0 %v216
  %v266 = vpop.f32.mrf.mxu0
  %v267 = vadd.f32 %v52, %v266
  %v268 = vpop.f32.mrf.mxu0
  %269 = vdwg.mxu0
  %270 = vmatpush.bf16.msra.mxu0 0
  %271 = vmatpush.bf16.msra.mxu0 0
  %272 = vmatpush.bf16.msra.mxu0 0
  %273 = vmatpush.bf16.msra.mxu0 0
  %274 = vmatpush.bf16.msra.mxu0 %v178
  %275 = vmatpush.bf16.msra.mxu0 %v170
  %276 = vmatpush.bf16.msra.mxu0 %v162
  %277 = vmatpush.bf16.msra.mxu0 %v154
  %278 = vmatmul.bf16.gmra.mxu0 %v216
  %v279 = vpop.f32.mrf.mxu0
  %v280 = vadd.f32 %v52, %v279
  %v281 = vpop.f32.mrf.mxu0
  %282 = vdwg.mxu0
  %283 = vmatpush.bf16.msra.mxu0 0
  %284 = vmatpush.bf16.msra.mxu0 0
  %285 = vmatpush.bf16.msra.mxu0 0
  %286 = vmatpush.bf16.msra.mxu0 0
  %287 = vmatpush.bf16.msra.mxu0 %v179
  %288 = vmatpush.bf16.msra.mxu0 %v171
  %289 = vmatpush.bf16.msra.mxu0 %v163
  %290 = vmatpush.bf16.msra.mxu0 %v155
  %291 = vmatmul.bf16.gmra.mxu0 %v216
  %v292 = vpop.f32.mrf.mxu0
  %v293 = vadd.f32 %v52, %v292
  %v294 = vpop.f32.mrf.mxu0
  %295 = vdwg.mxu0
  %296 = vmatpush.bf16.msra.mxu0 0
  %297 = vmatpush.bf16.msra.mxu0 0
  %298 = vmatpush.bf16.msra.mxu0 0
  %299 = vmatpush.bf16.msra.mxu0 0
  %300 = vmatpush.bf16.msra.mxu0 %v180
  %301 = vmatpush.bf16.msra.mxu0 %v172
  %302 = vmatpush.bf16.msra.mxu0 %v164
  %303 = vmatpush.bf16.msra.mxu0 %v156
  %304 = vmatmul.bf16.gmra.mxu0 %v216
  %v305 = vpop.f32.mrf.mxu0
  %v306 = vadd.f32 %v52, %v305
  %v307 = vpop.f32.mrf.mxu0
  %308 = vdwg.mxu0
  %309 = vmatpush.bf16.msra.mxu0 0
  %310 = vmatpush.bf16.msra.mxu0 0
  %311 = vmatpush.bf16.msra.mxu0 0
  %312 = vmatpush.bf16.msra.mxu0 0
  %313 = vmatpush.bf16.msra.mxu0 %v181
  %314 = vmatpush.bf16.msra.mxu0 %v173
  %315 = vmatpush.bf16.msra.mxu0 %v165
  %316 = vmatpush.bf16.msra.mxu0 %v157
  %317 = vmatmul.bf16.gmra.mxu0 %v216
  %v318 = vpop.f32.mrf.mxu0
  %v319 = vadd.f32 %v52, %v318
  %v320 = vpop.f32.mrf.mxu0
  %321 = vdwg.mxu0
  %v322 = vpack.c.bf16 %v241, %v228
  %v323 = vpack.c.bf16 %v267, %v254
  %v324 = vpack.c.bf16 %v293, %v280
  %v325 = vpack.c.bf16 %v319, %v306
  %326 = vst [vmem:[%s3] sm:$0xff] %v322
  %327 = vst [vmem:[%s3 + $0x8] sm:$0xff] %v323
  %328 = vst [vmem:[%s3 + $0x10] sm:$0xff] %v324
  %329 = vst [vmem:[%s3 + $0x18] sm:$0xff] %v325
  // Predicated region
  $region14: #{_lambda_.7} parent=0 // pred_check
    _
  $region15: #{_lambda_.7} parent=0 // pred_check_branch
    %331 = sbr.rel (0) target = $region17
  $region16: #{_lambda_.7} parent=0 // pred_region
    _
  $region17: #{_lambda_.7} parent=0 // pred_fallthru
    _
  // Predicated region
  $region18: #{_lambda_.7} parent=0 // pred_check
    _
  $region19: #{_lambda_.7} parent=0 // pred_check_branch
    %333 = sbr.rel (0) target = $region21
  $region20: #{_lambda_.7} parent=0 // pred_region
    _
  $region21: #{_lambda_.7} parent=0 // pred_fallthru
    _

// kernel: _lambda_.8
$region0: #{_lambda_.8}
  #allocation0 [shape = 'u32[]', space=smem, size = 0x4, offset = 0x4, fixed_abs, tag = 'smem constant byte address 0x4 - core index']
  #allocation1 [shape = 'u32[72,128]{1,0:T(1,128)}', space=vmem, size = 0x9000, scoped, tag = 'internal scratch']
  %s0 = inlined_call_operand.vmem [shape: bf16[1,128,256], index: 0, kind: input, shape index: {}]
  %s1 = inlined_call_operand.vmem [shape: bf16[16,128], index: 1, kind: input, shape index: {}]
  %s2 = inlined_call_operand.vmem [shape: f32[16,1], index: 2, kind: input, shape index: {}]
  %s3 = inlined_call_operand.vmem [shape: bf16[1,16,256], index: 3, kind: output, shape index: {}]
  %s4 = sld [smem:[#allocation0]]
  $region22: #{_lambda_.8} parent=0
    _
  %s6 = ssub.s32 1, %s4
  %s7 = scalar_select 0, %s6, %s4
  // Predicated region
  $region2: #{_lambda_.8} parent=0 // pred_check
    _
  $region3: #{_lambda_.8} parent=0 // pred_check_branch
    %9 = sbr.rel (0) target = $region5
  $region4: #{_lambda_.8} parent=0 // pred_region
    _
  $region5: #{_lambda_.8} parent=0 // pred_fallthru
    _
  // Predicated region
  $region6: #{_lambda_.8} parent=0 // pred_check
    _
  $region7: #{_lambda_.8} parent=0 // pred_check_branch
    %11 = sbr.rel (0) target = $region9
  $region8: #{_lambda_.8} parent=0 // pred_region
    _
  $region9: #{_lambda_.8} parent=0 // pred_fallthru
    _
  // Predicated region
  $region10: #{_lambda_.8} parent=0 // pred_check
    _
  $region11: #{_lambda_.8} parent=0 // pred_check_branch
    %13 = sbr.rel (0) target = $region13
  $region12: #{_lambda_.8} parent=0 // pred_region
    _
  $region13: #{_lambda_.8} parent=0 // pred_fallthru
    _
  %v14 = vld [vmem:[%s1] sm:$0xf]
  %v15 = vld [vmem:[%s1 + $0x4] sm:$0xf]
  %v16 = vld [vmem:[%s0] sm:$0xff]
  %v17 = vld [vmem:[%s0 + $0x8] sm:$0xff]
  %v18 = vld [vmem:[%s0 + $0x10] sm:$0xff]
  %v19 = vld [vmem:[%s0 + $0x18] sm:$0xff]
  %v20 = vld [vmem:[%s0 + $0x20] sm:$0xff]
  %v21 = vld [vmem:[%s0 + $0x28] sm:$0xff]
  %v22 = vld [vmem:[%s0 + $0x30] sm:$0xff]
  %v23 = vld [vmem:[%s0 + $0x38] sm:$0xff]
  %v24 = vld [vmem:[%s0 + $0x40] sm:$0xff]
  %v25 = vld [vmem:[%s0 + $0x48] sm:$0xff]
  %v26 = vld [vmem:[%s0 + $0x50] sm:$0xff]
  %v27 = vld [vmem:[%s0 + $0x58] sm:$0xff]
  %v28 = vld [vmem:[%s0 + $0x60] sm:$0xff]
  %v29 = vld [vmem:[%s0 + $0x68] sm:$0xff]
  %v30 = vld [vmem:[%s0 + $0x70] sm:$0xff]
  %v31 = vld [vmem:[%s0 + $0x78] sm:$0xff]
  %v32 = vld [vmem:[%s2] sm:$0xff]
  %v33 = vld [vmem:[%s2 + $0x8] sm:$0xff]
  %35 = vset.pattern.permute.xlu0 0
  %36 = vperm.xlu0 %35, %v32
  %v37 = vpop.permute.xlu0 %36
  %40 = vset.pattern.permute.xlu0 0
  %41 = vperm.xlu0 %40, %v33
  %v42 = vpop.permute.xlu0 %41
  %v46 = vunpack.c.l.b16 %v14
  %v47 = vunpack.c.l.b16 %v15
  %v48 = vpack.c.b16 %v47, %v46
  %v66 = vunpack.c.l.b16 %v16
  %v67 = vunpack.c.h.b16 %v16
  %v68 = vunpack.c.l.b16 %v17
  %v69 = vunpack.c.h.b16 %v17
  %v70 = vunpack.c.l.b16 %v18
  %v71 = vunpack.c.h.b16 %v18
  %v72 = vunpack.c.l.b16 %v19
  %v73 = vunpack.c.h.b16 %v19
  %v74 = vunpack.c.l.b16 %v20
  %v75 = vunpack.c.h.b16 %v20
  %v76 = vunpack.c.l.b16 %v21
  %v77 = vunpack.c.h.b16 %v21
  %v78 = vunpack.c.l.b16 %v22
  %v79 = vunpack.c.h.b16 %v22
  %v80 = vunpack.c.l.b16 %v23
  %v81 = vunpack.c.h.b16 %v23
  %v82 = vunpack.c.l.b16 %v24
  %v83 = vunpack.c.h.b16 %v24
  %v84 = vunpack.c.l.b16 %v25
  %v85 = vunpack.c.h.b16 %v25
  %v86 = vunpack.c.l.b16 %v26
  %v87 = vunpack.c.h.b16 %v26
  %v88 = vunpack.c.l.b16 %v27
  %v89 = vunpack.c.h.b16 %v27
  %v90 = vunpack.c.l.b16 %v28
  %v91 = vunpack.c.h.b16 %v28
  %v92 = vunpack.c.l.b16 %v29
  %v93 = vunpack.c.h.b16 %v29
  %v94 = vunpack.c.l.b16 %v30
  %v95 = vunpack.c.h.b16 %v30
  %v96 = vunpack.c.l.b16 %v31
  %v97 = vunpack.c.h.b16 %v31
  %v98 = vpack.c.b16 %v68, %v66
  %v99 = vpack.c.b16 %v69, %v67
  %v100 = vpack.c.b16 %v72, %v70
  %v101 = vpack.c.b16 %v73, %v71
  %v102 = vpack.c.b16 %v76, %v74
  %v103 = vpack.c.b16 %v77, %v75
  %v104 = vpack.c.b16 %v80, %v78
  %v105 = vpack.c.b16 %v81, %v79
  %v106 = vpack.c.b16 %v84, %v82
  %v107 = vpack.c.b16 %v85, %v83
  %v108 = vpack.c.b16 %v88, %v86
  %v109 = vpack.c.b16 %v89, %v87
  %v110 = vpack.c.b16 %v92, %v90
  %v111 = vpack.c.b16 %v93, %v91
  %v112 = vpack.c.b16 %v96, %v94
  %v113 = vpack.c.b16 %v97, %v95
  %130 = vmatpush.bf16.msra.mxu0 %v112
  %131 = vmatpush.bf16.msra.mxu0 %v110
  %132 = vmatpush.bf16.msra.mxu0 %v108
  %133 = vmatpush.bf16.msra.mxu0 %v106
  %134 = vmatpush.bf16.msra.mxu0 %v104
  %135 = vmatpush.bf16.msra.mxu0 %v102
  %136 = vmatpush.bf16.msra.mxu0 %v100
  %137 = vmatpush.bf16.msra.mxu0 %v98
  %138 = vmatmul.bf16.gmra.mxu0 %v48
  %v139 = vpop.f32.mrf.mxu0
  %v140 = vadd.f32 %v37, %v139
  %v141 = vpop.f32.mrf.mxu0
  %v142 = vadd.f32 %v42, %v141
  %143 = vdwg.mxu0
  %144 = vmatpush.bf16.msra.mxu0 %v113
  %145 = vmatpush.bf16.msra.mxu0 %v111
  %146 = vmatpush.bf16.msra.mxu0 %v109
  %147 = vmatpush.bf16.msra.mxu0 %v107
  %148 = vmatpush.bf16.msra.mxu0 %v105
  %149 = vmatpush.bf16.msra.mxu0 %v103
  %150 = vmatpush.bf16.msra.mxu0 %v101
  %151 = vmatpush.bf16.msra.mxu0 %v99
  %152 = vmatmul.bf16.gmra.mxu0 %v48
  %v153 = vpop.f32.mrf.mxu0
  %v154 = vadd.f32 %v37, %v153
  %v155 = vpop.f32.mrf.mxu0
  %v156 = vadd.f32 %v42, %v155
  %157 = vdwg.mxu0
  %v158 = vpack.c.bf16 %v154, %v140
  %v159 = vpack.c.bf16 %v156, %v142
  %160 = vst [vmem:[%s3] sm:$0xff] %v158
  %161 = vst [vmem:[%s3 + $0x8] sm:$0xff] %v159
  // Predicated region
  $region14: #{_lambda_.8} parent=0 // pred_check
    _
  $region15: #{_lambda_.8} parent=0 // pred_check_branch
    %163 = sbr.rel (0) target = $region17
  $region16: #{_lambda_.8} parent=0 // pred_region
    _
  $region17: #{_lambda_.8} parent=0 // pred_fallthru
    _
  // Predicated region
  $region18: #{_lambda_.8} parent=0 // pred_check
    _
  $region19: #{_lambda_.8} parent=0 // pred_check_branch
    %165 = sbr.rel (0) target = $region21
  $region20: #{_lambda_.8} parent=0 // pred_region
    _
  $region21: #{_lambda_.8} parent=0 // pred_fallthru
    _

// kernel: _lambda_.9
$region0: #{_lambda_.9}
  #allocation0 [shape = 'u32[]', space=smem, size = 0x4, offset = 0x4, fixed_abs, tag = 'smem constant byte address 0x4 - core index']
  #allocation1 [shape = 'u32[72,128]{1,0:T(1,128)}', space=vmem, size = 0x9000, scoped, tag = 'internal scratch']
  %s0 = inlined_call_operand.vmem [shape: bf16[1,288,256], index: 0, kind: input, shape index: {}]
  %s1 = inlined_call_operand.vmem [shape: bf16[32,288], index: 1, kind: input, shape index: {}]
  %s2 = inlined_call_operand.vmem [shape: f32[32,1], index: 2, kind: input, shape index: {}]
  %s3 = inlined_call_operand.vmem [shape: bf16[1,32,256], index: 3, kind: output, shape index: {}]
  %s4 = sld [smem:[#allocation0]]
  $region22: #{_lambda_.9} parent=0
    _
  %s6 = ssub.s32 1, %s4
  %s7 = scalar_select 0, %s6, %s4
  // Predicated region
  $region2: #{_lambda_.9} parent=0 // pred_check
    _
  $region3: #{_lambda_.9} parent=0 // pred_check_branch
    %9 = sbr.rel (0) target = $region5
  $region4: #{_lambda_.9} parent=0 // pred_region
    _
  $region5: #{_lambda_.9} parent=0 // pred_fallthru
    _
  // Predicated region
  $region6: #{_lambda_.9} parent=0 // pred_check
    _
  $region7: #{_lambda_.9} parent=0 // pred_check_branch
    %11 = sbr.rel (0) target = $region9
  $region8: #{_lambda_.9} parent=0 // pred_region
    _
  $region9: #{_lambda_.9} parent=0 // pred_fallthru
    _
  // Predicated region
  $region10: #{_lambda_.9} parent=0 // pred_check
    _
  $region11: #{_lambda_.9} parent=0 // pred_check_branch
    %13 = sbr.rel (0) target = $region13
  $region12: #{_lambda_.9} parent=0 // pred_region
    _
  $region13: #{_lambda_.9} parent=0 // pred_fallthru
    _
  %v15 = vld [vmem:[%s1] sm:$0xff]
  %v16 = vld [vmem:[%s1 + $0x8] sm:$0xf]
  %v17 = vld [vmem:[%s1 + $0xc] sm:$0xff]
  %v18 = vld [vmem:[%s1 + $0x14] sm:$0xf]
  %v19 = vld [vmem:[%s1 + $0x18] sm:$0xff]
  %v20 = vld [vmem:[%s1 + $0x20] sm:$0xf]
  %v21 = vld [vmem:[%s1 + $0x24] sm:$0xff]
  %v22 = vld [vmem:[%s1 + $0x2c] sm:$0xf]
  %v23 = vld [vmem:[%s0] sm:$0xff]
  %v24 = vld [vmem:[%s0 + $0x8] sm:$0xff]
  %v25 = vld [vmem:[%s0 + $0x10] sm:$0xff]
  %v26 = vld [vmem:[%s0 + $0x18] sm:$0xff]
  %v27 = vld [vmem:[%s0 + $0x20] sm:$0xff]
  %v28 = vld [vmem:[%s0 + $0x28] sm:$0xff]
  %v29 = vld [vmem:[%s0 + $0x30] sm:$0xff]
  %v30 = vld [vmem:[%s0 + $0x38] sm:$0xff]
  %v31 = vld [vmem:[%s0 + $0x40] sm:$0xff]
  %v32 = vld [vmem:[%s0 + $0x48] sm:$0xff]
  %v33 = vld [vmem:[%s0 + $0x50] sm:$0xff]
  %v34 = vld [vmem:[%s0 + $0x58] sm:$0xff]
  %v35 = vld [vmem:[%s0 + $0x60] sm:$0xff]
  %v36 = vld [vmem:[%s0 + $0x68] sm:$0xff]
  %v37 = vld [vmem:[%s0 + $0x70] sm:$0xff]
  %v38 = vld [vmem:[%s0 + $0x78] sm:$0xff]
  %v39 = vld [vmem:[%s0 + $0x80] sm:$0xff]
  %v40 = vld [vmem:[%s0 + $0x88] sm:$0xff]
  %v41 = vld [vmem:[%s0 + $0x90] sm:$0xff]
  %v42 = vld [vmem:[%s0 + $0x98] sm:$0xff]
  %v43 = vld [vmem:[%s0 + $0xa0] sm:$0xff]
  %v44 = vld [vmem:[%s0 + $0xa8] sm:$0xff]
  %v45 = vld [vmem:[%s0 + $0xb0] sm:$0xff]
  %v46 = vld [vmem:[%s0 + $0xb8] sm:$0xff]
  %v47 = vld [vmem:[%s0 + $0xc0] sm:$0xff]
  %v48 = vld [vmem:[%s0 + $0xc8] sm:$0xff]
  %v49 = vld [vmem:[%s0 + $0xd0] sm:$0xff]
  %v50 = vld [vmem:[%s0 + $0xd8] sm:$0xff]
  %v51 = vld [vmem:[%s0 + $0xe0] sm:$0xff]
  %v52 = vld [vmem:[%s0 + $0xe8] sm:$0xff]
  %v53 = vld [vmem:[%s0 + $0xf0] sm:$0xff]
  %v54 = vld [vmem:[%s0 + $0xf8] sm:$0xff]
  %v55 = vld [vmem:[%s0 + $0x100] sm:$0xff]
  %v56 = vld [vmem:[%s0 + $0x108] sm:$0xff]
  %v57 = vld [vmem:[%s0 + $0x110] sm:$0xff]
  %v58 = vld [vmem:[%s0 + $0x118] sm:$0xff]
  %v59 = vld [vmem:[%s2] sm:$0xff]
  %v60 = vld [vmem:[%s2 + $0x8] sm:$0xff]
  %v61 = vld [vmem:[%s2 + $0x10] sm:$0xff]
  %v62 = vld [vmem:[%s2 + $0x18] sm:$0xff]
  %64 = vset.pattern.permute.xlu0 0
  %65 = vperm.xlu0 %64, %v59
  %v66 = vpop.permute.xlu0 %65
  %69 = vset.pattern.permute.xlu0 0
  %70 = vperm.xlu0 %69, %v60
  %v71 = vpop.permute.xlu0 %70
  %74 = vset.pattern.permute.xlu0 0
  %75 = vperm.xlu0 %74, %v61
  %v76 = vpop.permute.xlu0 %75
  %79 = vset.pattern.permute.xlu0 0
  %80 = vperm.xlu0 %79, %v62
  %v81 = vpop.permute.xlu0 %80
  %v91 = vunpack.c.l.b16 %v15
  %v92 = vunpack.c.h.b16 %v15
  %v93 = vunpack.c.l.b16 %v16
  %v94 = vunpack.c.l.b16 %v17
  %v95 = vunpack.c.h.b16 %v17
  %v96 = vunpack.c.l.b16 %v18
  %v97 = vunpack.c.l.b16 %v19
  %v98 = vunpack.c.h.b16 %v19
  %v99 = vunpack.c.l.b16 %v20
  %v100 = vunpack.c.l.b16 %v21
  %v101 = vunpack.c.h.b16 %v21
  %v102 = vunpack.c.l.b16 %v22
  %v103 = vpack.c.b16 %v94, %v91
  %v104 = vpack.c.b16 %v95, %v92
  %v105 = vpack.c.b16 %v96, %v93
  %v106 = vpack.c.b16 %v100, %v97
  %v107 = vpack.c.b16 %v101, %v98
  %v108 = vpack.c.b16 %v102, %v99
  %v149 = vunpack.c.l.b16 %v23
  %v150 = vunpack.c.h.b16 %v23
  %v151 = vunpack.c.l.b16 %v24
  %v152 = vunpack.c.h.b16 %v24
  %v153 = vunpack.c.l.b16 %v25
  %v154 = vunpack.c.h.b16 %v25
  %v155 = vunpack.c.l.b16 %v26
  %v156 = vunpack.c.h.b16 %v26
  %v157 = vunpack.c.l.b16 %v27
  %v158 = vunpack.c.h.b16 %v27
  %v159 = vunpack.c.l.b16 %v28
  %v160 = vunpack.c.h.b16 %v28
  %v161 = vunpack.c.l.b16 %v29
  %v162 = vunpack.c.h.b16 %v29
  %v163 = vunpack.c.l.b16 %v30
  %v164 = vunpack.c.h.b16 %v30
  %v165 = vunpack.c.l.b16 %v31
  %v166 = vunpack.c.h.b16 %v31
  %v167 = vunpack.c.l.b16 %v32
  %v168 = vunpack.c.h.b16 %v32
  %v169 = vunpack.c.l.b16 %v33
  %v170 = vunpack.c.h.b16 %v33
  %v171 = vunpack.c.l.b16 %v34
  %v172 = vunpack.c.h.b16 %v34
  %v173 = vunpack.c.l.b16 %v35
  %v174 = vunpack.c.h.b16 %v35
  %v175 = vunpack.c.l.b16 %v36
  %v176 = vunpack.c.h.b16 %v36
  %v177 = vunpack.c.l.b16 %v37
  %v178 = vunpack.c.h.b16 %v37
  %v179 = vunpack.c.l.b16 %v38
  %v180 = vunpack.c.h.b16 %v38
  %v181 = vunpack.c.l.b16 %v39
  %v182 = vunpack.c.h.b16 %v39
  %v183 = vunpack.c.l.b16 %v40
  %v184 = vunpack.c.h.b16 %v40
  %v185 = vunpack.c.l.b16 %v41
  %v186 = vunpack.c.h.b16 %v41
  %v187 = vunpack.c.l.b16 %v42
  %v188 = vunpack.c.h.b16 %v42
  %v189 = vunpack.c.l.b16 %v43
  %v190 = vunpack.c.h.b16 %v43
  %v191 = vunpack.c.l.b16 %v44
  %v192 = vunpack.c.h.b16 %v44
  %v193 = vunpack.c.l.b16 %v45
  %v194 = vunpack.c.h.b16 %v45
  %v195 = vunpack.c.l.b16 %v46
  %v196 = vunpack.c.h.b16 %v46
  %v197 = vunpack.c.l.b16 %v47
  %v198 = vunpack.c.h.b16 %v47
  %v199 = vunpack.c.l.b16 %v48
  %v200 = vunpack.c.h.b16 %v48
  %v201 = vunpack.c.l.b16 %v49
  %v202 = vunpack.c.h.b16 %v49
  %v203 = vunpack.c.l.b16 %v50
  %v204 = vunpack.c.h.b16 %v50
  %v205 = vunpack.c.l.b16 %v51
  %v206 = vunpack.c.h.b16 %v51
  %v207 = vunpack.c.l.b16 %v52
  %v208 = vunpack.c.h.b16 %v52
  %v209 = vunpack.c.l.b16 %v53
  %v210 = vunpack.c.h.b16 %v53
  %v211 = vunpack.c.l.b16 %v54
  %v212 = vunpack.c.h.b16 %v54
  %v213 = vunpack.c.l.b16 %v55
  %v214 = vunpack.c.h.b16 %v55
  %v215 = vunpack.c.l.b16 %v56
  %v216 = vunpack.c.h.b16 %v56
  %v217 = vunpack.c.l.b16 %v57
  %v218 = vunpack.c.h.b16 %v57
  %v219 = vunpack.c.l.b16 %v58
  %v220 = vunpack.c.h.b16 %v58
  %v221 = vpack.c.b16 %v151, %v149
  %v222 = vpack.c.b16 %v152, %v150
  %v223 = vpack.c.b16 %v155, %v153
  %v224 = vpack.c.b16 %v156, %v154
  %v225 = vpack.c.b16 %v159, %v157
  %v226 = vpack.c.b16 %v160, %v158
  %v227 = vpack.c.b16 %v163, %v161
  %v228 = vpack.c.b16 %v164, %v162
  %v229 = vpack.c.b16 %v167, %v165
  %v230 = vpack.c.b16 %v168, %v166
  %v231 = vpack.c.b16 %v171, %v169
  %v232 = vpack.c.b16 %v172, %v170
  %v233 = vpack.c.b16 %v175, %v173
  %v234 = vpack.c.b16 %v176, %v174
  %v235 = vpack.c.b16 %v179, %v177
  %v236 = vpack.c.b16 %v180, %v178
  %v237 = vpack.c.b16 %v183, %v181
  %v238 = vpack.c.b16 %v184, %v182
  %v239 = vpack.c.b16 %v187, %v185
  %v240 = vpack.c.b16 %v188, %v186
  %v241 = vpack.c.b16 %v191, %v189
  %v242 = vpack.c.b16 %v192, %v190
  %v243 = vpack.c.b16 %v195, %v193
  %v244 = vpack.c.b16 %v196, %v194
  %v245 = vpack.c.b16 %v199, %v197
  %v246 = vpack.c.b16 %v200, %v198
  %v247 = vpack.c.b16 %v203, %v201
  %v248 = vpack.c.b16 %v204, %v202
  %v249 = vpack.c.b16 %v207, %v205
  %v250 = vpack.c.b16 %v208, %v206
  %v251 = vpack.c.b16 %v211, %v209
  %v252 = vpack.c.b16 %v212, %v210
  %v253 = vpack.c.b16 %v215, %v213
  %v254 = vpack.c.b16 %v216, %v214
  %v255 = vpack.c.b16 %v219, %v217
  %v256 = vpack.c.b16 %v220, %v218
  %vm293 = vcmask 261120
  %v295 = vsel %vm293, %v105, 0
  %v298 = vsel %vm293, %v108, 0
  %300 = vmatpush.bf16.msra.mxu0 %v235
  %301 = vmatpush.bf16.msra.mxu0 %v233
  %302 = vmatpush.bf16.msra.mxu0 %v231
  %303 = vmatpush.bf16.msra.mxu0 %v229
  %304 = vmatpush.bf16.msra.mxu0 %v227
  %305 = vmatpush.bf16.msra.mxu0 %v225
  %306 = vmatpush.bf16.msra.mxu0 %v223
  %307 = vmatpush.bf16.msra.mxu0 %v221
  %308 = vmatmul.bf16.gmra.mxu0 %v103
  %v309 = vpop.f32.mrf.mxu0
  %v310 = vadd.f32 %v66, %v309
  %v311 = vpop.f32.mrf.mxu0
  %v312 = vadd.f32 %v71, %v311
  %313 = vmatmul.bf16.gmra.mxu0 %v106
  %v314 = vpop.f32.mrf.mxu0
  %v315 = vadd.f32 %v76, %v314
  %v316 = vpop.f32.mrf.mxu0
  %v317 = vadd.f32 %v81, %v316
  %318 = vdwg.mxu0
  %319 = vmatpush.bf16.msra.mxu0 %v251
  %320 = vmatpush.bf16.msra.mxu0 %v249
  %321 = vmatpush.bf16.msra.mxu0 %v247
  %322 = vmatpush.bf16.msra.mxu0 %v245
  %323 = vmatpush.bf16.msra.mxu0 %v243
  %324 = vmatpush.bf16.msra.mxu0 %v241
  %325 = vmatpush.bf16.msra.mxu0 %v239
  %326 = vmatpush.bf16.msra.mxu0 %v237
  %327 = vmatmul.bf16.gmra.mxu0 %v104
  %v328 = vpop.f32.mrf.mxu0
  %v329 = vadd.f32 %v310, %v328
  %v330 = vpop.f32.mrf.mxu0
  %v331 = vadd.f32 %v312, %v330
  %332 = vmatmul.bf16.gmra.mxu0 %v107
  %v333 = vpop.f32.mrf.mxu0
  %v334 = vadd.f32 %v315, %v333
  %v335 = vpop.f32.mrf.mxu0
  %v336 = vadd.f32 %v317, %v335
  %337 = vdwg.mxu0
  %338 = vmatpush.bf16.msra.mxu0 0
  %339 = vmatpush.bf16.msra.mxu0 0
  %340 = vmatpush.bf16.msra.mxu0 0
  %341 = vmatpush.bf16.msra.mxu0 0
  %342 = vmatpush.bf16.msra.mxu0 0
  %343 = vmatpush.bf16.msra.mxu0 0
  %344 = vmatpush.bf16.msra.mxu0 %v255
  %345 = vmatpush.bf16.msra.mxu0 %v253
  %346 = vmatmul.bf16.gmra.mxu0 %v295
  %v347 = vpop.f32.mrf.mxu0
  %v348 = vadd.f32 %v329, %v347
  %v349 = vpop.f32.mrf.mxu0
  %v350 = vadd.f32 %v331, %v349
  %351 = vmatmul.bf16.gmra.mxu0 %v298
  %v352 = vpop.f32.mrf.mxu0
  %v353 = vadd.f32 %v334, %v352
  %v354 = vpop.f32.mrf.mxu0
  %v355 = vadd.f32 %v336, %v354
  %356 = vdwg.mxu0
  %357 = vmatpush.bf16.msra.mxu0 %v236
  %358 = vmatpush.bf16.msra.mxu0 %v234
  %359 = vmatpush.bf16.msra.mxu0 %v232
  %360 = vmatpush.bf16.msra.mxu0 %v230
  %361 = vmatpush.bf16.msra.mxu0 %v228
  %362 = vmatpush.bf16.msra.mxu0 %v226
  %363 = vmatpush.bf16.msra.mxu0 %v224
  %364 = vmatpush.bf16.msra.mxu0 %v222
  %365 = vmatmul.bf16.gmra.mxu0 %v103
  %v366 = vpop.f32.mrf.mxu0
  %v367 = vadd.f32 %v66, %v366
  %v368 = vpop.f32.mrf.mxu0
  %v369 = vadd.f32 %v71, %v368
  %370 = vmatmul.bf16.gmra.mxu0 %v106
  %v371 = vpop.f32.mrf.mxu0
  %v372 = vadd.f32 %v76, %v371
  %v373 = vpop.f32.mrf.mxu0
  %v374 = vadd.f32 %v81, %v373
  %375 = vdwg.mxu0
  %376 = vmatpush.bf16.msra.mxu0 %v252
  %377 = vmatpush.bf16.msra.mxu0 %v250
  %378 = vmatpush.bf16.msra.mxu0 %v248
  %379 = vmatpush.bf16.msra.mxu0 %v246
  %380 = vmatpush.bf16.msra.mxu0 %v244
  %381 = vmatpush.bf16.msra.mxu0 %v242
  %382 = vmatpush.bf16.msra.mxu0 %v240
  %383 = vmatpush.bf16.msra.mxu0 %v238
  %384 = vmatmul.bf16.gmra.mxu0 %v104
  %v385 = vpop.f32.mrf.mxu0
  %v386 = vadd.f32 %v367, %v385
  %v387 = vpop.f32.mrf.mxu0
  %v388 = vadd.f32 %v369, %v387
  %389 = vmatmul.bf16.gmra.mxu0 %v107
  %v390 = vpop.f32.mrf.mxu0
  %v391 = vadd.f32 %v372, %v390
  %v392 = vpop.f32.mrf.mxu0
  %v393 = vadd.f32 %v374, %v392
  %394 = vdwg.mxu0
  %395 = vmatpush.bf16.msra.mxu0 0
  %396 = vmatpush.bf16.msra.mxu0 0
  %397 = vmatpush.bf16.msra.mxu0 0
  %398 = vmatpush.bf16.msra.mxu0 0
  %399 = vmatpush.bf16.msra.mxu0 0
  %400 = vmatpush.bf16.msra.mxu0 0
  %401 = vmatpush.bf16.msra.mxu0 %v256
  %402 = vmatpush.bf16.msra.mxu0 %v254
  %403 = vmatmul.bf16.gmra.mxu0 %v295
  %v404 = vpop.f32.mrf.mxu0
  %v405 = vadd.f32 %v386, %v404
  %v406 = vpop.f32.mrf.mxu0
  %v407 = vadd.f32 %v388, %v406
  %408 = vmatmul.bf16.gmra.mxu0 %v298
  %v409 = vpop.f32.mrf.mxu0
  %v410 = vadd.f32 %v391, %v409
  %v411 = vpop.f32.mrf.mxu0
  %v412 = vadd.f32 %v393, %v411
  %413 = vdwg.mxu0
  %v414 = vpack.c.bf16 %v405, %v348
  %v415 = vpack.c.bf16 %v407, %v350
  %v416 = vpack.c.bf16 %v410, %v353
  %v417 = vpack.c.bf16 %v412, %v355
  %418 = vst [vmem:[%s3] sm:$0xff] %v414
  %419 = vst [vmem:[%s3 + $0x8] sm:$0xff] %v415
  %420 = vst [vmem:[%s3 + $0x10] sm:$0xff] %v416
  %421 = vst [vmem:[%s3 + $0x18] sm:$0xff] %v417
  // Predicated region
  $region14: #{_lambda_.9} parent=0 // pred_check
    _
  $region15: #{_lambda_.9} parent=0 // pred_check_branch
    %423 = sbr.rel (0) target = $region17
  $region16: #{_lambda_.9} parent=0 // pred_region
    _
  $region17: #{_lambda_.9} parent=0 // pred_fallthru
    _
  // Predicated region
  $region18: #{_lambda_.9} parent=0 // pred_check
    _
  $region19: #{_lambda_.9} parent=0 // pred_check_branch
    %425 = sbr.rel (0) target = $region21
  $region20: #{_lambda_.9} parent=0 // pred_region
    _
  $region21: #{_lambda_.9} parent=0 // pred_fallthru
    _

// kernel: _lambda_.10
$region0: #{_lambda_.10}
  #allocation0 [shape = 'u32[]', space=smem, size = 0x4, offset = 0x4, fixed_abs, tag = 'smem constant byte address 0x4 - core index']
  #allocation1 [shape = 'u32[72,128]{1,0:T(1,128)}', space=vmem, size = 0x9000, scoped, tag = 'internal scratch']
  %s0 = inlined_call_operand.vmem [shape: bf16[1,144,1024], index: 0, kind: input, shape index: {}]
  %s1 = inlined_call_operand.vmem [shape: bf16[16,144], index: 1, kind: input, shape index: {}]
  %s2 = inlined_call_operand.vmem [shape: f32[16,1], index: 2, kind: input, shape index: {}]
  %s3 = inlined_call_operand.vmem [shape: bf16[1,16,1024], index: 3, kind: output, shape index: {}]
  %s4 = sld [smem:[#allocation0]]
  $region22: #{_lambda_.10} parent=0
    _
  %s6 = ssub.s32 1, %s4
  %s7 = scalar_select 0, %s6, %s4
  // Predicated region
  $region2: #{_lambda_.10} parent=0 // pred_check
    _
  $region3: #{_lambda_.10} parent=0 // pred_check_branch
    %9 = sbr.rel (0) target = $region5
  $region4: #{_lambda_.10} parent=0 // pred_region
    _
  $region5: #{_lambda_.10} parent=0 // pred_fallthru
    _
  // Predicated region
  $region6: #{_lambda_.10} parent=0 // pred_check
    _
  $region7: #{_lambda_.10} parent=0 // pred_check_branch
    %11 = sbr.rel (0) target = $region9
  $region8: #{_lambda_.10} parent=0 // pred_region
    _
  $region9: #{_lambda_.10} parent=0 // pred_fallthru
    _
  // Predicated region
  $region10: #{_lambda_.10} parent=0 // pred_check
    _
  $region11: #{_lambda_.10} parent=0 // pred_check_branch
    %13 = sbr.rel (0) target = $region13
  $region12: #{_lambda_.10} parent=0 // pred_region
    _
  $region13: #{_lambda_.10} parent=0 // pred_fallthru
    _
  %v15 = vld [vmem:[%s1] sm:$0xff]
  %v16 = vld [vmem:[%s1 + $0x8] sm:$0xff]
  %v17 = vld [vmem:[%s0] sm:$0xff]
  %v18 = vld [vmem:[%s0 + $0x8] sm:$0xff]
  %v19 = vld [vmem:[%s0 + $0x10] sm:$0xff]
  %v20 = vld [vmem:[%s0 + $0x18] sm:$0xff]
  %v21 = vld [vmem:[%s0 + $0x20] sm:$0xff]
  %v22 = vld [vmem:[%s0 + $0x28] sm:$0xff]
  %v23 = vld [vmem:[%s0 + $0x30] sm:$0xff]
  %v24 = vld [vmem:[%s0 + $0x38] sm:$0xff]
  %v25 = vld [vmem:[%s0 + $0x40] sm:$0xff]
  %v26 = vld [vmem:[%s0 + $0x48] sm:$0xff]
  %v27 = vld [vmem:[%s0 + $0x50] sm:$0xff]
  %v28 = vld [vmem:[%s0 + $0x58] sm:$0xff]
  %v29 = vld [vmem:[%s0 + $0x60] sm:$0xff]
  %v30 = vld [vmem:[%s0 + $0x68] sm:$0xff]
  %v31 = vld [vmem:[%s0 + $0x70] sm:$0xff]
  %v32 = vld [vmem:[%s0 + $0x78] sm:$0xff]
  %v33 = vld [vmem:[%s0 + $0x80] sm:$0xff]
  %v34 = vld [vmem:[%s0 + $0x88] sm:$0xff]
  %v35 = vld [vmem:[%s0 + $0x90] sm:$0xff]
  %v36 = vld [vmem:[%s0 + $0x98] sm:$0xff]
  %v37 = vld [vmem:[%s0 + $0xa0] sm:$0xff]
  %v38 = vld [vmem:[%s0 + $0xa8] sm:$0xff]
  %v39 = vld [vmem:[%s0 + $0xb0] sm:$0xff]
  %v40 = vld [vmem:[%s0 + $0xb8] sm:$0xff]
  %v41 = vld [vmem:[%s0 + $0xc0] sm:$0xff]
  %v42 = vld [vmem:[%s0 + $0xc8] sm:$0xff]
  %v43 = vld [vmem:[%s0 + $0xd0] sm:$0xff]
  %v44 = vld [vmem:[%s0 + $0xd8] sm:$0xff]
  %v45 = vld [vmem:[%s0 + $0xe0] sm:$0xff]
  %v46 = vld [vmem:[%s0 + $0xe8] sm:$0xff]
  %v47 = vld [vmem:[%s0 + $0xf0] sm:$0xff]
  %v48 = vld [vmem:[%s0 + $0xf8] sm:$0xff]
  %v49 = vld [vmem:[%s0 + $0x100] sm:$0xff]
  %v50 = vld [vmem:[%s0 + $0x108] sm:$0xff]
  %v51 = vld [vmem:[%s0 + $0x110] sm:$0xff]
  %v52 = vld [vmem:[%s0 + $0x118] sm:$0xff]
  %v53 = vld [vmem:[%s0 + $0x120] sm:$0xff]
  %v54 = vld [vmem:[%s0 + $0x128] sm:$0xff]
  %v55 = vld [vmem:[%s0 + $0x130] sm:$0xff]
  %v56 = vld [vmem:[%s0 + $0x138] sm:$0xff]
  %v57 = vld [vmem:[%s0 + $0x140] sm:$0xff]
  %v58 = vld [vmem:[%s0 + $0x148] sm:$0xff]
  %v59 = vld [vmem:[%s0 + $0x150] sm:$0xff]
  %v60 = vld [vmem:[%s0 + $0x158] sm:$0xff]
  %v61 = vld [vmem:[%s0 + $0x160] sm:$0xff]
  %v62 = vld [vmem:[%s0 + $0x168] sm:$0xff]
  %v63 = vld [vmem:[%s0 + $0x170] sm:$0xff]
  %v64 = vld [vmem:[%s0 + $0x178] sm:$0xff]
  %v65 = vld [vmem:[%s0 + $0x180] sm:$0xff]
  %v66 = vld [vmem:[%s0 + $0x188] sm:$0xff]
  %v67 = vld [vmem:[%s0 + $0x190] sm:$0xff]
  %v68 = vld [vmem:[%s0 + $0x198] sm:$0xff]
  %v69 = vld [vmem:[%s0 + $0x1a0] sm:$0xff]
  %v70 = vld [vmem:[%s0 + $0x1a8] sm:$0xff]
  %v71 = vld [vmem:[%s0 + $0x1b0] sm:$0xff]
  %v72 = vld [vmem:[%s0 + $0x1b8] sm:$0xff]
  %v73 = vld [vmem:[%s0 + $0x1c0] sm:$0xff]
  %v74 = vld [vmem:[%s0 + $0x1c8] sm:$0xff]
  %v75 = vld [vmem:[%s0 + $0x1d0] sm:$0xff]
  %v76 = vld [vmem:[%s0 + $0x1d8] sm:$0xff]
  %v77 = vld [vmem:[%s0 + $0x1e0] sm:$0xff]
  %v78 = vld [vmem:[%s0 + $0x1e8] sm:$0xff]
  %v79 = vld [vmem:[%s0 + $0x1f0] sm:$0xff]
  %v80 = vld [vmem:[%s0 + $0x1f8] sm:$0xff]
  %v81 = vld [vmem:[%s0 + $0x200] sm:$0xff]
  %v82 = vld [vmem:[%s0 + $0x208] sm:$0xff]
  %v83 = vld [vmem:[%s0 + $0x210] sm:$0xff]
  %v84 = vld [vmem:[%s0 + $0x218] sm:$0xff]
  %v85 = vld [vmem:[%s0 + $0x220] sm:$0xff]
  %v86 = vld [vmem:[%s0 + $0x228] sm:$0xff]
  %v87 = vld [vmem:[%s0 + $0x230] sm:$0xff]
  %v88 = vld [vmem:[%s0 + $0x238] sm:$0xff]
  %v89 = vld [vmem:[%s2] sm:$0xff]
  %v90 = vld [vmem:[%s2 + $0x8] sm:$0xff]
  %92 = vset.pattern.permute.xlu0 0
  %93 = vperm.xlu0 %92, %v89
  %v94 = vpop.permute.xlu0 %93
  %97 = vset.pattern.permute.xlu0 0
  %98 = vperm.xlu0 %97, %v90
  %v99 = vpop.permute.xlu0 %98
  %v103 = vunpack.c.l.b16 %v15
  %v104 = vunpack.c.h.b16 %v15
  %v105 = vunpack.c.l.b16 %v16
  %v106 = vunpack.c.h.b16 %v16
  %v107 = vpack.c.b16 %v105, %v103
  %v108 = vpack.c.b16 %v106, %v104
  %v182 = vunpack.c.l.b16 %v17
  %v183 = vunpack.c.h.b16 %v17
  %v184 = vunpack.c.l.b16 %v18
  %v185 = vunpack.c.h.b16 %v18
  %v186 = vunpack.c.l.b16 %v19
  %v187 = vunpack.c.h.b16 %v19
  %v188 = vunpack.c.l.b16 %v20
  %v189 = vunpack.c.h.b16 %v20
  %v190 = vunpack.c.l.b16 %v21
  %v191 = vunpack.c.h.b16 %v21
  %v192 = vunpack.c.l.b16 %v22
  %v193 = vunpack.c.h.b16 %v22
  %v194 = vunpack.c.l.b16 %v23
  %v195 = vunpack.c.h.b16 %v23
  %v196 = vunpack.c.l.b16 %v24
  %v197 = vunpack.c.h.b16 %v24
  %v198 = vunpack.c.l.b16 %v25
  %v199 = vunpack.c.h.b16 %v25
  %v200 = vunpack.c.l.b16 %v26
  %v201 = vunpack.c.h.b16 %v26
  %v202 = vunpack.c.l.b16 %v27
  %v203 = vunpack.c.h.b16 %v27
  %v204 = vunpack.c.l.b16 %v28
  %v205 = vunpack.c.h.b16 %v28
  %v206 = vunpack.c.l.b16 %v29
  %v207 = vunpack.c.h.b16 %v29
  %v208 = vunpack.c.l.b16 %v30
  %v209 = vunpack.c.h.b16 %v30
  %v210 = vunpack.c.l.b16 %v31
  %v211 = vunpack.c.h.b16 %v31
  %v212 = vunpack.c.l.b16 %v32
  %v213 = vunpack.c.h.b16 %v32
  %v214 = vunpack.c.l.b16 %v33
  %v215 = vunpack.c.h.b16 %v33
  %v216 = vunpack.c.l.b16 %v34
  %v217 = vunpack.c.h.b16 %v34
  %v218 = vunpack.c.l.b16 %v35
  %v219 = vunpack.c.h.b16 %v35
  %v220 = vunpack.c.l.b16 %v36
  %v221 = vunpack.c.h.b16 %v36
  %v222 = vunpack.c.l.b16 %v37
  %v223 = vunpack.c.h.b16 %v37
  %v224 = vunpack.c.l.b16 %v38
  %v225 = vunpack.c.h.b16 %v38
  %v226 = vunpack.c.l.b16 %v39
  %v227 = vunpack.c.h.b16 %v39
  %v228 = vunpack.c.l.b16 %v40
  %v229 = vunpack.c.h.b16 %v40
  %v230 = vunpack.c.l.b16 %v41
  %v231 = vunpack.c.h.b16 %v41
  %v232 = vunpack.c.l.b16 %v42
  %v233 = vunpack.c.h.b16 %v42
  %v234 = vunpack.c.l.b16 %v43
  %v235 = vunpack.c.h.b16 %v43
  %v236 = vunpack.c.l.b16 %v44
  %v237 = vunpack.c.h.b16 %v44
  %v238 = vunpack.c.l.b16 %v45
  %v239 = vunpack.c.h.b16 %v45
  %v240 = vunpack.c.l.b16 %v46
  %v241 = vunpack.c.h.b16 %v46
  %v242 = vunpack.c.l.b16 %v47
  %v243 = vunpack.c.h.b16 %v47
  %v244 = vunpack.c.l.b16 %v48
  %v245 = vunpack.c.h.b16 %v48
  %v246 = vunpack.c.l.b16 %v49
  %v247 = vunpack.c.h.b16 %v49
  %v248 = vunpack.c.l.b16 %v50
  %v249 = vunpack.c.h.b16 %v50
  %v250 = vunpack.c.l.b16 %v51
  %v251 = vunpack.c.h.b16 %v51
  %v252 = vunpack.c.l.b16 %v52
  %v253 = vunpack.c.h.b16 %v52
  %v254 = vunpack.c.l.b16 %v53
  %v255 = vunpack.c.h.b16 %v53
  %v256 = vunpack.c.l.b16 %v54
  %v257 = vunpack.c.h.b16 %v54
  %v258 = vunpack.c.l.b16 %v55
  %v259 = vunpack.c.h.b16 %v55
  %v260 = vunpack.c.l.b16 %v56
  %v261 = vunpack.c.h.b16 %v56
  %v262 = vunpack.c.l.b16 %v57
  %v263 = vunpack.c.h.b16 %v57
  %v264 = vunpack.c.l.b16 %v58
  %v265 = vunpack.c.h.b16 %v58
  %v266 = vunpack.c.l.b16 %v59
  %v267 = vunpack.c.h.b16 %v59
  %v268 = vunpack.c.l.b16 %v60
  %v269 = vunpack.c.h.b16 %v60
  %v270 = vunpack.c.l.b16 %v61
  %v271 = vunpack.c.h.b16 %v61
  %v272 = vunpack.c.l.b16 %v62
  %v273 = vunpack.c.h.b16 %v62
  %v274 = vunpack.c.l.b16 %v63
  %v275 = vunpack.c.h.b16 %v63
  %v276 = vunpack.c.l.b16 %v64
  %v277 = vunpack.c.h.b16 %v64
  %v278 = vunpack.c.l.b16 %v65
  %v279 = vunpack.c.h.b16 %v65
  %v280 = vunpack.c.l.b16 %v66
  %v281 = vunpack.c.h.b16 %v66
  %v282 = vunpack.c.l.b16 %v67
  %v283 = vunpack.c.h.b16 %v67
  %v284 = vunpack.c.l.b16 %v68
  %v285 = vunpack.c.h.b16 %v68
  %v286 = vunpack.c.l.b16 %v69
  %v287 = vunpack.c.h.b16 %v69
  %v288 = vunpack.c.l.b16 %v70
  %v289 = vunpack.c.h.b16 %v70
  %v290 = vunpack.c.l.b16 %v71
  %v291 = vunpack.c.h.b16 %v71
  %v292 = vunpack.c.l.b16 %v72
  %v293 = vunpack.c.h.b16 %v72
  %v294 = vunpack.c.l.b16 %v73
  %v295 = vunpack.c.h.b16 %v73
  %v296 = vunpack.c.l.b16 %v74
  %v297 = vunpack.c.h.b16 %v74
  %v298 = vunpack.c.l.b16 %v75
  %v299 = vunpack.c.h.b16 %v75
  %v300 = vunpack.c.l.b16 %v76
  %v301 = vunpack.c.h.b16 %v76
  %v302 = vunpack.c.l.b16 %v77
  %v303 = vunpack.c.h.b16 %v77
  %v304 = vunpack.c.l.b16 %v78
  %v305 = vunpack.c.h.b16 %v78
  %v306 = vunpack.c.l.b16 %v79
  %v307 = vunpack.c.h.b16 %v79
  %v308 = vunpack.c.l.b16 %v80
  %v309 = vunpack.c.h.b16 %v80
  %v310 = vunpack.c.l.b16 %v81
  %v311 = vunpack.c.h.b16 %v81
  %v312 = vunpack.c.l.b16 %v82
  %v313 = vunpack.c.h.b16 %v82
  %v314 = vunpack.c.l.b16 %v83
  %v315 = vunpack.c.h.b16 %v83
  %v316 = vunpack.c.l.b16 %v84
  %v317 = vunpack.c.h.b16 %v84
  %v318 = vunpack.c.l.b16 %v85
  %v319 = vunpack.c.h.b16 %v85
  %v320 = vunpack.c.l.b16 %v86
  %v321 = vunpack.c.h.b16 %v86
  %v322 = vunpack.c.l.b16 %v87
  %v323 = vunpack.c.h.b16 %v87
  %v324 = vunpack.c.l.b16 %v88
  %v325 = vunpack.c.h.b16 %v88
  %v326 = vpack.c.b16 %v190, %v182
  %v327 = vpack.c.b16 %v191, %v183
  %v328 = vpack.c.b16 %v192, %v184
  %v329 = vpack.c.b16 %v193, %v185
  %v330 = vpack.c.b16 %v194, %v186
  %v331 = vpack.c.b16 %v195, %v187
  %v332 = vpack.c.b16 %v196, %v188
  %v333 = vpack.c.b16 %v197, %v189
  %v334 = vpack.c.b16 %v206, %v198
  %v335 = vpack.c.b16 %v207, %v199
  %v336 = vpack.c.b16 %v208, %v200
  %v337 = vpack.c.b16 %v209, %v201
  %v338 = vpack.c.b16 %v210, %v202
  %v339 = vpack.c.b16 %v211, %v203
  %v340 = vpack.c.b16 %v212, %v204
  %v341 = vpack.c.b16 %v213, %v205
  %v342 = vpack.c.b16 %v222, %v214
  %v343 = vpack.c.b16 %v223, %v215
  %v344 = vpack.c.b16 %v224, %v216
  %v345 = vpack.c.b16 %v225, %v217
  %v346 = vpack.c.b16 %v226, %v218
  %v347 = vpack.c.b16 %v227, %v219
  %v348 = vpack.c.b16 %v228, %v220
  %v349 = vpack.c.b16 %v229, %v221
  %v350 = vpack.c.b16 %v238, %v230
  %v351 = vpack.c.b16 %v239, %v231
  %v352 = vpack.c.b16 %v240, %v232
  %v353 = vpack.c.b16 %v241, %v233
  %v354 = vpack.c.b16 %v242, %v234
  %v355 = vpack.c.b16 %v243, %v235
  %v356 = vpack.c.b16 %v244, %v236
  %v357 = vpack.c.b16 %v245, %v237
  %v358 = vpack.c.b16 %v254, %v246
  %v359 = vpack.c.b16 %v255, %v247
  %v360 = vpack.c.b16 %v256, %v248
  %v361 = vpack.c.b16 %v257, %v249
  %v362 = vpack.c.b16 %v258, %v250
  %v363 = vpack.c.b16 %v259, %v251
  %v364 = vpack.c.b16 %v260, %v252
  %v365 = vpack.c.b16 %v261, %v253
  %v366 = vpack.c.b16 %v270, %v262
  %v367 = vpack.c.b16 %v271, %v263
  %v368 = vpack.c.b16 %v272, %v264
  %v369 = vpack.c.b16 %v273, %v265
  %v370 = vpack.c.b16 %v274, %v266
  %v371 = vpack.c.b16 %v275, %v267
  %v372 = vpack.c.b16 %v276, %v268
  %v373 = vpack.c.b16 %v277, %v269
  %v374 = vpack.c.b16 %v286, %v278
  %v375 = vpack.c.b16 %v287, %v279
  %v376 = vpack.c.b16 %v288, %v280
  %v377 = vpack.c.b16 %v289, %v281
  %v378 = vpack.c.b16 %v290, %v282
  %v379 = vpack.c.b16 %v291, %v283
  %v380 = vpack.c.b16 %v292, %v284
  %v381 = vpack.c.b16 %v293, %v285
  %v382 = vpack.c.b16 %v302, %v294
  %v383 = vpack.c.b16 %v303, %v295
  %v384 = vpack.c.b16 %v304, %v296
  %v385 = vpack.c.b16 %v305, %v297
  %v386 = vpack.c.b16 %v306, %v298
  %v387 = vpack.c.b16 %v307, %v299
  %v388 = vpack.c.b16 %v308, %v300
  %v389 = vpack.c.b16 %v309, %v301
  %v390 = vpack.c.b16 %v318, %v310
  %v391 = vpack.c.b16 %v319, %v311
  %v392 = vpack.c.b16 %v320, %v312
  %v393 = vpack.c.b16 %v321, %v313
  %v394 = vpack.c.b16 %v322, %v314
  %v395 = vpack.c.b16 %v323, %v315
  %v396 = vpack.c.b16 %v324, %v316
  %v397 = vpack.c.b16 %v325, %v317
  %vm470 = vcmask 130048
  %v472 = vsel %vm470, %v108, 0
  %474 = vmatpush.bf16.msra.mxu0 %v382
  %475 = vmatpush.bf16.msra.mxu0 %v374
  %476 = vmatpush.bf16.msra.mxu0 %v366
  %477 = vmatpush.bf16.msra.mxu0 %v358
  %478 = vmatpush.bf16.msra.mxu0 %v350
  %479 = vmatpush.bf16.msra.mxu0 %v342
  %480 = vmatpush.bf16.msra.mxu0 %v334
  %481 = vmatpush.bf16.msra.mxu0 %v326
  %482 = vmatmul.bf16.gmra.mxu0 %v107
  %v483 = vpop.f32.mrf.mxu0
  %v484 = vadd.f32 %v94, %v483
  %v485 = vpop.f32.mrf.mxu0
  %v486 = vadd.f32 %v99, %v485
  %487 = vdwg.mxu0
  %488 = vmatpush.bf16.msra.mxu0 0
  %489 = vmatpush.bf16.msra.mxu0 0
  %490 = vmatpush.bf16.msra.mxu0 0
  %491 = vmatpush.bf16.msra.mxu0 0
  %492 = vmatpush.bf16.msra.mxu0 0
  %493 = vmatpush.bf16.msra.mxu0 0
  %494 = vmatpush.bf16.msra.mxu0 0
  %495 = vmatpush.bf16.msra.mxu0 %v390
  %496 = vmatmul.bf16.gmra.mxu0 %v472
  %v497 = vpop.f32.mrf.mxu0
  %v498 = vadd.f32 %v484, %v497
  %v499 = vpop.f32.mrf.mxu0
  %v500 = vadd.f32 %v486, %v499
  %501 = vdwg.mxu0
  %502 = vmatpush.bf16.msra.mxu0 %v383
  %503 = vmatpush.bf16.msra.mxu0 %v375
  %504 = vmatpush.bf16.msra.mxu0 %v367
  %505 = vmatpush.bf16.msra.mxu0 %v359
  %506 = vmatpush.bf16.msra.mxu0 %v351
  %507 = vmatpush.bf16.msra.mxu0 %v343
  %508 = vmatpush.bf16.msra.mxu0 %v335
  %509 = vmatpush.bf16.msra.mxu0 %v327
  %510 = vmatmul.bf16.gmra.mxu0 %v107
  %v511 = vpop.f32.mrf.mxu0
  %v512 = vadd.f32 %v94, %v511
  %v513 = vpop.f32.mrf.mxu0
  %v514 = vadd.f32 %v99, %v513
  %515 = vdwg.mxu0
  %516 = vmatpush.bf16.msra.mxu0 0
  %517 = vmatpush.bf16.msra.mxu0 0
  %518 = vmatpush.bf16.msra.mxu0 0
  %519 = vmatpush.bf16.msra.mxu0 0
  %520 = vmatpush.bf16.msra.mxu0 0
  %521 = vmatpush.bf16.msra.mxu0 0
  %522 = vmatpush.bf16.msra.mxu0 0
  %523 = vmatpush.bf16.msra.mxu0 %v391
  %524 = vmatmul.bf16.gmra.mxu0 %v472
  %v525 = vpop.f32.mrf.mxu0
  %v526 = vadd.f32 %v512, %v525
  %v527 = vpop.f32.mrf.mxu0
  %v528 = vadd.f32 %v514, %v527
  %529 = vdwg.mxu0
  %530 = vmatpush.bf16.msra.mxu0 %v384
  %531 = vmatpush.bf16.msra.mxu0 %v376
  %532 = vmatpush.bf16.msra.mxu0 %v368
  %533 = vmatpush.bf16.msra.mxu0 %v360
  %534 = vmatpush.bf16.msra.mxu0 %v352
  %535 = vmatpush.bf16.msra.mxu0 %v344
  %536 = vmatpush.bf16.msra.mxu0 %v336
  %537 = vmatpush.bf16.msra.mxu0 %v328
  %538 = vmatmul.bf16.gmra.mxu0 %v107
  %v539 = vpop.f32.mrf.mxu0
  %v540 = vadd.f32 %v94, %v539
  %v541 = vpop.f32.mrf.mxu0
  %v542 = vadd.f32 %v99, %v541
  %543 = vdwg.mxu0
  %544 = vmatpush.bf16.msra.mxu0 0
  %545 = vmatpush.bf16.msra.mxu0 0
  %546 = vmatpush.bf16.msra.mxu0 0
  %547 = vmatpush.bf16.msra.mxu0 0
  %548 = vmatpush.bf16.msra.mxu0 0
  %549 = vmatpush.bf16.msra.mxu0 0
  %550 = vmatpush.bf16.msra.mxu0 0
  %551 = vmatpush.bf16.msra.mxu0 %v392
  %552 = vmatmul.bf16.gmra.mxu0 %v472
  %v553 = vpop.f32.mrf.mxu0
  %v554 = vadd.f32 %v540, %v553
  %v555 = vpop.f32.mrf.mxu0
  %v556 = vadd.f32 %v542, %v555
  %557 = vdwg.mxu0
  %558 = vmatpush.bf16.msra.mxu0 %v385
  %559 = vmatpush.bf16.msra.mxu0 %v377
  %560 = vmatpush.bf16.msra.mxu0 %v369
  %561 = vmatpush.bf16.msra.mxu0 %v361
  %562 = vmatpush.bf16.msra.mxu0 %v353
  %563 = vmatpush.bf16.msra.mxu0 %v345
  %564 = vmatpush.bf16.msra.mxu0 %v337
  %565 = vmatpush.bf16.msra.mxu0 %v329
  %566 = vmatmul.bf16.gmra.mxu0 %v107
  %v567 = vpop.f32.mrf.mxu0
  %v568 = vadd.f32 %v94, %v567
  %v569 = vpop.f32.mrf.mxu0
  %v570 = vadd.f32 %v99, %v569
  %571 = vdwg.mxu0
  %572 = vmatpush.bf16.msra.mxu0 0
  %573 = vmatpush.bf16.msra.mxu0 0
  %574 = vmatpush.bf16.msra.mxu0 0
  %575 = vmatpush.bf16.msra.mxu0 0
  %576 = vmatpush.bf16.msra.mxu0 0
  %577 = vmatpush.bf16.msra.mxu0 0
  %578 = vmatpush.bf16.msra.mxu0 0
  %579 = vmatpush.bf16.msra.mxu0 %v393
  %580 = vmatmul.bf16.gmra.mxu0 %v472
  %v581 = vpop.f32.mrf.mxu0
  %v582 = vadd.f32 %v568, %v581
  %v583 = vpop.f32.mrf.mxu0
  %v584 = vadd.f32 %v570, %v583
  %585 = vdwg.mxu0
  %586 = vmatpush.bf16.msra.mxu0 %v386
  %587 = vmatpush.bf16.msra.mxu0 %v378
  %588 = vmatpush.bf16.msra.mxu0 %v370
  %589 = vmatpush.bf16.msra.mxu0 %v362
  %590 = vmatpush.bf16.msra.mxu0 %v354
  %591 = vmatpush.bf16.msra.mxu0 %v346
  %592 = vmatpush.bf16.msra.mxu0 %v338
  %593 = vmatpush.bf16.msra.mxu0 %v330
  %594 = vmatmul.bf16.gmra.mxu0 %v107
  %v595 = vpop.f32.mrf.mxu0
  %v596 = vadd.f32 %v94, %v595
  %v597 = vpop.f32.mrf.mxu0
  %v598 = vadd.f32 %v99, %v597
  %599 = vdwg.mxu0
  %600 = vmatpush.bf16.msra.mxu0 0
  %601 = vmatpush.bf16.msra.mxu0 0
  %602 = vmatpush.bf16.msra.mxu0 0
  %603 = vmatpush.bf16.msra.mxu0 0
  %604 = vmatpush.bf16.msra.mxu0 0
  %605 = vmatpush.bf16.msra.mxu0 0
  %606 = vmatpush.bf16.msra.mxu0 0
  %607 = vmatpush.bf16.msra.mxu0 %v394
  %608 = vmatmul.bf16.gmra.mxu0 %v472
  %v609 = vpop.f32.mrf.mxu0
  %v610 = vadd.f32 %v596, %v609
  %v611 = vpop.f32.mrf.mxu0
  %v612 = vadd.f32 %v598, %v611
  %613 = vdwg.mxu0
  %614 = vmatpush.bf16.msra.mxu0 %v387
  %615 = vmatpush.bf16.msra.mxu0 %v379
  %616 = vmatpush.bf16.msra.mxu0 %v371
  %617 = vmatpush.bf16.msra.mxu0 %v363
  %618 = vmatpush.bf16.msra.mxu0 %v355
  %619 = vmatpush.bf16.msra.mxu0 %v347
  %620 = vmatpush.bf16.msra.mxu0 %v339
  %621 = vmatpush.bf16.msra.mxu0 %v331
  %622 = vmatmul.bf16.gmra.mxu0 %v107
  %v623 = vpop.f32.mrf.mxu0
  %v624 = vadd.f32 %v94, %v623
  %v625 = vpop.f32.mrf.mxu0
  %v626 = vadd.f32 %v99, %v625
  %627 = vdwg.mxu0
  %628 = vmatpush.bf16.msra.mxu0 0
  %629 = vmatpush.bf16.msra.mxu0 0
  %630 = vmatpush.bf16.msra.mxu0 0
  %631 = vmatpush.bf16.msra.mxu0 0
  %632 = vmatpush.bf16.msra.mxu0 0
  %633 = vmatpush.bf16.msra.mxu0 0
  %634 = vmatpush.bf16.msra.mxu0 0
  %635 = vmatpush.bf16.msra.mxu0 %v395
  %636 = vmatmul.bf16.gmra.mxu0 %v472
  %v637 = vpop.f32.mrf.mxu0
  %v638 = vadd.f32 %v624, %v637
  %v639 = vpop.f32.mrf.mxu0
  %v640 = vadd.f32 %v626, %v639
  %641 = vdwg.mxu0
  %642 = vmatpush.bf16.msra.mxu0 %v388
  %643 = vmatpush.bf16.msra.mxu0 %v380
  %644 = vmatpush.bf16.msra.mxu0 %v372
  %645 = vmatpush.bf16.msra.mxu0 %v364
  %646 = vmatpush.bf16.msra.mxu0 %v356
  %647 = vmatpush.bf16.msra.mxu0 %v348
  %648 = vmatpush.bf16.msra.mxu0 %v340
  %649 = vmatpush.bf16.msra.mxu0 %v332
  %650 = vmatmul.bf16.gmra.mxu0 %v107
  %v651 = vpop.f32.mrf.mxu0
  %v652 = vadd.f32 %v94, %v651
  %v653 = vpop.f32.mrf.mxu0
  %v654 = vadd.f32 %v99, %v653
  %655 = vdwg.mxu0
  %656 = vmatpush.bf16.msra.mxu0 0
  %657 = vmatpush.bf16.msra.mxu0 0
  %658 = vmatpush.bf16.msra.mxu0 0
  %659 = vmatpush.bf16.msra.mxu0 0
  %660 = vmatpush.bf16.msra.mxu0 0
  %661 = vmatpush.bf16.msra.mxu0 0
  %662 = vmatpush.bf16.msra.mxu0 0
  %663 = vmatpush.bf16.msra.mxu0 %v396
  %664 = vmatmul.bf16.gmra.mxu0 %v472
  %v665 = vpop.f32.mrf.mxu0
  %v666 = vadd.f32 %v652, %v665
  %v667 = vpop.f32.mrf.mxu0
  %v668 = vadd.f32 %v654, %v667
  %669 = vdwg.mxu0
  %670 = vmatpush.bf16.msra.mxu0 %v389
  %671 = vmatpush.bf16.msra.mxu0 %v381
  %672 = vmatpush.bf16.msra.mxu0 %v373
  %673 = vmatpush.bf16.msra.mxu0 %v365
  %674 = vmatpush.bf16.msra.mxu0 %v357
  %675 = vmatpush.bf16.msra.mxu0 %v349
  %676 = vmatpush.bf16.msra.mxu0 %v341
  %677 = vmatpush.bf16.msra.mxu0 %v333
  %678 = vmatmul.bf16.gmra.mxu0 %v107
  %v679 = vpop.f32.mrf.mxu0
  %v680 = vadd.f32 %v94, %v679
  %v681 = vpop.f32.mrf.mxu0
  %v682 = vadd.f32 %v99, %v681
  %683 = vdwg.mxu0
  %684 = vmatpush.bf16.msra.mxu0 0
  %685 = vmatpush.bf16.msra.mxu0 0
  %686 = vmatpush.bf16.msra.mxu0 0
  %687 = vmatpush.bf16.msra.mxu0 0
  %688 = vmatpush.bf16.msra.mxu0 0
  %689 = vmatpush.bf16.msra.mxu0 0
  %690 = vmatpush.bf16.msra.mxu0 0
  %691 = vmatpush.bf16.msra.mxu0 %v397
  %692 = vmatmul.bf16.gmra.mxu0 %v472
  %v693 = vpop.f32.mrf.mxu0
  %v694 = vadd.f32 %v680, %v693
  %v695 = vpop.f32.mrf.mxu0
  %v696 = vadd.f32 %v682, %v695
  %697 = vdwg.mxu0
  %v698 = vpack.c.bf16 %v526, %v498
  %v699 = vpack.c.bf16 %v582, %v554
  %v700 = vpack.c.bf16 %v638, %v610
  %v701 = vpack.c.bf16 %v694, %v666
  %v702 = vpack.c.bf16 %v528, %v500
  %v703 = vpack.c.bf16 %v584, %v556
  %v704 = vpack.c.bf16 %v640, %v612
  %v705 = vpack.c.bf16 %v696, %v668
  %706 = vst [vmem:[%s3] sm:$0xff] %v698
  %707 = vst [vmem:[%s3 + $0x8] sm:$0xff] %v699
  %708 = vst [vmem:[%s3 + $0x10] sm:$0xff] %v700
  %709 = vst [vmem:[%s3 + $0x18] sm:$0xff] %v701
  %710 = vst [vmem:[%s3 + $0x20] sm:$0xff] %v702
  %711 = vst [vmem:[%s3 + $0x28] sm:$0xff] %v703
  %712 = vst [vmem:[%s3 + $0x30] sm:$0xff] %v704
  %713 = vst [vmem:[%s3 + $0x38] sm:$0xff] %v705
  // Predicated region
  $region14: #{_lambda_.10} parent=0 // pred_check
    _
  $region15: #{_lambda_.10} parent=0 // pred_check_branch
    %715 = sbr.rel (0) target = $region17
  $region16: #{_lambda_.10} parent=0 // pred_region
    _
  $region17: #{_lambda_.10} parent=0 // pred_fallthru
    _
  // Predicated region
  $region18: #{_lambda_.10} parent=0 // pred_check
    _
  $region19: #{_lambda_.10} parent=0 // pred_check_branch
    %717 = sbr.rel (0) target = $region21
  $region20: #{_lambda_.10} parent=0 // pred_region
    _
  $region21: #{_lambda_.10} parent=0 // pred_fallthru
    _

// kernel: _lambda_.11
$region0: #{_lambda_.11}
  #allocation0 [shape = 'u32[]', space=smem, size = 0x4, offset = 0x4, fixed_abs, tag = 'smem constant byte address 0x4 - core index']
  #allocation1 [shape = 'u32[72,128]{1,0:T(1,128)}', space=vmem, size = 0x9000, scoped, tag = 'internal scratch']
  %s0 = inlined_call_operand.vmem [shape: bf16[1,72,4096], index: 0, kind: input, shape index: {}]
  %s1 = inlined_call_operand.vmem [shape: bf16[12,72], index: 1, kind: input, shape index: {}]
  %s2 = inlined_call_operand.vmem [shape: f32[12,1], index: 2, kind: input, shape index: {}]
  %s3 = inlined_call_operand.vmem [shape: f32[1,12,4096], index: 3, kind: output, shape index: {}]
  %s4 = sld [smem:[#allocation0]]
  $region87: #{_lambda_.11} parent=0
    _
  %s6 = ssub.s32 1, %s4
  %s7 = scalar_select 0, %s6, %s4
  $region1: #{_lambda_.11} parent=0
    #allocation2 [shape = 'u8[294912]{0}', space=vmem, size = 0x48000, scoped, tag = 'input window, operand 0']
    #allocation3 [shape = 'u8[131072]{0}', space=vmem, size = 0x20000, scoped, tag = 'output window, operand 0']
    loop: start=0, step=1, limit=6
    $region2: #{_lambda_.11} parent=1 // loop_pre_header
      _
    $region3: #{_lambda_.11} parent=1 // loop_header
      %s9 = sphi 0, %s13
      %p10 = scmp.ge.s32.totalorder %s9, 6
      %s16 = sphi 0, %s28
      %s17 = sphi 0, %s24
      %s18 = sphi 0, %s16
      %s19 = sphi 0, %s17
      %s20 = sphi 0, %s18
      %s21 = sphi 0, %s19
      %s33 = sphi 0, %s35
      %s36 = sphi 0, %s33
      %s37 = sphi 0, %s36
      %s53 = sphi 0, %s37
      %s57 = sphi 0, %s57
      %s59 = sphi 0, %s57
      %s60 = sphi 0, %s59
      %s74 = sphi 0, %s60
      %s78 = sphi 0, %s78
      %s80 = sphi 0, %s78
      %s81 = sphi 0, %s80
      %s95 = sphi 0, %s81
      %s103 = sphi 0, %s105
      %s106 = sphi 0, %s103
      %s107 = sphi 0, %s106
      %s123 = sphi 0, %s107
    $region4: #{_lambda_.11} parent=1 // loop_header_branch
      %12 = sbr.rel (%p10) target = $region8
    $region5: #{_lambda_.11} parent=1 // loop_body
      %s14 = ssub.s32 %s9, 1
      %s15 = ssub.s32 %s9, 2
      %s22 = sadd.s32 1, %s17
      %p23 = scmp.ge.s32.totalorder %s22, 4
      %s24 = scalar_select %p23, 0, %s22
      %s25 = sadd.s32 1, %s16
      %s26 = scalar_select %p23, %s25, %s16
      %p27 = scmp.ge.s32.totalorder %s26, 1
      %s28 = scalar_select %p27, 0, %s26
      %s29 = ssub.s32 %s16, %s28
      %s30 = ssub.s32 %s17, %s24
      %s31 = sor.u32 %s29, %s30
      %p32 = scmp.eq.s32.totalorder %s31, 0
      %s34 = sadd.s32 %s33, 1
      %s35 = scalar_select %p32, %s33, %s34
      %p38 = pneg %p32
      %p39 = scmp.eq.s32.totalorder %s9, 3
      %p40 = por %p38, %p39
      %p41 = scmp.ne.s32.totalorder %s33, %s36
      %p42 = scmp.eq.s32.totalorder %s9, 0
      %p43 = por %p41, %p42
      %p44 = scmp.ne.s32.totalorder %s33, %s36
      %p45 = scmp.eq.s32.totalorder %s14, 3
      %p46 = por %p44, %p45
      %p47 = scmp.ne.s32.totalorder %s36, %s37
      %p48 = scmp.eq.s32.totalorder %s14, 0
      %p49 = por %p47, %p48
      %p50 = scmp.ne.s32.totalorder %s36, %s37
      %p51 = scmp.eq.s32.totalorder %s15, 3
      %p52 = por %p50, %p51
      %p54 = scmp.ne.s32.totalorder %s37, %s53
      %p55 = scmp.eq.s32.totalorder %s15, 0
      %p56 = por %p54, %p55
      %s58 = sadd.s32 %s57, 1
      %p61 = scmp.eq.s32.totalorder %s9, 3
      %p62 = scmp.ne.s32.totalorder %s57, %s59
      %p63 = scmp.eq.s32.totalorder %s9, 0
      %p64 = por %p62, %p63
      %p65 = scmp.ne.s32.totalorder %s57, %s59
      %p66 = scmp.eq.s32.totalorder %s14, 3
      %p67 = por %p65, %p66
      %p68 = scmp.ne.s32.totalorder %s59, %s60
      %p69 = scmp.eq.s32.totalorder %s14, 0
      %p70 = por %p68, %p69
      %p71 = scmp.ne.s32.totalorder %s59, %s60
      %p72 = scmp.eq.s32.totalorder %s15, 3
      %p73 = por %p71, %p72
      %p75 = scmp.ne.s32.totalorder %s60, %s74
      %p76 = scmp.eq.s32.totalorder %s15, 0
      %p77 = por %p75, %p76
      %s79 = sadd.s32 %s78, 1
      %p82 = scmp.eq.s32.totalorder %s9, 3
      %p83 = scmp.ne.s32.totalorder %s78, %s80
      %p84 = scmp.eq.s32.totalorder %s9, 0
      %p85 = por %p83, %p84
      %p86 = scmp.ne.s32.totalorder %s78, %s80
      %p87 = scmp.eq.s32.totalorder %s14, 3
      %p88 = por %p86, %p87
      %p89 = scmp.ne.s32.totalorder %s80, %s81
      %p90 = scmp.eq.s32.totalorder %s14, 0
      %p91 = por %p89, %p90
      %p92 = scmp.ne.s32.totalorder %s80, %s81
      %p93 = scmp.eq.s32.totalorder %s15, 3
      %p94 = por %p92, %p93
      %p96 = scmp.ne.s32.totalorder %s81, %s95
      %p97 = scmp.eq.s32.totalorder %s15, 0
      %p98 = por %p96, %p97
      %s99 = ssub.s32 %s16, %s28
      %s100 = ssub.s32 %s17, %s24
      %s101 = sor.u32 %s99, %s100
      %p102 = scmp.eq.s32.totalorder %s101, 0
      %s104 = sadd.s32 %s103, 1
      %s105 = scalar_select %p102, %s103, %s104
      %p108 = pneg %p102
      %p109 = scmp.eq.s32.totalorder %s9, 3
      %p110 = por %p108, %p109
      %p111 = scmp.ne.s32.totalorder %s103, %s106
      %p112 = scmp.eq.s32.totalorder %s9, 0
      %p113 = por %p111, %p112
      %p114 = scmp.ne.s32.totalorder %s103, %s106
      %p115 = scmp.eq.s32.totalorder %s14, 3
      %p116 = por %p114, %p115
      %p117 = scmp.ne.s32.totalorder %s106, %s107
      %p118 = scmp.eq.s32.totalorder %s14, 0
      %p119 = por %p117, %p118
      %p120 = scmp.ne.s32.totalorder %s106, %s107
      %p121 = scmp.eq.s32.totalorder %s15, 3
      %p122 = por %p120, %p121
      %p124 = scmp.ne.s32.totalorder %s107, %s123
      %p125 = scmp.eq.s32.totalorder %s15, 0
      %p126 = por %p124, %p125
      %p127 = scmp.le.s32.totalorder 1, %s9
      %p128 = scmp.lt.s32.totalorder %s9, 5
      %p129 = pnand %p127, %p128
      %p130 = pneg %p129
      // Predicated region
      $region9: #{_lambda_.11} parent=5 // pred_check
        _
      $region10: #{_lambda_.11} parent=5 // pred_check_branch
        %132 = sbr.rel (%p129) target = $region12
      $region11: #{_lambda_.11} parent=5 // pred_region
        %s133 = ssub.s32 %s9, 1
        // Predicated region
        $region13: #{_lambda_.11} parent=11 // pred_check
          %p134 = pneg %p70
        $region14: #{_lambda_.11} parent=11 // pred_check_branch
          %136 = sbr.rel (%p134) target = $region16
        $region15: #{_lambda_.11} parent=11 // pred_region
          _
        $region16: #{_lambda_.11} parent=11 // pred_fallthru
          _
        // Predicated region
        $region17: #{_lambda_.11} parent=11 // pred_check
          %p137 = pneg %p91
        $region18: #{_lambda_.11} parent=11 // pred_check_branch
          %139 = sbr.rel (%p137) target = $region20
        $region19: #{_lambda_.11} parent=11 // pred_region
          _
        $region20: #{_lambda_.11} parent=11 // pred_fallthru
          _
      $region12: #{_lambda_.11} parent=5 // pred_fallthru
        _
      %p140 = scmp.lt.s32.totalorder %s9, 4
      // Predicated region
      $region21: #{_lambda_.11} parent=5 // pred_check
        %p141 = pneg %p140
      $region22: #{_lambda_.11} parent=5 // pred_check_branch
        %143 = sbr.rel (%p141) target = $region24
      $region23: #{_lambda_.11} parent=5 // pred_region
        // Predicated region
        $region25: #{_lambda_.11} parent=23 // pred_check
          %p144 = pneg %p43
        $region26: #{_lambda_.11} parent=23 // pred_check_branch
          %146 = sbr.rel (%p144) target = $region28
        $region27: #{_lambda_.11} parent=23 // pred_region
          %s147 = sand.u32 %s33, 1
          %s148 = sand.u32 %s33, 1
          %s149 = smul.addr %s148, 288
          %s150 = scalar_lea.vmem [#allocation2], %s149
          %s151 = smul.u32 8, %s17
          %s152 = smul.addr %s16, 288
          %s153 = sadd.s32 %s151, %s152
          %s154 = smul.addr %s153, 4
          %s155 = scalar_lea.vmem %s0, %s154
          // Predicated region
          $region29: #{_lambda_.11} parent=27 // pred_check
            _
          $region30: #{_lambda_.11} parent=27 // pred_check_branch
            %157 = sbr.rel (0) target = $region32
          $region31: #{_lambda_.11} parent=27 // pred_region
            // Predicated region
            $region33: #{_lambda_.11} parent=31 // pred_check
              _
            $region34: #{_lambda_.11} parent=31 // pred_check_branch
              %159 = sbr.rel (0) target = $region36
            $region35: #{_lambda_.11} parent=31 // pred_region
              loop: start=0, step=1, limit=1
              $region37: #{_lambda_.11} parent=35 // loop_pre_header
                _
              $region38: #{_lambda_.11} parent=35 // loop_header
                %s161 = sphi 0, %s165
                %p162 = scmp.ge.s32.totalorder %s161, 1
                %s166 = sphi %s155, %s155
                %s167 = sphi %s150, %s150
              $region39: #{_lambda_.11} parent=35 // loop_header_branch
                %164 = sbr.rel (%p162) target = $region43
              $region40: #{_lambda_.11} parent=35 // loop_body
                %v168 = vld [vmem:[%s166] sm:$0xff]
                %169 = vst [vmem:[%s167] sm:$0xff] %v168
                %v170 = vld [vmem:[%s166 + $0x8] sm:$0xff]
                %171 = vst [vmem:[%s167 + $0x8] sm:$0xff] %v170
                %v172 = vld [vmem:[%s166 + $0x10] sm:$0xff]
                %173 = vst [vmem:[%s167 + $0x10] sm:$0xff] %v172
                %v174 = vld [vmem:[%s166 + $0x18] sm:$0xff]
                %175 = vst [vmem:[%s167 + $0x18] sm:$0xff] %v174
                %v176 = vld [vmem:[%s166 + $0x80] sm:$0xff]
                %177 = vst [vmem:[%s167 + $0x20] sm:$0xff] %v176
                %v178 = vld [vmem:[%s166 + $0x88] sm:$0xff]
                %179 = vst [vmem:[%s167 + $0x28] sm:$0xff] %v178
                %v180 = vld [vmem:[%s166 + $0x90] sm:$0xff]
                %181 = vst [vmem:[%s167 + $0x30] sm:$0xff] %v180
                %v182 = vld [vmem:[%s166 + $0x98] sm:$0xff]
                %183 = vst [vmem:[%s167 + $0x38] sm:$0xff] %v182
                %v184 = vld [vmem:[%s166 + $0x100] sm:$0xff]
                %185 = vst [vmem:[%s167 + $0x40] sm:$0xff] %v184
                %v186 = vld [vmem:[%s166 + $0x108] sm:$0xff]
                %187 = vst [vmem:[%s167 + $0x48] sm:$0xff] %v186
                %v188 = vld [vmem:[%s166 + $0x110] sm:$0xff]
                %189 = vst [vmem:[%s167 + $0x50] sm:$0xff] %v188
                %v190 = vld [vmem:[%s166 + $0x118] sm:$0xff]
                %191 = vst [vmem:[%s167 + $0x58] sm:$0xff] %v190
                %v192 = vld [vmem:[%s166 + $0x180] sm:$0xff]
                %193 = vst [vmem:[%s167 + $0x60] sm:$0xff] %v192
                %v194 = vld [vmem:[%s166 + $0x188] sm:$0xff]
                %195 = vst [vmem:[%s167 + $0x68] sm:$0xff] %v194
                %v196 = vld [vmem:[%s166 + $0x190] sm:$0xff]
                %197 = vst [vmem:[%s167 + $0x70] sm:$0xff] %v196
                %v198 = vld [vmem:[%s166 + $0x198] sm:$0xff]
                %199 = vst [vmem:[%s167 + $0x78] sm:$0xff] %v198
                %v200 = vld [vmem:[%s166 + $0x200] sm:$0xff]
                %201 = vst [vmem:[%s167 + $0x80] sm:$0xff] %v200
                %v202 = vld [vmem:[%s166 + $0x208] sm:$0xff]
                %203 = vst [vmem:[%s167 + $0x88] sm:$0xff] %v202
                %v204 = vld [vmem:[%s166 + $0x210] sm:$0xff]
                %205 = vst [vmem:[%s167 + $0x90] sm:$0xff] %v204
                %v206 = vld [vmem:[%s166 + $0x218] sm:$0xff]
                %207 = vst [vmem:[%s167 + $0x98] sm:$0xff] %v206
                %v208 = vld [vmem:[%s166 + $0x280] sm:$0xff]
                %209 = vst [vmem:[%s167 + $0xa0] sm:$0xff] %v208
                %v210 = vld [vmem:[%s166 + $0x288] sm:$0xff]
                %211 = vst [vmem:[%s167 + $0xa8] sm:$0xff] %v210
                %v212 = vld [vmem:[%s166 + $0x290] sm:$0xff]
                %213 = vst [vmem:[%s167 + $0xb0] sm:$0xff] %v212
                %v214 = vld [vmem:[%s166 + $0x298] sm:$0xff]
                %215 = vst [vmem:[%s167 + $0xb8] sm:$0xff] %v214
                %v216 = vld [vmem:[%s166 + $0x300] sm:$0xff]
                %217 = vst [vmem:[%s167 + $0xc0] sm:$0xff] %v216
                %v218 = vld [vmem:[%s166 + $0x308] sm:$0xff]
                %219 = vst [vmem:[%s167 + $0xc8] sm:$0xff] %v218
                %v220 = vld [vmem:[%s166 + $0x310] sm:$0xff]
                %221 = vst [vmem:[%s167 + $0xd0] sm:$0xff] %v220
                %v222 = vld [vmem:[%s166 + $0x318] sm:$0xff]
                %223 = vst [vmem:[%s167 + $0xd8] sm:$0xff] %v222
                %v224 = vld [vmem:[%s166 + $0x380] sm:$0xff]
                %225 = vst [vmem:[%s167 + $0xe0] sm:$0xff] %v224
                %v226 = vld [vmem:[%s166 + $0x388] sm:$0xff]
                %227 = vst [vmem:[%s167 + $0xe8] sm:$0xff] %v226
                %v228 = vld [vmem:[%s166 + $0x390] sm:$0xff]
                %229 = vst [vmem:[%s167 + $0xf0] sm:$0xff] %v228
                %v230 = vld [vmem:[%s166 + $0x398] sm:$0xff]
                %231 = vst [vmem:[%s167 + $0xf8] sm:$0xff] %v230
                %v232 = vld [vmem:[%s166 + $0x400] sm:$0xff]
                %233 = vst [vmem:[%s167 + $0x100] sm:$0xff] %v232
                %v234 = vld [vmem:[%s166 + $0x408] sm:$0xff]
                %235 = vst [vmem:[%s167 + $0x108] sm:$0xff] %v234
                %v236 = vld [vmem:[%s166 + $0x410] sm:$0xff]
                %237 = vst [vmem:[%s167 + $0x110] sm:$0xff] %v236
                %v238 = vld [vmem:[%s166 + $0x418] sm:$0xff]
                %239 = vst [vmem:[%s167 + $0x118] sm:$0xff] %v238
              $region41: #{_lambda_.11} parent=35 // loop_footer
                %s165 = sadd.s32 1, %s161
              $region42: #{_lambda_.11} parent=35 // loop_footer_branch
                %160 = sbr.rel target = $region38
              $region43: #{_lambda_.11} parent=35 // loop_exit
                _
            $region36: #{_lambda_.11} parent=31 // pred_fallthru
              _
            // Predicated region
            $region44: #{_lambda_.11} parent=31 // pred_check
              _
            $region45: #{_lambda_.11} parent=31 // pred_check_branch
              %241 = sbr.rel target = $region47
            $region46: #{_lambda_.11} parent=31 // pred_region
              _
            $region47: #{_lambda_.11} parent=31 // pred_fallthru
              _
          $region32: #{_lambda_.11} parent=27 // pred_fallthru
            _
          %242 = vnop
        $region28: #{_lambda_.11} parent=23 // pred_fallthru
          _
      $region24: #{_lambda_.11} parent=5 // pred_fallthru
        _
      %p243 = scmp.le.s32.totalorder 1, %s9
      %p244 = scmp.lt.s32.totalorder %s9, 5
      %p245 = pnand %p243, %p244
      %p246 = pneg %p245
      // Predicated region
      $region48: #{_lambda_.11} parent=5 // pred_check
        _
      $region49: #{_lambda_.11} parent=5 // pred_check_branch
        %248 = sbr.rel (%p245) target = $region51
      $region50: #{_lambda_.11} parent=5 // pred_region
        %s249 = ssub.s32 %s9, 1
        %s250 = sand.u32 %s36, 1
        %s251 = sand.u32 %s36, 1
        %s252 = smul.addr %s251, 288
        %s253 = scalar_lea.vmem [#allocation2], %s252
        // Predicated region
        $region52: #{_lambda_.11} parent=50 // pred_check
          %p254 = pneg %p49
        $region53: #{_lambda_.11} parent=50 // pred_check_branch
          %256 = sbr.rel (%p254) target = $region55
        $region54: #{_lambda_.11} parent=50 // pred_region
          _
        $region55: #{_lambda_.11} parent=50 // pred_fallthru
          _
        %s257 = sand.u32 %s36, 1
        %s258 = sand.u32 %s36, 1
        %s259 = smul.addr %s258, 288
        %s260 = scalar_lea.vmem [#allocation2], %s259
        %p261 = pneg %p49
        %p262 = pneg %p46
        %p263 = pneg %p70
        %p264 = pneg %p67
        %p265 = pneg %p91
        %p266 = pneg %p88
        %p267 = pneg %p119
        %p268 = pneg %p116
        %s269 = sand.u32 %s106, 1
        %s270 = sand.u32 %s106, 1
        %s271 = smul.addr %s270, 128
        %s272 = scalar_lea.vmem [#allocation3], %s271
        %s273 = smul.u32 8, %s19
        %s274 = smul.u32 8, %s19
        %v276 = vld [vmem:[%s1] sm:$0xf]
        %v277 = vld [vmem:[%s1 + $0x4] sm:$0x3]
        %v278 = vld [vmem:[%s253] sm:$0xff]
        %v279 = vld [vmem:[%s253 + $0x8] sm:$0xff]
        %v280 = vld [vmem:[%s253 + $0x10] sm:$0xff]
        %v281 = vld [vmem:[%s253 + $0x18] sm:$0xff]
        %v282 = vld [vmem:[%s253 + $0x20] sm:$0xff]
        %v283 = vld [vmem:[%s253 + $0x28] sm:$0xff]
        %v284 = vld [vmem:[%s253 + $0x30] sm:$0xff]
        %v285 = vld [vmem:[%s253 + $0x38] sm:$0xff]
        %v286 = vld [vmem:[%s253 + $0x40] sm:$0xff]
        %v287 = vld [vmem:[%s253 + $0x48] sm:$0xff]
        %v288 = vld [vmem:[%s253 + $0x50] sm:$0xff]
        %v289 = vld [vmem:[%s253 + $0x58] sm:$0xff]
        %v290 = vld [vmem:[%s253 + $0x60] sm:$0xff]
        %v291 = vld [vmem:[%s253 + $0x68] sm:$0xff]
        %v292 = vld [vmem:[%s253 + $0x70] sm:$0xff]
        %v293 = vld [vmem:[%s253 + $0x78] sm:$0xff]
        %v294 = vld [vmem:[%s253 + $0x80] sm:$0xff]
        %v295 = vld [vmem:[%s253 + $0x88] sm:$0xff]
        %v296 = vld [vmem:[%s253 + $0x90] sm:$0xff]
        %v297 = vld [vmem:[%s253 + $0x98] sm:$0xff]
        %v298 = vld [vmem:[%s253 + $0xa0] sm:$0xff]
        %v299 = vld [vmem:[%s253 + $0xa8] sm:$0xff]
        %v300 = vld [vmem:[%s253 + $0xb0] sm:$0xff]
        %v301 = vld [vmem:[%s253 + $0xb8] sm:$0xff]
        %v302 = vld [vmem:[%s253 + $0xc0] sm:$0xff]
        %v303 = vld [vmem:[%s253 + $0xc8] sm:$0xff]
        %v304 = vld [vmem:[%s253 + $0xd0] sm:$0xff]
        %v305 = vld [vmem:[%s253 + $0xd8] sm:$0xff]
        %v306 = vld [vmem:[%s253 + $0xe0] sm:$0xff]
        %v307 = vld [vmem:[%s253 + $0xe8] sm:$0xff]
        %v308 = vld [vmem:[%s253 + $0xf0] sm:$0xff]
        %v309 = vld [vmem:[%s253 + $0xf8] sm:$0xff]
        %v310 = vld [vmem:[%s253 + $0x100] sm:$0xff]
        %v311 = vld [vmem:[%s253 + $0x108] sm:$0xff]
        %v312 = vld [vmem:[%s253 + $0x110] sm:$0xff]
        %v313 = vld [vmem:[%s253 + $0x118] sm:$0xff]
        %v314 = vld [vmem:[%s2] sm:$0xff]
        %v315 = vld [vmem:[%s2 + $0x8] sm:$0xf]
        %317 = vset.pattern.permute.xlu0 0
        %318 = vperm.xlu0 %317, %v314
        %v319 = vpop.permute.xlu0 %318
        %322 = vset.pattern.permute.xlu0 0
        %323 = vperm.xlu0 %322, %v315
        %v324 = vpop.permute.xlu0 %323
        %v328 = vunpack.c.l.b16 %v276
        %v329 = vunpack.c.l.b16 %v277
        %v330 = vpack.c.b16 %v329, %v328
        %v367 = vunpack.c.l.b16 %v278
        %v368 = vunpack.c.h.b16 %v278
        %v369 = vunpack.c.l.b16 %v279
        %v370 = vunpack.c.h.b16 %v279
        %v371 = vunpack.c.l.b16 %v280
        %v372 = vunpack.c.h.b16 %v280
        %v373 = vunpack.c.l.b16 %v281
        %v374 = vunpack.c.h.b16 %v281
        %v375 = vunpack.c.l.b16 %v282
        %v376 = vunpack.c.h.b16 %v282
        %v377 = vunpack.c.l.b16 %v283
        %v378 = vunpack.c.h.b16 %v283
        %v379 = vunpack.c.l.b16 %v284
        %v380 = vunpack.c.h.b16 %v284
        %v381 = vunpack.c.l.b16 %v285
        %v382 = vunpack.c.h.b16 %v285
        %v383 = vunpack.c.l.b16 %v286
        %v384 = vunpack.c.h.b16 %v286
        %v385 = vunpack.c.l.b16 %v287
        %v386 = vunpack.c.h.b16 %v287
        %v387 = vunpack.c.l.b16 %v288
        %v388 = vunpack.c.h.b16 %v288
        %v389 = vunpack.c.l.b16 %v289
        %v390 = vunpack.c.h.b16 %v289
        %v391 = vunpack.c.l.b16 %v290
        %v392 = vunpack.c.h.b16 %v290
        %v393 = vunpack.c.l.b16 %v291
        %v394 = vunpack.c.h.b16 %v291
        %v395 = vunpack.c.l.b16 %v292
        %v396 = vunpack.c.h.b16 %v292
        %v397 = vunpack.c.l.b16 %v293
        %v398 = vunpack.c.h.b16 %v293
        %v399 = vunpack.c.l.b16 %v294
        %v400 = vunpack.c.h.b16 %v294
        %v401 = vunpack.c.l.b16 %v295
        %v402 = vunpack.c.h.b16 %v295
        %v403 = vunpack.c.l.b16 %v296
        %v404 = vunpack.c.h.b16 %v296
        %v405 = vunpack.c.l.b16 %v297
        %v406 = vunpack.c.h.b16 %v297
        %v407 = vunpack.c.l.b16 %v298
        %v408 = vunpack.c.h.b16 %v298
        %v409 = vunpack.c.l.b16 %v299
        %v410 = vunpack.c.h.b16 %v299
        %v411 = vunpack.c.l.b16 %v300
        %v412 = vunpack.c.h.b16 %v300
        %v413 = vunpack.c.l.b16 %v301
        %v414 = vunpack.c.h.b16 %v301
        %v415 = vunpack.c.l.b16 %v302
        %v416 = vunpack.c.h.b16 %v302
        %v417 = vunpack.c.l.b16 %v303
        %v418 = vunpack.c.h.b16 %v303
        %v419 = vunpack.c.l.b16 %v304
        %v420 = vunpack.c.h.b16 %v304
        %v421 = vunpack.c.l.b16 %v305
        %v422 = vunpack.c.h.b16 %v305
        %v423 = vunpack.c.l.b16 %v306
        %v424 = vunpack.c.h.b16 %v306
        %v425 = vunpack.c.l.b16 %v307
        %v426 = vunpack.c.h.b16 %v307
        %v427 = vunpack.c.l.b16 %v308
        %v428 = vunpack.c.h.b16 %v308
        %v429 = vunpack.c.l.b16 %v309
        %v430 = vunpack.c.h.b16 %v309
        %v431 = vunpack.c.l.b16 %v310
        %v432 = vunpack.c.h.b16 %v310
        %v433 = vunpack.c.l.b16 %v311
        %v434 = vunpack.c.h.b16 %v311
        %v435 = vunpack.c.l.b16 %v312
        %v436 = vunpack.c.h.b16 %v312
        %v437 = vunpack.c.l.b16 %v313
        %v438 = vunpack.c.h.b16 %v313
        %v439 = vpack.c.b16 %v375, %v367
        %v440 = vpack.c.b16 %v376, %v368
        %v441 = vpack.c.b16 %v377, %v369
        %v442 = vpack.c.b16 %v378, %v370
        %v443 = vpack.c.b16 %v379, %v371
        %v444 = vpack.c.b16 %v380, %v372
        %v445 = vpack.c.b16 %v381, %v373
        %v446 = vpack.c.b16 %v382, %v374
        %v447 = vpack.c.b16 %v391, %v383
        %v448 = vpack.c.b16 %v392, %v384
        %v449 = vpack.c.b16 %v393, %v385
        %v450 = vpack.c.b16 %v394, %v386
        %v451 = vpack.c.b16 %v395, %v387
        %v452 = vpack.c.b16 %v396, %v388
        %v453 = vpack.c.b16 %v397, %v389
        %v454 = vpack.c.b16 %v398, %v390
        %v455 = vpack.c.b16 %v407, %v399
        %v456 = vpack.c.b16 %v408, %v400
        %v457 = vpack.c.b16 %v409, %v401
        %v458 = vpack.c.b16 %v410, %v402
        %v459 = vpack.c.b16 %v411, %v403
        %v460 = vpack.c.b16 %v412, %v404
        %v461 = vpack.c.b16 %v413, %v405
        %v462 = vpack.c.b16 %v414, %v406
        %v463 = vpack.c.b16 %v423, %v415
        %v464 = vpack.c.b16 %v424, %v416
        %v465 = vpack.c.b16 %v425, %v417
        %v466 = vpack.c.b16 %v426, %v418
        %v467 = vpack.c.b16 %v427, %v419
        %v468 = vpack.c.b16 %v428, %v420
        %v469 = vpack.c.b16 %v429, %v421
        %v470 = vpack.c.b16 %v430, %v422
        %v471 = vpack.c.b16 %v431, %v431
        %v472 = vpack.c.b16 %v432, %v432
        %v473 = vpack.c.b16 %v433, %v433
        %v474 = vpack.c.b16 %v434, %v434
        %v475 = vpack.c.b16 %v435, %v435
        %v476 = vpack.c.b16 %v436, %v436
        %v477 = vpack.c.b16 %v437, %v437
        %v478 = vpack.c.b16 %v438, %v438
        %vm511 = vcmask 588800
        %v513 = vsel %vm511, %v330, 0
        %vm515 = vcmask 1043456
        %v517 = vsel %vm515, %v471, 0
        %v520 = vsel %vm515, %v472, 0
        %v523 = vsel %vm515, %v473, 0
        %v526 = vsel %vm515, %v474, 0
        %v529 = vsel %vm515, %v475, 0
        %v532 = vsel %vm515, %v476, 0
        %v535 = vsel %vm515, %v477, 0
        %v538 = vsel %vm515, %v478, 0
        %540 = vmatpush.bf16.msra.mxu0 0
        %541 = vmatpush.bf16.msra.mxu0 0
        %542 = vmatpush.bf16.msra.mxu0 0
        %543 = vmatpush.bf16.msra.mxu0 %v517
        %544 = vmatpush.bf16.msra.mxu0 %v463
        %545 = vmatpush.bf16.msra.mxu0 %v455
        %546 = vmatpush.bf16.msra.mxu0 %v447
        %547 = vmatpush.bf16.msra.mxu0 %v439
        %548 = vmatmul.bf16.gmra.mxu0 %v513
        %v549 = vpop.f32.mrf.mxu0
        %v550 = vadd.f32 %v319, %v549
        %v551 = vpop.f32.mrf.mxu0
        %v552 = vadd.f32 %v324, %v551
        %553 = vdwg.mxu0
        %554 = vmatpush.bf16.msra.mxu0 0
        %555 = vmatpush.bf16.msra.mxu0 0
        %556 = vmatpush.bf16.msra.mxu0 0
        %557 = vmatpush.bf16.msra.mxu0 %v520
        %558 = vmatpush.bf16.msra.mxu0 %v464
        %559 = vmatpush.bf16.msra.mxu0 %v456
        %560 = vmatpush.bf16.msra.mxu0 %v448
        %561 = vmatpush.bf16.msra.mxu0 %v440
        %562 = vmatmul.bf16.gmra.mxu0 %v513
        %v563 = vpop.f32.mrf.mxu0
        %v564 = vadd.f32 %v319, %v563
        %v565 = vpop.f32.mrf.mxu0
        %v566 = vadd.f32 %v324, %v565
        %567 = vdwg.mxu0
        %568 = vmatpush.bf16.msra.mxu0 0
        %569 = vmatpush.bf16.msra.mxu0 0
        %570 = vmatpush.bf16.msra.mxu0 0
        %571 = vmatpush.bf16.msra.mxu0 %v523
        %572 = vmatpush.bf16.msra.mxu0 %v465
        %573 = vmatpush.bf16.msra.mxu0 %v457
        %574 = vmatpush.bf16.msra.mxu0 %v449
        %575 = vmatpush.bf16.msra.mxu0 %v441
        %576 = vmatmul.bf16.gmra.mxu0 %v513
        %v577 = vpop.f32.mrf.mxu0
        %v578 = vadd.f32 %v319, %v577
        %v579 = vpop.f32.mrf.mxu0
        %v580 = vadd.f32 %v324, %v579
        %581 = vdwg.mxu0
        %582 = vmatpush.bf16.msra.mxu0 0
        %583 = vmatpush.bf16.msra.mxu0 0
        %584 = vmatpush.bf16.msra.mxu0 0
        %585 = vmatpush.bf16.msra.mxu0 %v526
        %586 = vmatpush.bf16.msra.mxu0 %v466
        %587 = vmatpush.bf16.msra.mxu0 %v458
        %588 = vmatpush.bf16.msra.mxu0 %v450
        %589 = vmatpush.bf16.msra.mxu0 %v442
        %590 = vmatmul.bf16.gmra.mxu0 %v513
        %v591 = vpop.f32.mrf.mxu0
        %v592 = vadd.f32 %v319, %v591
        %v593 = vpop.f32.mrf.mxu0
        %v594 = vadd.f32 %v324, %v593
        %595 = vdwg.mxu0
        %596 = vmatpush.bf16.msra.mxu0 0
        %597 = vmatpush.bf16.msra.mxu0 0
        %598 = vmatpush.bf16.msra.mxu0 0
        %599 = vmatpush.bf16.msra.mxu0 %v529
        %600 = vmatpush.bf16.msra.mxu0 %v467
        %601 = vmatpush.bf16.msra.mxu0 %v459
        %602 = vmatpush.bf16.msra.mxu0 %v451
        %603 = vmatpush.bf16.msra.mxu0 %v443
        %604 = vmatmul.bf16.gmra.mxu0 %v513
        %v605 = vpop.f32.mrf.mxu0
        %v606 = vadd.f32 %v319, %v605
        %v607 = vpop.f32.mrf.mxu0
        %v608 = vadd.f32 %v324, %v607
        %609 = vdwg.mxu0
        %610 = vmatpush.bf16.msra.mxu0 0
        %611 = vmatpush.bf16.msra.mxu0 0
        %612 = vmatpush.bf16.msra.mxu0 0
        %613 = vmatpush.bf16.msra.mxu0 %v532
        %614 = vmatpush.bf16.msra.mxu0 %v468
        %615 = vmatpush.bf16.msra.mxu0 %v460
        %616 = vmatpush.bf16.msra.mxu0 %v452
        %617 = vmatpush.bf16.msra.mxu0 %v444
        %618 = vmatmul.bf16.gmra.mxu0 %v513
        %v619 = vpop.f32.mrf.mxu0
        %v620 = vadd.f32 %v319, %v619
        %v621 = vpop.f32.mrf.mxu0
        %v622 = vadd.f32 %v324, %v621
        %623 = vdwg.mxu0
        %624 = vmatpush.bf16.msra.mxu0 0
        %625 = vmatpush.bf16.msra.mxu0 0
        %626 = vmatpush.bf16.msra.mxu0 0
        %627 = vmatpush.bf16.msra.mxu0 %v535
        %628 = vmatpush.bf16.msra.mxu0 %v469
        %629 = vmatpush.bf16.msra.mxu0 %v461
        %630 = vmatpush.bf16.msra.mxu0 %v453
        %631 = vmatpush.bf16.msra.mxu0 %v445
        %632 = vmatmul.bf16.gmra.mxu0 %v513
        %v633 = vpop.f32.mrf.mxu0
        %v634 = vadd.f32 %v319, %v633
        %v635 = vpop.f32.mrf.mxu0
        %v636 = vadd.f32 %v324, %v635
        %637 = vdwg.mxu0
        %638 = vmatpush.bf16.msra.mxu0 0
        %639 = vmatpush.bf16.msra.mxu0 0
        %640 = vmatpush.bf16.msra.mxu0 0
        %641 = vmatpush.bf16.msra.mxu0 %v538
        %642 = vmatpush.bf16.msra.mxu0 %v470
        %643 = vmatpush.bf16.msra.mxu0 %v462
        %644 = vmatpush.bf16.msra.mxu0 %v454
        %645 = vmatpush.bf16.msra.mxu0 %v446
        %646 = vmatmul.bf16.gmra.mxu0 %v513
        %v647 = vpop.f32.mrf.mxu0
        %v648 = vadd.f32 %v319, %v647
        %v649 = vpop.f32.mrf.mxu0
        %v650 = vadd.f32 %v324, %v649
        %651 = vdwg.mxu0
        %v652 = vtanh.pop %v550
        %v653 = vtanh.pop %v564
        %v654 = vtanh.pop %v578
        %v655 = vtanh.pop %v592
        %v656 = vtanh.pop %v606
        %v657 = vtanh.pop %v620
        %v658 = vtanh.pop %v634
        %v659 = vtanh.pop %v648
        %v660 = vtanh.pop %v552
        %v661 = vtanh.pop %v566
        %v662 = vtanh.pop %v580
        %v663 = vtanh.pop %v594
        %v664 = vtanh.pop %v608
        %v665 = vtanh.pop %v622
        %v666 = vtanh.pop %v636
        %v667 = vtanh.pop %v650
        %668 = vst [vmem:[%s272] sm:$0xff] %v652
        %669 = vst [vmem:[%s272 + $0x8] sm:$0xff] %v653
        %670 = vst [vmem:[%s272 + $0x10] sm:$0xff] %v654
        %671 = vst [vmem:[%s272 + $0x18] sm:$0xff] %v655
        %672 = vst [vmem:[%s272 + $0x20] sm:$0xff] %v656
        %673 = vst [vmem:[%s272 + $0x28] sm:$0xff] %v657
        %674 = vst [vmem:[%s272 + $0x30] sm:$0xff] %v658
        %675 = vst [vmem:[%s272 + $0x38] sm:$0xff] %v659
        %676 = vst [vmem:[%s272 + $0x40] sm:$0xf] %v660
        %677 = vst [vmem:[%s272 + $0x48] sm:$0xf] %v661
        %678 = vst [vmem:[%s272 + $0x50] sm:$0xf] %v662
        %679 = vst [vmem:[%s272 + $0x58] sm:$0xf] %v663
        %680 = vst [vmem:[%s272 + $0x60] sm:$0xf] %v664
        %681 = vst [vmem:[%s272 + $0x68] sm:$0xf] %v665
        %682 = vst [vmem:[%s272 + $0x70] sm:$0xf] %v666
        %683 = vst [vmem:[%s272 + $0x78] sm:$0xf] %v667
        %s684 = sand.u32 %s106, 1
        %s685 = sand.u32 %s106, 1
        %s686 = smul.addr %s685, 128
        %s687 = scalar_lea.vmem [#allocation3], %s686
        // Predicated region
        $region56: #{_lambda_.11} parent=50 // pred_check
          %p688 = pneg %p116
        $region57: #{_lambda_.11} parent=50 // pred_check_branch
          %690 = sbr.rel (%p688) target = $region59
        $region58: #{_lambda_.11} parent=50 // pred_region
          %s691 = smul.u32 8, %s19
          %s692 = smul.addr %s18, 64
          %s693 = sadd.s32 %s691, %s692
          %s694 = smul.addr %s693, 8
          %s695 = scalar_lea.vmem %s3, %s694
          // Predicated region
          $region60: #{_lambda_.11} parent=58 // pred_check
            _
          $region61: #{_lambda_.11} parent=58 // pred_check_branch
            %697 = sbr.rel (0) target = $region63
          $region62: #{_lambda_.11} parent=58 // pred_region
            // Predicated region
            $region64: #{_lambda_.11} parent=62 // pred_check
              _
            $region65: #{_lambda_.11} parent=62 // pred_check_branch
              %699 = sbr.rel (0) target = $region67
            $region66: #{_lambda_.11} parent=62 // pred_region
              loop: start=0, step=1, limit=1
              $region68: #{_lambda_.11} parent=66 // loop_pre_header
                _
              $region69: #{_lambda_.11} parent=66 // loop_header
                %s701 = sphi 0, %s705
                %p702 = scmp.ge.s32.totalorder %s701, 1
                %s706 = sphi %s687, %s687
                %s707 = sphi %s695, %s695
              $region70: #{_lambda_.11} parent=66 // loop_header_branch
                %704 = sbr.rel (%p702) target = $region74
              $region71: #{_lambda_.11} parent=66 // loop_body
                %v708 = vld [vmem:[%s706] sm:$0xff]
                %709 = vst [vmem:[%s707] sm:$0xff] %v708
                %v710 = vld [vmem:[%s706 + $0x8] sm:$0xff]
                %711 = vst [vmem:[%s707 + $0x8] sm:$0xff] %v710
                %v712 = vld [vmem:[%s706 + $0x10] sm:$0xff]
                %713 = vst [vmem:[%s707 + $0x10] sm:$0xff] %v712
                %v714 = vld [vmem:[%s706 + $0x18] sm:$0xff]
                %715 = vst [vmem:[%s707 + $0x18] sm:$0xff] %v714
                %v716 = vld [vmem:[%s706 + $0x20] sm:$0xff]
                %717 = vst [vmem:[%s707 + $0x20] sm:$0xff] %v716
                %v718 = vld [vmem:[%s706 + $0x28] sm:$0xff]
                %719 = vst [vmem:[%s707 + $0x28] sm:$0xff] %v718
                %v720 = vld [vmem:[%s706 + $0x30] sm:$0xff]
                %721 = vst [vmem:[%s707 + $0x30] sm:$0xff] %v720
                %v722 = vld [vmem:[%s706 + $0x38] sm:$0xff]
                %723 = vst [vmem:[%s707 + $0x38] sm:$0xff] %v722
                %v724 = vld [vmem:[%s706 + $0x40] sm:$0xff]
                %725 = vst [vmem:[%s707 + $0x100] sm:$0xff] %v724
                %v726 = vld [vmem:[%s706 + $0x48] sm:$0xff]
                %727 = vst [vmem:[%s707 + $0x108] sm:$0xff] %v726
                %v728 = vld [vmem:[%s706 + $0x50] sm:$0xff]
                %729 = vst [vmem:[%s707 + $0x110] sm:$0xff] %v728
                %v730 = vld [vmem:[%s706 + $0x58] sm:$0xff]
                %731 = vst [vmem:[%s707 + $0x118] sm:$0xff] %v730
                %v732 = vld [vmem:[%s706 + $0x60] sm:$0xff]
                %733 = vst [vmem:[%s707 + $0x120] sm:$0xff] %v732
                %v734 = vld [vmem:[%s706 + $0x68] sm:$0xff]
                %735 = vst [vmem:[%s707 + $0x128] sm:$0xff] %v734
                %v736 = vld [vmem:[%s706 + $0x70] sm:$0xff]
                %737 = vst [vmem:[%s707 + $0x130] sm:$0xff] %v736
                %v738 = vld [vmem:[%s706 + $0x78] sm:$0xff]
                %739 = vst [vmem:[%s707 + $0x138] sm:$0xff] %v738
              $region72: #{_lambda_.11} parent=66 // loop_footer
                %s705 = sadd.s32 1, %s701
              $region73: #{_lambda_.11} parent=66 // loop_footer_branch
                %700 = sbr.rel target = $region69
              $region74: #{_lambda_.11} parent=66 // loop_exit
                _
            $region67: #{_lambda_.11} parent=62 // pred_fallthru
              _
            // Predicated region
            $region75: #{_lambda_.11} parent=62 // pred_check
              _
            $region76: #{_lambda_.11} parent=62 // pred_check_branch
              %741 = sbr.rel target = $region78
            $region77: #{_lambda_.11} parent=62 // pred_region
              _
            $region78: #{_lambda_.11} parent=62 // pred_fallthru
              _
          $region63: #{_lambda_.11} parent=58 // pred_fallthru
            _
          %742 = vnop
        $region59: #{_lambda_.11} parent=50 // pred_fallthru
          _
      $region51: #{_lambda_.11} parent=5 // pred_fallthru
        _
      %p743 = scmp.le.s32.totalorder 2, %s9
      // Predicated region
      $region79: #{_lambda_.11} parent=5 // pred_check
        %p744 = pneg %p743
      $region80: #{_lambda_.11} parent=5 // pred_check_branch
        %746 = sbr.rel (%p744) target = $region82
      $region81: #{_lambda_.11} parent=5 // pred_region
        %s747 = ssub.s32 %s9, 2
        // Predicated region
        $region83: #{_lambda_.11} parent=81 // pred_check
          %p748 = pneg %p122
        $region84: #{_lambda_.11} parent=81 // pred_check_branch
          %750 = sbr.rel (%p748) target = $region86
        $region85: #{_lambda_.11} parent=81 // pred_region
          %s751 = sand.u32 %s107, 1
          %s752 = sand.u32 %s107, 1
          %s753 = smul.addr %s752, 128
          %s754 = scalar_lea.vmem [#allocation3], %s753
        $region86: #{_lambda_.11} parent=81 // pred_fallthru
          _
      $region82: #{_lambda_.11} parent=5 // pred_fallthru
        _
    $region6: #{_lambda_.11} parent=1 // loop_footer
      %s13 = sadd.s32 1, %s9
    $region7: #{_lambda_.11} parent=1 // loop_footer_branch
      %8 = sbr.rel target = $region3
    $region8: #{_lambda_.11} parent=1 // loop_exit
      _

</llo_original>
